<compile_context>
chip_gen: v5e
topology: v5e:2x2
jax: 0.10.0
libtpu: 0.0.40
codegen_flags: <defaults>
</compile_context>

<pallas_src>
import functools

import jax
import jax.numpy as jnp
from jax.experimental import pallas as pl
from jax.experimental.pallas import tpu as pltpu


def _policy_value_kernel(
    x_ref,            # (TM, H)    f32   activations (resident across j; cast in-kernel)
    wcat_ref,         # (H, 2H)    bf16  [wp1 | wc1] fused backbone weight (resident, 1-buf)
    bcat_ref,         # (1, 2H)    f32   [bp1 | bc1]
    wlm_ref,          # (H, TN)    bf16  lm_head weight tile (streamed over j)
    blm_ref,          # (1, TN)    f32   lm_head bias tile
    ws_ref,           # (1, H)     f32   score weight as a lane row
    bs_ref,           # (1, 1)     f32   score bias
    policy_out_ref,   # (TM, TN)   bf16 (configurable)
    value_out_ref,    # (TM, 128)  f32   lane-dense value slab (resident across j)
    ph_ref,           # scratch (TM, H) bf16 : cached policy hidden state
):
    j = pl.program_id(1)
    hdim = ph_ref.shape[1]

    # ---- backbone + value head: only on the first V tile of each M tile ----
    @pl.when(j == 0)
    def _():
        x = x_ref[...].astype(jnp.bfloat16)          # free VPU cast, hidden under MXU/DMA
        # One fused H -> 2H matmul for both backbones (MXU, f32 accumulate).
        h = jnp.dot(x, wcat_ref[...], preferred_element_type=jnp.float32)
        h = jnp.tanh(h + bcat_ref[...])              # f32 epilogue (VPU/EUP)
        ph_ref[...] = h[:, :hdim].astype(ph_ref.dtype)   # cache policy hidden for lm_head loop
        ch = h[:, hdim:]                                 # critic hidden

        # Value head on VPU + XLU lane-reduce (avoid an N=1 MXU matmul).
        v = jnp.sum(ch * ws_ref[...], axis=-1, keepdims=True) + bs_ref[...]
        # Lane-dense store: broadcast across 128 lanes; wrapper slices column 0.
        value_out_ref[...] = jnp.broadcast_to(v, value_out_ref.shape)

    # ---- policy lm_head tile: steady-state inner iteration (pure MXU) ----
    logits = (
        jnp.dot(ph_ref[...], wlm_ref[...], preferred_element_type=jnp.float32)
        + blm_ref[...]
    )
    policy_out_ref[...] = logits.astype(policy_out_ref.dtype)


def _vmem_limit_bytes():
    # ~75% of physical VMEM: ~96 MiB on v5e/v6e (128 MiB parts), ~48 MiB on v7x (64 MiB).
    try:
        cap = pltpu.get_tpu_info().vmem_capacity_bytes
    except Exception:
        cap = 128 << 20  # don't under-provision 128 MiB parts if the query fails
    return min(int(cap * 3 // 4), 100 << 20)


def prepare_params(params, *, tn=512):
    """One-time weight preparation (hoisted out of the per-call forward).

    Fuses the two backbone projections into one [H, 2H] bf16 weight, casts the
    lm_head to bf16 and pads its vocab dim to a multiple of `tn`, and lays out
    the score head as a lane row. Returns a dict of device arrays only.
    """
    H = params["wp1"].shape[0]
    V = params["wlm"].shape[1]
    tn = max(128, min(tn, ((V + 127) // 128) * 128))
    Vp = ((V + tn - 1) // tn) * tn

    wlm = params["wlm"].astype(jnp.bfloat16)
    blm = params["blm"].reshape(1, V).astype(jnp.float32)
    if Vp != V:
        wlm = jnp.pad(wlm, ((0, 0), (0, Vp - V)))
        blm = jnp.pad(blm, ((0, 0), (0, Vp - V)))

    # TODO(synk): optionally quantize wlm to int8 (v5e/v6e) / fp8 (v7x) with
    # per-channel scales folded into blm to halve the dominant streamed tensor.
    w_cat = jnp.concatenate([params["wp1"], params["wc1"]], axis=1).astype(jnp.bfloat16)
    b_cat = jnp.concatenate(
        [params["bp1"].reshape(1, H), params["bc1"].reshape(1, H)], axis=1
    ).astype(jnp.float32)

    return {
        "w_cat": w_cat,                                   # (H, 2H) bf16
        "b_cat": b_cat,                                   # (1, 2H) f32
        "wlm": wlm,                                       # (H, Vp) bf16
        "blm": blm,                                       # (1, Vp) f32
        "ws_row": params["ws"].reshape(1, H).astype(jnp.float32),
        "bs": params["bs"].reshape(1, 1).astype(jnp.float32),
    }


def policy_and_value_forward(
    x, prepped, *, num_logits=None, tm=256, tn=512, wlm_buffers=2,
    out_dtype=jnp.bfloat16,
):
    """x: [B, S, H] float32, prepped: output of prepare_params.

    Returns (policy_logits [B, S, V] in out_dtype, value_logits [B, S, 1] f32).
    `tn` must divide the padded vocab dim produced by prepare_params.
    """
    B, S, H = x.shape
    Vp = prepped["wlm"].shape[1]
    V = num_logits if num_logits is not None else Vp
    M = B * S

    assert H % 128 == 0, "hidden dim must be a multiple of 128 for this kernel"
    tn = min(tn, Vp)
    assert Vp % tn == 0 and tn % 128 == 0, "vocab dim / tile must be 128-aligned"

    # Pad rows (M) up to a multiple of the M tile; keep activations in f32
    # (the bf16 cast happens inside the kernel, hidden under the MXU/DMA).
    Mp = ((M + tm - 1) // tm) * tm
    x2d = x.reshape(M, H).astype(jnp.float32)
    if Mp != M:
        x2d = jnp.pad(x2d, ((0, Mp - M), (0, 0)))

    grid = (Mp // tm, Vp // tn)

    out_bytes = jnp.dtype(out_dtype).itemsize
    flops = 2 * Mp * H * (2 * H) + 2 * Mp * H * Vp + 2 * Mp * H
    bytes_accessed = (
        Mp * H * 4                       # x (f32)
        + H * (2 * H) * 2 + (2 * H) * 4  # fused backbone W/b (read once, resident)
        + (Mp // tm) * H * Vp * 2        # wlm re-streamed once per M tile
        + (Mp // tm) * Vp * 4            # blm re-streamed once per M tile
        + H * 4 + 4                      # score W/b
        + Mp * Vp * out_bytes            # policy writeback
        + Mp * 128 * 4                   # lane-dense value slab writeback
    )

    policy_out, value_out = pl.pallas_call(
        _policy_value_kernel,
        out_shape=(
            jax.ShapeDtypeStruct((Mp, Vp), out_dtype),
            jax.ShapeDtypeStruct((Mp, 128), jnp.float32),
        ),
        grid_spec=pltpu.PrefetchScalarGridSpec(
            num_scalar_prefetch=0,
            grid=grid,
            in_specs=[
                # x: resident per M tile; single-buffer to save VMEM (f32 tile).
                pl.BlockSpec((tm, H), lambda i, j: (i, 0),
                             pipeline_mode=pl.Buffered(1)),
                # Fused backbone weight/bias: grid-invariant -> single buffer.
                pl.BlockSpec((H, 2 * H), lambda i, j: (0, 0),
                             pipeline_mode=pl.Buffered(1)),
                pl.BlockSpec((1, 2 * H), lambda i, j: (0, 0),
                             pipeline_mode=pl.Buffered(1)),
                # lm_head weight/bias tile: the only per-step DMA -> multi-buffer.
                pl.BlockSpec((H, tn), lambda i, j: (0, j),
                             pipeline_mode=pl.Buffered(wlm_buffers)),
                pl.BlockSpec((1, tn), lambda i, j: (0, j),
                             pipeline_mode=pl.Buffered(wlm_buffers)),
                # Score head: grid-invariant -> single buffer.
                pl.BlockSpec((1, H), lambda i, j: (0, 0),
                             pipeline_mode=pl.Buffered(1)),
                pl.BlockSpec((1, 1), lambda i, j: (0, 0),
                             pipeline_mode=pl.Buffered(1)),
            ],
            out_specs=(
                pl.BlockSpec((tm, tn), lambda i, j: (i, j)),   # policy logits tile
                pl.BlockSpec((tm, 128), lambda i, j: (i, 0)),  # lane-dense value slab
            ),
            scratch_shapes=[pltpu.VMEM((tm, H), jnp.bfloat16)],  # cached policy hidden
        ),
        compiler_params=pltpu.CompilerParams(
            dimension_semantics=("parallel", "arbitrary"),
            vmem_limit_bytes=_vmem_limit_bytes(),
        ),
        cost_estimate=pl.CostEstimate(
            flops=flops,
            transcendentals=Mp * 2 * H,
            bytes_accessed=bytes_accessed,
        ),
    )(x2d, prepped["w_cat"], prepped["b_cat"], prepped["wlm"], prepped["blm"],
      prepped["ws_row"], prepped["bs"])

    policy_logits = policy_out[:M, :V].reshape(B, S, V)
    value_logits = value_out[:M, 0:1].reshape(B, S, 1)
    return policy_logits, value_logits


def _reference_forward(x, params):
    """Pure-JAX f32 reference of the same forward."""
    B, S, H = x.shape
    x2d = x.reshape(B * S, H)
    ph = jnp.tanh(x2d @ params["wp1"] + params["bp1"])
    policy_logits = ph @ params["wlm"] + params["blm"]
    ch = jnp.tanh(x2d @ params["wc1"] + params["bc1"])
    value_logits = ch @ params["ws"] + params["bs"]
    V = params["wlm"].shape[1]
    return policy_logits.reshape(B, S, V), value_logits.reshape(B, S, 1)


def init_params(key, H, V):
    ks = jax.random.split(key, 6)
    scale = 0.05
    return {
        "wp1": scale * jax.random.normal(ks[0], (H, H), jnp.float32),
        "bp1": 0.1 * jax.random.normal(ks[4], (1, H), jnp.float32),
        "wlm": scale * jax.random.normal(ks[1], (H, V), jnp.float32),
        "blm": 0.1 * jax.random.normal(ks[5], (1, V), jnp.float32),
        "wc1": scale * jax.random.normal(ks[2], (H, H), jnp.float32),
        "bc1": jnp.zeros((1, H), jnp.float32),
        "ws": scale * jax.random.normal(ks[3], (H, 1), jnp.float32),
        "bs": jnp.zeros((1, 1), jnp.float32),
    }


if __name__ == "__main__":
    # Small but grid-exercising shapes: M = B*S = 512 -> 2 M-tiles at tm=256,
    # V = 1024 -> 2 V-tiles at tn=512 (exercises the j>0 steady state + pl.when).
    B, S, H, V = 4, 128, 256, 1024

    key = jax.random.PRNGKey(0)
    k_x, k_p = jax.random.split(key)
    x = jax.random.normal(k_x, (B, S, H), jnp.float32)
    params = init_params(k_p, H, V)

    # One-time weight preparation, hoisted out of the forward (perf review item 1).
    prepped = prepare_params(params, tn=512)

    fwd = jax.jit(functools.partial(policy_and_value_forward, num_logits=V))
    policy_logits, value_logits = fwd(x, prepped)
    jax.block_until_ready((policy_logits, value_logits))

    ref_policy, ref_value = _reference_forward(x, params)
    assert policy_logits.shape == (B, S, V)
    assert value_logits.shape == (B, S, 1)
    # bf16 matmul operands + bf16 policy output -> loosened tolerance vs f32 reference.
    p32 = policy_logits.astype(jnp.float32)
    assert jnp.allclose(p32, ref_policy, atol=5e-2, rtol=5e-2), (
        float(jnp.max(jnp.abs(p32 - ref_policy)))
    )
    assert jnp.allclose(value_logits, ref_value, atol=3e-2, rtol=3e-2), (
        float(jnp.max(jnp.abs(value_logits - ref_value)))
    )

    print("KERNEL_OK")
</pallas_src>

<mosaic_0001>
module attributes {stable_mosaic.version = 11 : i64} {
  func.func @_policy_value_kernel(%arg0: i32, %arg1: i32, %arg2: memref<256x256xf32, #tpu.memory_space<vmem>>, %arg3: memref<256x512xbf16, #tpu.memory_space<vmem>>, %arg4: memref<1x512xf32, #tpu.memory_space<vmem>>, %arg5: memref<256x512xbf16, #tpu.memory_space<vmem>>, %arg6: memref<1x512xf32, #tpu.memory_space<vmem>>, %arg7: memref<1x256xf32, #tpu.memory_space<vmem>>, %arg8: memref<1x1xf32, #tpu.memory_space<vmem>>, %arg9: memref<256x512xbf16, #tpu.memory_space<vmem>>, %arg10: memref<256x128xf32, #tpu.memory_space<vmem>>, %arg11: memref<256x256xbf16, #tpu.memory_space<vmem>>) attributes {dimension_semantics = [#tpu.dimension_semantics<parallel>, #tpu.dimension_semantics<arbitrary>], iteration_bounds = array<i64: 2, 2>, scalar_prefetch = 0 : i64, scratch_operands = 1 : i64, tpu.core_type = #tpu.core_type<tc>, window_params = [{pipeline_mode = #tpu.pipeline_mode<synchronous>, transform_indices = @transform_0, window_bounds = array<i64: 256, 256>}, {pipeline_mode = #tpu.pipeline_mode<synchronous>, transform_indices = @transform_1, window_bounds = array<i64: 256, 512>}, {pipeline_mode = #tpu.pipeline_mode<synchronous>, transform_indices = @transform_2, window_bounds = array<i64: 1, 512>}, {pipeline_mode = #tpu.pipeline_mode<double_buffered>, transform_indices = @transform_3, window_bounds = array<i64: 256, 512>}, {pipeline_mode = #tpu.pipeline_mode<double_buffered>, transform_indices = @transform_4, window_bounds = array<i64: 1, 512>}, {pipeline_mode = #tpu.pipeline_mode<synchronous>, transform_indices = @transform_5, window_bounds = array<i64: 1, 256>}, {pipeline_mode = #tpu.pipeline_mode<synchronous>, transform_indices = @transform_6, window_bounds = array<i64: 1, 1>}, {transform_indices = @transform_7, window_bounds = array<i64: 256, 512>}, {transform_indices = @transform_8, window_bounds = array<i64: 256, 128>}]} {
    %c0_i32 = arith.constant 0 : i32
    %0 = arith.cmpi eq, %arg1, %c0_i32 : i32
    %1 = arith.extui %0 : i1 to i32
    %c0_i32_0 = arith.constant 0 : i32
    %2 = arith.cmpi ne, %1, %c0_i32_0 : i32
    scf.if %2 {
      %c0_8 = arith.constant 0 : index
      %c0_9 = arith.constant 0 : index
      %11 = vector.load %arg2[%c0_8, %c0_9] : memref<256x256xf32, #tpu.memory_space<vmem>>, vector<256x256xf32>
      %12 = arith.truncf %11 : vector<256x256xf32> to vector<256x256xbf16>
      %c0_10 = arith.constant 0 : index
      %c0_11 = arith.constant 0 : index
      %13 = vector.load %arg3[%c0_10, %c0_11] : memref<256x512xbf16, #tpu.memory_space<vmem>>, vector<256x512xbf16>
      %cst_12 = arith.constant dense<0.000000e+00> : vector<256x512xf32>
      %14 = tpu.matmul %12, %13, %cst_12 {dimension_numbers = #tpu.dot_dimension_numbers<[1], [0], [0], [1], [0, 0, 1, 1], [], []>} : vector<256x256xbf16>, vector<256x512xbf16>, vector<256x512xf32> -> vector<256x512xf32>
      %c0_13 = arith.constant 0 : index
      %c0_14 = arith.constant 0 : index
      %15 = vector.load %arg4[%c0_13, %c0_14] : memref<1x512xf32, #tpu.memory_space<vmem>>, vector<1x512xf32>
      %16 = vector.broadcast %15 : vector<1x512xf32> to vector<256x512xf32>
      %17 = arith.addf %14, %16 : vector<256x512xf32>
      %18 = math.tanh %17 : vector<256x512xf32>
      %19 = vector.extract_strided_slice %18 {offsets = [0, 0], sizes = [256, 256], strides = [1, 1]} : vector<256x512xf32> to vector<256x256xf32>
      %20 = arith.truncf %19 : vector<256x256xf32> to vector<256x256xbf16>
      %c0_15 = arith.constant 0 : index
      %c0_16 = arith.constant 0 : index
      %21 = vector.load %arg11[%c0_15, %c0_16] : memref<256x256xbf16, #tpu.memory_space<vmem>>, vector<256x256xbf16>
      tpu.vector_store %arg11[%c0_15, %c0_16], %20 {strides = array<i32>} : memref<256x256xbf16, #tpu.memory_space<vmem>>, vector<256x256xbf16>,
      %22 = vector.extract_strided_slice %18 {offsets = [0, 256], sizes = [256, 256], strides = [1, 1]} : vector<256x512xf32> to vector<256x256xf32>
      %c0_17 = arith.constant 0 : index
      %c0_18 = arith.constant 0 : index
      %23 = vector.load %arg7[%c0_17, %c0_18] : memref<1x256xf32, #tpu.memory_space<vmem>>, vector<1x256xf32>
      %24 = vector.broadcast %23 : vector<1x256xf32> to vector<256x256xf32>
      %25 = arith.mulf %22, %24 : vector<256x256xf32>
      %cst_19 = arith.constant dense<0.000000e+00> : vector<256xf32>
      %26 = vector.multi_reduction <add>, %25, %cst_19 [1] : vector<256x256xf32> to vector<256xf32>
      %27 = vector.shape_cast %26 : vector<256xf32> to vector<256x1xf32>
      %c0_20 = arith.constant 0 : index
      %c0_21 = arith.constant 0 : index
      %28 = vector.load %arg8[%c0_20, %c0_21] : memref<1x1xf32, #tpu.memory_space<vmem>>, vector<1x1xf32>
      %29 = vector.broadcast %28 : vector<1x1xf32> to vector<256x1xf32>
      %30 = arith.addf %27, %29 : vector<256x1xf32>
      %31 = vector.shape_cast %30 : vector<256x1xf32> to vector<256x1xf32>
      %32 = vector.broadcast %31 : vector<256x1xf32> to vector<256x128xf32>
      %c0_22 = arith.constant 0 : index
      %c0_23 = arith.constant 0 : index
      %33 = vector.load %arg10[%c0_22, %c0_23] : memref<256x128xf32, #tpu.memory_space<vmem>>, vector<256x128xf32>
      tpu.vector_store %arg10[%c0_22, %c0_23], %32 {strides = array<i32>} : memref<256x128xf32, #tpu.memory_space<vmem>>, vector<256x128xf32>,
    } else {
    }
    %c0 = arith.constant 0 : index
    %c0_1 = arith.constant 0 : index
    %3 = vector.load %arg11[%c0, %c0_1] : memref<256x256xbf16, #tpu.memory_space<vmem>>, vector<256x256xbf16>
    %c0_2 = arith.constant 0 : index
    %c0_3 = arith.constant 0 : index
    %4 = vector.load %arg5[%c0_2, %c0_3] : memref<256x512xbf16, #tpu.memory_space<vmem>>, vector<256x512xbf16>
    %cst = arith.constant dense<0.000000e+00> : vector<256x512xf32>
    %5 = tpu.matmul %3, %4, %cst {dimension_numbers = #tpu.dot_dimension_numbers<[1], [0], [0], [1], [0, 0, 1, 1], [], []>} : vector<256x256xbf16>, vector<256x512xbf16>, vector<256x512xf32> -> vector<256x512xf32>
    %c0_4 = arith.constant 0 : index
    %c0_5 = arith.constant 0 : index
    %6 = vector.load %arg6[%c0_4, %c0_5] : memref<1x512xf32, #tpu.memory_space<vmem>>, vector<1x512xf32>
    %7 = vector.broadcast %6 : vector<1x512xf32> to vector<256x512xf32>
    %8 = arith.addf %5, %7 : vector<256x512xf32>
    %9 = arith.truncf %8 : vector<256x512xf32> to vector<256x512xbf16>
    %c0_6 = arith.constant 0 : index
    %c0_7 = arith.constant 0 : index
    %10 = vector.load %arg9[%c0_6, %c0_7] : memref<256x512xbf16, #tpu.memory_space<vmem>>, vector<256x512xbf16>
    tpu.vector_store %arg9[%c0_6, %c0_7], %9 {strides = array<i32>} : memref<256x512xbf16, #tpu.memory_space<vmem>>, vector<256x512xbf16>,
    return
  }
  func.func @transform_0(%arg0: i32, %arg1: i32) -> (i32, i32) {
    %c0_i32 = arith.constant 0 : i32
    %c0_i32_0 = arith.constant 0 : i32
    return %arg0, %c0_i32 : i32, i32
  }
  func.func @transform_1(%arg0: i32, %arg1: i32) -> (i32, i32) {
    %c0_i32 = arith.constant 0 : i32
    %c0_i32_0 = arith.constant 0 : i32
    %c0_i32_1 = arith.constant 0 : i32
    return %c0_i32, %c0_i32_0 : i32, i32
  }
  func.func @transform_2(%arg0: i32, %arg1: i32) -> (i32, i32) {
    %c0_i32 = arith.constant 0 : i32
    %c0_i32_0 = arith.constant 0 : i32
    %c0_i32_1 = arith.constant 0 : i32
    return %c0_i32, %c0_i32_0 : i32, i32
  }
  func.func @transform_3(%arg0: i32, %arg1: i32) -> (i32, i32) {
    %c0_i32 = arith.constant 0 : i32
    %c0_i32_0 = arith.constant 0 : i32
    return %c0_i32, %arg1 : i32, i32
  }
  func.func @transform_4(%arg0: i32, %arg1: i32) -> (i32, i32) {
    %c0_i32 = arith.constant 0 : i32
    %c0_i32_0 = arith.constant 0 : i32
    return %c0_i32, %arg1 : i32, i32
  }
  func.func @transform_5(%arg0: i32, %arg1: i32) -> (i32, i32) {
    %c0_i32 = arith.constant 0 : i32
    %c0_i32_0 = arith.constant 0 : i32
    %c0_i32_1 = arith.constant 0 : i32
    return %c0_i32, %c0_i32_0 : i32, i32
  }
  func.func @transform_6(%arg0: i32, %arg1: i32) -> (i32, i32) {
    %c0_i32 = arith.constant 0 : i32
    %c0_i32_0 = arith.constant 0 : i32
    %c0_i32_1 = arith.constant 0 : i32
    return %c0_i32, %c0_i32_0 : i32, i32
  }
  func.func @transform_7(%arg0: i32, %arg1: i32) -> (i32, i32) {
    %c0_i32 = arith.constant 0 : i32
    return %arg0, %arg1 : i32, i32
  }
  func.func @transform_8(%arg0: i32, %arg1: i32) -> (i32, i32) {
    %c0_i32 = arith.constant 0 : i32
    %c0_i32_0 = arith.constant 0 : i32
    return %arg0, %c0_i32 : i32, i32
  }
}

</mosaic_0001>

<llo_original>
// kernel: policy_and_value_forward.1
$region0: #{policy_and_value_forward.1}
  #allocation0 [shape = 'u32[]', space=smem, size = 0x4, offset = 0x4, fixed_abs, tag = 'smem constant byte address 0x4 - core index']
  #allocation1 [shape = 'u32[72,128]{1,0:T(1,128)}', space=vmem, size = 0x9000, scoped, tag = 'internal scratch']
  #allocation2 [shape = 'bf16[256,256]{1,0:T(8,128)(2,1)}', space=vmem, size = 0x20000, scoped, tag = 'scratch operand']
  #allocation3 [shape = 'f32[1,1]{1,0:T(1,128)S(1)}', space=vmem, size = 0x200, scoped, tag = 'scoped memory for policy_and_value_forward.1']
  %s0 = inlined_call_operand.hbm [shape: f32[512,256], index: 0, kind: input, shape index: {}]
  %s1 = inlined_call_operand.hbm [shape: bf16[256,512], index: 1, kind: input, shape index: {}]
  %s2 = inlined_call_operand.hbm [shape: f32[1,512], index: 2, kind: input, shape index: {}]
  %s3 = inlined_call_operand.hbm [shape: bf16[256,1024], index: 3, kind: input, shape index: {}]
  %s4 = inlined_call_operand.hbm [shape: f32[1,1024], index: 4, kind: input, shape index: {}]
  %s5 = inlined_call_operand.vmem [shape: f32[1,256], index: 5, kind: input, shape index: {}]
  %s6 = inlined_call_operand.<no memory space> [shape: f32[1,1], index: 6, kind: input, shape index: {}]
  %s7 = inlined_call_operand.hbm [shape: bf16[512,1024], index: 7, kind: output, shape index: {0}]
  %s8 = inlined_call_operand.vmem [shape: f32[512,128], index: 8, kind: output, shape index: {1}]
  %9 = xla_tuple %s7, %s8
  %s10 = sld [smem:[#allocation0]]
  $region93: #{policy_and_value_forward.1} parent=0
    _
  %s12 = ssub.s32 1, %s10
  %s13 = scalar_select 0, %s12, %s10
  %v14 = vstv %s6
  %15 = vst [vmem:[#allocation3] sm:$0x1] %v14
  $region1: #{policy_and_value_forward.1} parent=0
    #allocation4 [shape = 'u8[262144]{0}', space=vmem, size = 0x40000, scoped, tag = 'input window, operand 0, single buffered']
    #allocation5 [shape = 's32[2]{0}', space=sflag, size = 0x8, scoped, tag = 'scoped memory for policy_and_value_forward.1']
    #allocation6 [shape = 's32[2]{0}', space=sflag, size = 0x8, scoped, tag = 'scoped memory for policy_and_value_forward.1']
    #allocation7 [shape = 'u8[262144]{0}', space=vmem, size = 0x40000, scoped, tag = 'input window, operand 1, single buffered']
    #allocation8 [shape = 's32[1]{0}', space=sflag, size = 0x4, scoped, tag = 'scoped memory for policy_and_value_forward.1']
    #allocation9 [shape = 'u8[2048]{0}', space=vmem, size = 0x800, scoped, tag = 'input window, operand 2, single buffered']
    #allocation10 [shape = 'u8[524288]{0}', space=vmem, size = 0x80000, scoped, tag = 'input window, operand 3']
    #allocation11 [shape = 's32[2]{0}', space=sflag, size = 0x8, scoped, tag = 'scoped memory for policy_and_value_forward.1']
    #allocation12 [shape = 'u8[4096]{0}', space=vmem, size = 0x1000, scoped, tag = 'input window, operand 4']
    #allocation13 [shape = 'u8[524288]{0}', space=vmem, size = 0x80000, scoped, tag = 'output window, operand 0']
    %16 = vsyncpa [#allocation5], 0
    %17 = vsyncpa [#allocation8], 0
    %18 = vsyncpa [#allocation11], 0
    %s19 = scalar_lea.sflag [#allocation11], 1
    %20 = vsyncpa %s19, 0
    %21 = vsyncpa [#allocation6], 0
    %s22 = scalar_lea.sflag [#allocation6], 1
    %23 = vsyncpa %s22, 0
    loop: start=0, step=1, limit=6
    $region2: #{policy_and_value_forward.1} parent=1 // loop_pre_header
      _
    $region3: #{policy_and_value_forward.1} parent=1 // loop_header
      %s25 = sphi 0, %s29
      %p26 = scmp.ge.s32.totalorder %s25, 6
      %s32 = sphi 0, %s44
      %s33 = sphi 0, %s40
      %s34 = sphi 0, %s32
      %s35 = sphi 0, %s33
      %s36 = sphi 0, %s34
      %s37 = sphi 0, %s35
      %s47 = sphi 0, %s49
      %s50 = sphi 0, %s47
      %s51 = sphi 0, %s50
      %s67 = sphi 0, %s51
      %s71 = sphi 0, %s71
      %s73 = sphi 0, %s71
      %s74 = sphi 0, %s73
      %s88 = sphi 0, %s74
      %s92 = sphi 0, %s92
      %s94 = sphi 0, %s92
      %s95 = sphi 0, %s94
      %s109 = sphi 0, %s95
      %s115 = sphi 0, %s117
      %s118 = sphi 0, %s115
      %s119 = sphi 0, %s118
      %s135 = sphi 0, %s119
      %s141 = sphi 0, %s143
      %s144 = sphi 0, %s141
      %s145 = sphi 0, %s144
      %s161 = sphi 0, %s145
      %s165 = sphi 0, %s165
      %s167 = sphi 0, %s165
      %s168 = sphi 0, %s167
      %s182 = sphi 0, %s168
      %s186 = sphi 0, %s186
      %s188 = sphi 0, %s186
      %s189 = sphi 0, %s188
      %s203 = sphi 0, %s189
      %s211 = sphi 0, %s213
      %s214 = sphi 0, %s211
      %s215 = sphi 0, %s214
      %s231 = sphi 0, %s215
      %s237 = sphi 0, %s239
      %s240 = sphi 0, %s237
      %s241 = sphi 0, %s240
      %s257 = sphi 0, %s241
    $region4: #{policy_and_value_forward.1} parent=1 // loop_header_branch
      %28 = sbr.rel (%p26) target = $region8
    $region5: #{policy_and_value_forward.1} parent=1 // loop_body
      %s30 = ssub.s32 %s25, 1
      %s31 = ssub.s32 %s25, 2
      %s38 = sadd.s32 1, %s33
      %p39 = scmp.ge.s32.totalorder %s38, 2
      %s40 = scalar_select %p39, 0, %s38
      %s41 = sadd.s32 1, %s32
      %s42 = scalar_select %p39, %s41, %s32
      %p43 = scmp.ge.s32.totalorder %s42, 2
      %s44 = scalar_select %p43, 0, %s42
      %s45 = ssub.s32 %s32, %s44
      %p46 = scmp.eq.s32.totalorder %s45, 0
      %s48 = sadd.s32 %s47, 1
      %s49 = scalar_select %p46, %s47, %s48
      %p52 = pneg %p46
      %p53 = scmp.eq.s32.totalorder %s25, 3
      %p54 = por %p52, %p53
      %p55 = scmp.ne.s32.totalorder %s47, %s50
      %p56 = scmp.eq.s32.totalorder %s25, 0
      %p57 = por %p55, %p56
      %p58 = scmp.ne.s32.totalorder %s47, %s50
      %p59 = scmp.eq.s32.totalorder %s30, 3
      %p60 = por %p58, %p59
      %p61 = scmp.ne.s32.totalorder %s50, %s51
      %p62 = scmp.eq.s32.totalorder %s30, 0
      %p63 = por %p61, %p62
      %p64 = scmp.ne.s32.totalorder %s50, %s51
      %p65 = scmp.eq.s32.totalorder %s31, 3
      %p66 = por %p64, %p65
      %p68 = scmp.ne.s32.totalorder %s51, %s67
      %p69 = scmp.eq.s32.totalorder %s31, 0
      %p70 = por %p68, %p69
      %s72 = sadd.s32 %s71, 1
      %p75 = scmp.eq.s32.totalorder %s25, 3
      %p76 = scmp.ne.s32.totalorder %s71, %s73
      %p77 = scmp.eq.s32.totalorder %s25, 0
      %p78 = por %p76, %p77
      %p79 = scmp.ne.s32.totalorder %s71, %s73
      %p80 = scmp.eq.s32.totalorder %s30, 3
      %p81 = por %p79, %p80
      %p82 = scmp.ne.s32.totalorder %s73, %s74
      %p83 = scmp.eq.s32.totalorder %s30, 0
      %p84 = por %p82, %p83
      %p85 = scmp.ne.s32.totalorder %s73, %s74
      %p86 = scmp.eq.s32.totalorder %s31, 3
      %p87 = por %p85, %p86
      %p89 = scmp.ne.s32.totalorder %s74, %s88
      %p90 = scmp.eq.s32.totalorder %s31, 0
      %p91 = por %p89, %p90
      %s93 = sadd.s32 %s92, 1
      %p96 = scmp.eq.s32.totalorder %s25, 3
      %p97 = scmp.ne.s32.totalorder %s92, %s94
      %p98 = scmp.eq.s32.totalorder %s25, 0
      %p99 = por %p97, %p98
      %p100 = scmp.ne.s32.totalorder %s92, %s94
      %p101 = scmp.eq.s32.totalorder %s30, 3
      %p102 = por %p100, %p101
      %p103 = scmp.ne.s32.totalorder %s94, %s95
      %p104 = scmp.eq.s32.totalorder %s30, 0
      %p105 = por %p103, %p104
      %p106 = scmp.ne.s32.totalorder %s94, %s95
      %p107 = scmp.eq.s32.totalorder %s31, 3
      %p108 = por %p106, %p107
      %p110 = scmp.ne.s32.totalorder %s95, %s109
      %p111 = scmp.eq.s32.totalorder %s31, 0
      %p112 = por %p110, %p111
      %s113 = ssub.s32 %s33, %s40
      %p114 = scmp.eq.s32.totalorder %s113, 0
      %s116 = sadd.s32 %s115, 1
      %s117 = scalar_select %p114, %s115, %s116
      %p120 = pneg %p114
      %p121 = scmp.eq.s32.totalorder %s25, 3
      %p122 = por %p120, %p121
      %p123 = scmp.ne.s32.totalorder %s115, %s118
      %p124 = scmp.eq.s32.totalorder %s25, 0
      %p125 = por %p123, %p124
      %p126 = scmp.ne.s32.totalorder %s115, %s118
      %p127 = scmp.eq.s32.totalorder %s30, 3
      %p128 = por %p126, %p127
      %p129 = scmp.ne.s32.totalorder %s118, %s119
      %p130 = scmp.eq.s32.totalorder %s30, 0
      %p131 = por %p129, %p130
      %p132 = scmp.ne.s32.totalorder %s118, %s119
      %p133 = scmp.eq.s32.totalorder %s31, 3
      %p134 = por %p132, %p133
      %p136 = scmp.ne.s32.totalorder %s119, %s135
      %p137 = scmp.eq.s32.totalorder %s31, 0
      %p138 = por %p136, %p137
      %s139 = ssub.s32 %s33, %s40
      %p140 = scmp.eq.s32.totalorder %s139, 0
      %s142 = sadd.s32 %s141, 1
      %s143 = scalar_select %p140, %s141, %s142
      %p146 = pneg %p140
      %p147 = scmp.eq.s32.totalorder %s25, 3
      %p148 = por %p146, %p147
      %p149 = scmp.ne.s32.totalorder %s141, %s144
      %p150 = scmp.eq.s32.totalorder %s25, 0
      %p151 = por %p149, %p150
      %p152 = scmp.ne.s32.totalorder %s141, %s144
      %p153 = scmp.eq.s32.totalorder %s30, 3
      %p154 = por %p152, %p153
      %p155 = scmp.ne.s32.totalorder %s144, %s145
      %p156 = scmp.eq.s32.totalorder %s30, 0
      %p157 = por %p155, %p156
      %p158 = scmp.ne.s32.totalorder %s144, %s145
      %p159 = scmp.eq.s32.totalorder %s31, 3
      %p160 = por %p158, %p159
      %p162 = scmp.ne.s32.totalorder %s145, %s161
      %p163 = scmp.eq.s32.totalorder %s31, 0
      %p164 = por %p162, %p163
      %s166 = sadd.s32 %s165, 1
      %p169 = scmp.eq.s32.totalorder %s25, 3
      %p170 = scmp.ne.s32.totalorder %s165, %s167
      %p171 = scmp.eq.s32.totalorder %s25, 0
      %p172 = por %p170, %p171
      %p173 = scmp.ne.s32.totalorder %s165, %s167
      %p174 = scmp.eq.s32.totalorder %s30, 3
      %p175 = por %p173, %p174
      %p176 = scmp.ne.s32.totalorder %s167, %s168
      %p177 = scmp.eq.s32.totalorder %s30, 0
      %p178 = por %p176, %p177
      %p179 = scmp.ne.s32.totalorder %s167, %s168
      %p180 = scmp.eq.s32.totalorder %s31, 3
      %p181 = por %p179, %p180
      %p183 = scmp.ne.s32.totalorder %s168, %s182
      %p184 = scmp.eq.s32.totalorder %s31, 0
      %p185 = por %p183, %p184
      %s187 = sadd.s32 %s186, 1
      %p190 = scmp.eq.s32.totalorder %s25, 3
      %p191 = scmp.ne.s32.totalorder %s186, %s188
      %p192 = scmp.eq.s32.totalorder %s25, 0
      %p193 = por %p191, %p192
      %p194 = scmp.ne.s32.totalorder %s186, %s188
      %p195 = scmp.eq.s32.totalorder %s30, 3
      %p196 = por %p194, %p195
      %p197 = scmp.ne.s32.totalorder %s188, %s189
      %p198 = scmp.eq.s32.totalorder %s30, 0
      %p199 = por %p197, %p198
      %p200 = scmp.ne.s32.totalorder %s188, %s189
      %p201 = scmp.eq.s32.totalorder %s31, 3
      %p202 = por %p200, %p201
      %p204 = scmp.ne.s32.totalorder %s189, %s203
      %p205 = scmp.eq.s32.totalorder %s31, 0
      %p206 = por %p204, %p205
      %s207 = ssub.s32 %s32, %s44
      %s208 = ssub.s32 %s33, %s40
      %s209 = sor.u32 %s207, %s208
      %p210 = scmp.eq.s32.totalorder %s209, 0
      %s212 = sadd.s32 %s211, 1
      %s213 = scalar_select %p210, %s211, %s212
      %p216 = pneg %p210
      %p217 = scmp.eq.s32.totalorder %s25, 3
      %p218 = por %p216, %p217
      %p219 = scmp.ne.s32.totalorder %s211, %s214
      %p220 = scmp.eq.s32.totalorder %s25, 0
      %p221 = por %p219, %p220
      %p222 = scmp.ne.s32.totalorder %s211, %s214
      %p223 = scmp.eq.s32.totalorder %s30, 3
      %p224 = por %p222, %p223
      %p225 = scmp.ne.s32.totalorder %s214, %s215
      %p226 = scmp.eq.s32.totalorder %s30, 0
      %p227 = por %p225, %p226
      %p228 = scmp.ne.s32.totalorder %s214, %s215
      %p229 = scmp.eq.s32.totalorder %s31, 3
      %p230 = por %p228, %p229
      %p232 = scmp.ne.s32.totalorder %s215, %s231
      %p233 = scmp.eq.s32.totalorder %s31, 0
      %p234 = por %p232, %p233
      %s235 = ssub.s32 %s32, %s44
      %p236 = scmp.eq.s32.totalorder %s235, 0
      %s238 = sadd.s32 %s237, 1
      %s239 = scalar_select %p236, %s237, %s238
      %p242 = pneg %p236
      %p243 = scmp.eq.s32.totalorder %s25, 3
      %p244 = por %p242, %p243
      %p245 = scmp.ne.s32.totalorder %s237, %s240
      %p246 = scmp.eq.s32.totalorder %s25, 0
      %p247 = por %p245, %p246
      %p248 = scmp.ne.s32.totalorder %s237, %s240
      %p249 = scmp.eq.s32.totalorder %s30, 3
      %p250 = por %p248, %p249
      %p251 = scmp.ne.s32.totalorder %s240, %s241
      %p252 = scmp.eq.s32.totalorder %s30, 0
      %p253 = por %p251, %p252
      %p254 = scmp.ne.s32.totalorder %s240, %s241
      %p255 = scmp.eq.s32.totalorder %s31, 3
      %p256 = por %p254, %p255
      %p258 = scmp.ne.s32.totalorder %s241, %s257
      %p259 = scmp.eq.s32.totalorder %s31, 0
      %p260 = por %p258, %p259
      %p261 = scmp.le.s32.totalorder 1, %s25
      %p262 = scmp.lt.s32.totalorder %s25, 5
      %p263 = pnand %p261, %p262
      %p264 = pneg %p263
      // Predicated region
      $region9: #{policy_and_value_forward.1} parent=5 // pred_check
        _
      $region10: #{policy_and_value_forward.1} parent=5 // pred_check_branch
        %266 = sbr.rel (%p263) target = $region12
      $region11: #{policy_and_value_forward.1} parent=5 // pred_region
        %s267 = ssub.s32 %s25, 1
        // Predicated region
        $region13: #{policy_and_value_forward.1} parent=11 // pred_check
          %p268 = pneg %p63
        $region14: #{policy_and_value_forward.1} parent=11 // pred_check_branch
          %270 = sbr.rel (%p268) target = $region16
        $region15: #{policy_and_value_forward.1} parent=11 // pred_region
          %s271 = smul.u32 32, %s34
          %273 = vsyncadd [#allocation5], 0
          %s274 = smul.addr %s271, 2
          %s275 = smul.addr %s274, 8
          %s276 = scalar_lea.hbm %s0, %s275
          %s277 = sshll.u32 %s276, 4
          %s278 = int_to_ptr.hbm [resolvable:$true] %s277
          %s279 = sshll.u32 [#allocation4], 4
          %s280 = int_to_ptr.vmem [resolvable:$true] %s279
          %285 = dma.hbm_to_vmem [thread:$0]  %s278, 8192, %s280, [#allocation5], 256, 256, 16
        $region16: #{policy_and_value_forward.1} parent=11 // pred_fallthru
          _
        // Predicated region
        $region17: #{policy_and_value_forward.1} parent=11 // pred_check
          %p286 = pneg %p84
        $region18: #{policy_and_value_forward.1} parent=11 // pred_check_branch
          %288 = sbr.rel (%p286) target = $region20
        $region19: #{policy_and_value_forward.1} parent=11 // pred_region
          %290 = vsyncadd [#allocation8], 0
          %s291 = sshll.u32 %s1, 4
          %s292 = int_to_ptr.hbm [resolvable:$true] %s291
          %s293 = sshll.u32 [#allocation7], 4
          %s294 = int_to_ptr.vmem [resolvable:$true] %s293
          %299 = dma.hbm_to_vmem [thread:$0]  %s292, 8192, %s294, [#allocation8], 256, 256, 16
        $region20: #{policy_and_value_forward.1} parent=11 // pred_fallthru
          _
        // Predicated region
        $region21: #{policy_and_value_forward.1} parent=11 // pred_check
          %p300 = pneg %p105
        $region22: #{policy_and_value_forward.1} parent=11 // pred_check_branch
          %302 = sbr.rel (%p300) target = $region24
        $region23: #{policy_and_value_forward.1} parent=11 // pred_region
          %304 = vsyncadd [#allocation8], 0
          %s306 = sshll.u32 %s2, 4
          %s307 = int_to_ptr.hbm [resolvable:$true] %s306
          %s308 = sshll.u32 [#allocation9], 4
          %s309 = int_to_ptr.vmem [resolvable:$true] %s308
          %311 = dma.hbm_to_vmem [thread:$0]  %s307, 64, %s309, [#allocation8]
        $region24: #{policy_and_value_forward.1} parent=11 // pred_fallthru
          _
        // Predicated region
        $region25: #{policy_and_value_forward.1} parent=11 // pred_check
          %p312 = pneg %p178
        $region26: #{policy_and_value_forward.1} parent=11 // pred_check_branch
          %314 = sbr.rel (%p312) target = $region28
        $region27: #{policy_and_value_forward.1} parent=11 // pred_region
          _
        $region28: #{policy_and_value_forward.1} parent=11 // pred_fallthru
          _
        // Predicated region
        $region29: #{policy_and_value_forward.1} parent=11 // pred_check
          %p315 = pneg %p199
        $region30: #{policy_and_value_forward.1} parent=11 // pred_check_branch
          %317 = sbr.rel (%p315) target = $region32
        $region31: #{policy_and_value_forward.1} parent=11 // pred_region
          _
        $region32: #{policy_and_value_forward.1} parent=11 // pred_fallthru
          _
      $region12: #{policy_and_value_forward.1} parent=5 // pred_fallthru
        _
      %p318 = scmp.lt.s32.totalorder %s25, 4
      // Predicated region
      $region33: #{policy_and_value_forward.1} parent=5 // pred_check
        %p319 = pneg %p318
      $region34: #{policy_and_value_forward.1} parent=5 // pred_check_branch
        %321 = sbr.rel (%p319) target = $region36
      $region35: #{policy_and_value_forward.1} parent=5 // pred_region
        // Predicated region
        $region37: #{policy_and_value_forward.1} parent=35 // pred_check
          %p322 = pneg %p125
        $region38: #{policy_and_value_forward.1} parent=35 // pred_check_branch
          %324 = sbr.rel (%p322) target = $region40
        $region39: #{policy_and_value_forward.1} parent=35 // pred_region
          %s325 = sand.u32 %s25, 1
          %s326 = scalar_lea.sflag [#allocation11], %s325
          %s327 = sand.u32 %s115, 1
          %s328 = smul.addr %s327, 512
          %s329 = scalar_lea.vmem [#allocation10], %s328
          %s330 = smul.u32 4, %s33
          %332 = vsyncadd %s326, 0
          %s333 = smul.addr %s330, 4
          %s334 = scalar_lea.hbm %s3, %s333
          %s335 = sshll.u32 %s334, 4
          %s336 = int_to_ptr.hbm [resolvable:$true] %s335
          %s337 = sshll.u32 %s329, 4
          %s338 = int_to_ptr.vmem [resolvable:$true] %s337
          %343 = dma.hbm_to_vmem [thread:$0]  %s336, 8192, %s338, %s326, 512, 256, 16
        $region40: #{policy_and_value_forward.1} parent=35 // pred_fallthru
          _
        // Predicated region
        $region41: #{policy_and_value_forward.1} parent=35 // pred_check
          %p344 = pneg %p151
        $region42: #{policy_and_value_forward.1} parent=35 // pred_check_branch
          %346 = sbr.rel (%p344) target = $region44
        $region43: #{policy_and_value_forward.1} parent=35 // pred_region
          %s347 = sand.u32 %s25, 1
          %s348 = scalar_lea.sflag [#allocation11], %s347
          %s349 = sand.u32 %s141, 1
          %s350 = smul.addr %s349, 4
          %s351 = scalar_lea.vmem [#allocation12], %s350
          %s352 = smul.u32 4, %s33
          %354 = vsyncadd %s348, 0
          %s355 = scalar_lea.hbm %s4, %s352
          %s357 = sshll.u32 %s355, 4
          %s358 = int_to_ptr.hbm [resolvable:$true] %s357
          %s359 = sshll.u32 %s351, 4
          %s360 = int_to_ptr.vmem [resolvable:$true] %s359
          %362 = dma.hbm_to_vmem [thread:$0]  %s358, 64, %s360, %s348
        $region44: #{policy_and_value_forward.1} parent=35 // pred_fallthru
          _
      $region36: #{policy_and_value_forward.1} parent=5 // pred_fallthru
        _
      %p363 = scmp.le.s32.totalorder 1, %s25
      %p364 = scmp.lt.s32.totalorder %s25, 5
      %p365 = pnand %p363, %p364
      %p366 = pneg %p365
      // Predicated region
      $region45: #{policy_and_value_forward.1} parent=5 // pred_check
        _
      $region46: #{policy_and_value_forward.1} parent=5 // pred_check_branch
        %368 = sbr.rel (%p365) target = $region48
      $region47: #{policy_and_value_forward.1} parent=5 // pred_region
        %s369 = ssub.s32 %s25, 1
        // Predicated region
        $region49: #{policy_and_value_forward.1} parent=47 // pred_check
          %p370 = pneg %p63
        $region50: #{policy_and_value_forward.1} parent=47 // pred_check_branch
          %372 = sbr.rel (%p370) target = $region52
        $region51: #{policy_and_value_forward.1} parent=47 // pred_region
          %374 = dma.done [#allocation5], 8192
        $region52: #{policy_and_value_forward.1} parent=47 // pred_fallthru
          _
        // Predicated region
        $region53: #{policy_and_value_forward.1} parent=47 // pred_check
          %p375 = pneg %p84
        $region54: #{policy_and_value_forward.1} parent=47 // pred_check_branch
          %377 = sbr.rel (%p375) target = $region56
        $region55: #{policy_and_value_forward.1} parent=47 // pred_region
          %379 = dma.done [#allocation8], 8192
        $region56: #{policy_and_value_forward.1} parent=47 // pred_fallthru
          _
        // Predicated region
        $region57: #{policy_and_value_forward.1} parent=47 // pred_check
          %p380 = pneg %p105
        $region58: #{policy_and_value_forward.1} parent=47 // pred_check_branch
          %382 = sbr.rel (%p380) target = $region60
        $region59: #{policy_and_value_forward.1} parent=47 // pred_region
          %384 = dma.done [#allocation8], 64
        $region60: #{policy_and_value_forward.1} parent=47 // pred_fallthru
          _
        %s385 = sand.u32 %s30, 1
        %s386 = scalar_lea.sflag [#allocation11], %s385
        %s387 = sand.u32 %s118, 1
        %s388 = smul.addr %s387, 512
        %s389 = scalar_lea.vmem [#allocation10], %s388
        // Predicated region
        $region61: #{policy_and_value_forward.1} parent=47 // pred_check
          %p390 = pneg %p131
        $region62: #{policy_and_value_forward.1} parent=47 // pred_check_branch
          %392 = sbr.rel (%p390) target = $region64
        $region63: #{policy_and_value_forward.1} parent=47 // pred_region
          %394 = dma.done %s386, 8192
        $region64: #{policy_and_value_forward.1} parent=47 // pred_fallthru
          _
        %s395 = sand.u32 %s30, 1
        %s396 = scalar_lea.sflag [#allocation11], %s395
        %s397 = sand.u32 %s144, 1
        %s398 = smul.addr %s397, 4
        %s399 = scalar_lea.vmem [#allocation12], %s398
        // Predicated region
        $region65: #{policy_and_value_forward.1} parent=47 // pred_check
          %p400 = pneg %p157
        $region66: #{policy_and_value_forward.1} parent=47 // pred_check_branch
          %402 = sbr.rel (%p400) target = $region68
        $region67: #{policy_and_value_forward.1} parent=47 // pred_region
          %404 = dma.done %s396, 64
        $region68: #{policy_and_value_forward.1} parent=47 // pred_fallthru
          _
        %p405 = pneg %p63
        %p406 = pneg %p60
        %p407 = pneg %p84
        %p408 = pneg %p81
        %p409 = pneg %p105
        %p410 = pneg %p102
        %s411 = sand.u32 %s30, 1
        %s412 = scalar_lea.sflag [#allocation11], %s411
        %s413 = sand.u32 %s118, 1
        %s414 = smul.addr %s413, 512
        %s415 = scalar_lea.vmem [#allocation10], %s414
        %p416 = pneg %p131
        %p417 = pneg %p128
        %s418 = sand.u32 %s30, 1
        %s419 = scalar_lea.sflag [#allocation11], %s418
        %s420 = sand.u32 %s144, 1
        %s421 = smul.addr %s420, 4
        %s422 = scalar_lea.vmem [#allocation12], %s421
        %p423 = pneg %p157
        %p424 = pneg %p154
        %p425 = pneg %p178
        %p426 = pneg %p175
        %p427 = pneg %p199
        %p428 = pneg %p196
        %p429 = pneg %p227
        %p430 = pneg %p224
        %s431 = sand.u32 %s214, 1
        %s432 = scalar_lea.sflag [#allocation6], %s431
        %s433 = sand.u32 %s214, 1
        %s434 = smul.addr %s433, 512
        %s435 = scalar_lea.vmem [#allocation13], %s434
        %p436 = pneg %p253
        %p437 = pneg %p250
        %s438 = smul.u32 32, %s34
        %p439 = scmp.lt.s32.totalorder %s438, 63
        %s440 = scalar_select %p439, %s438, 63
        %s441 = smul.addr %s440, 8
        %s442 = scalar_lea.vmem %s8, %s441
        %s443 = smul.u32 32, %s34
        %s444 = smul.u32 4, %s35
        %s445 = smul.u32 4, %s35
        %s446 = smul.u32 32, %s34
        %s447 = smul.u32 4, %s35
        %s448 = smul.u32 32, %s34
        %p449 = scmp.lt.s32.totalorder %s448, 63
        %s450 = scalar_select %p449, %s448, 63
        %s451 = smul.addr %s450, 8
        %s452 = scalar_lea.vmem %s8, %s451
        %s453 = smul.u32 32, %s34
        %p454 = scmp.eq.s32.totalorder %s35, 0
        // Predicated region
        $region69: #{policy_and_value_forward.1} parent=47 // pred_check
          %p455 = pneg %p454
        $region70: #{policy_and_value_forward.1} parent=47 // pred_check_branch
          %457 = sbr.rel (%p455) target = $region72
        $region71: #{policy_and_value_forward.1} parent=47 // pred_region
          %v458 = vld [vmem:[#allocation4] sm:$0xff]
          %v459 = vld [vmem:[#allocation4 + $0x8] sm:$0xff]
          %v460 = vld [vmem:[#allocation4 + $0x10] sm:$0xff]
          %v461 = vld [vmem:[#allocation4 + $0x18] sm:$0xff]
          %v462 = vld [vmem:[#allocation4 + $0x20] sm:$0xff]
          %v463 = vld [vmem:[#allocation4 + $0x28] sm:$0xff]
          %v464 = vld [vmem:[#allocation4 + $0x30] sm:$0xff]
          %v465 = vld [vmem:[#allocation4 + $0x38] sm:$0xff]
          %v466 = vld [vmem:[#allocation4 + $0x40] sm:$0xff]
          %v467 = vld [vmem:[#allocation4 + $0x48] sm:$0xff]
          %v468 = vld [vmem:[#allocation4 + $0x50] sm:$0xff]
          %v469 = vld [vmem:[#allocation4 + $0x58] sm:$0xff]
          %v470 = vld [vmem:[#allocation4 + $0x60] sm:$0xff]
          %v471 = vld [vmem:[#allocation4 + $0x68] sm:$0xff]
          %v472 = vld [vmem:[#allocation4 + $0x70] sm:$0xff]
          %v473 = vld [vmem:[#allocation4 + $0x78] sm:$0xff]
          %v474 = vld [vmem:[#allocation4 + $0x80] sm:$0xff]
          %v475 = vld [vmem:[#allocation4 + $0x88] sm:$0xff]
          %v476 = vld [vmem:[#allocation4 + $0x90] sm:$0xff]
          %v477 = vld [vmem:[#allocation4 + $0x98] sm:$0xff]
          %v478 = vld [vmem:[#allocation4 + $0xa0] sm:$0xff]
          %v479 = vld [vmem:[#allocation4 + $0xa8] sm:$0xff]
          %v480 = vld [vmem:[#allocation4 + $0xb0] sm:$0xff]
          %v481 = vld [vmem:[#allocation4 + $0xb8] sm:$0xff]
          %v482 = vld [vmem:[#allocation4 + $0xc0] sm:$0xff]
          %v483 = vld [vmem:[#allocation4 + $0xc8] sm:$0xff]
          %v484 = vld [vmem:[#allocation4 + $0xd0] sm:$0xff]
          %v485 = vld [vmem:[#allocation4 + $0xd8] sm:$0xff]
          %v486 = vld [vmem:[#allocation4 + $0xe0] sm:$0xff]
          %v487 = vld [vmem:[#allocation4 + $0xe8] sm:$0xff]
          %v488 = vld [vmem:[#allocation4 + $0xf0] sm:$0xff]
          %v489 = vld [vmem:[#allocation4 + $0xf8] sm:$0xff]
          %v490 = vld [vmem:[#allocation4 + $0x100] sm:$0xff]
          %v491 = vld [vmem:[#allocation4 + $0x108] sm:$0xff]
          %v492 = vld [vmem:[#allocation4 + $0x110] sm:$0xff]
          %v493 = vld [vmem:[#allocation4 + $0x118] sm:$0xff]
          %v494 = vld [vmem:[#allocation4 + $0x120] sm:$0xff]
          %v495 = vld [vmem:[#allocation4 + $0x128] sm:$0xff]
          %v496 = vld [vmem:[#allocation4 + $0x130] sm:$0xff]
          %v497 = vld [vmem:[#allocation4 + $0x138] sm:$0xff]
          %v498 = vld [vmem:[#allocation4 + $0x140] sm:$0xff]
          %v499 = vld [vmem:[#allocation4 + $0x148] sm:$0xff]
          %v500 = vld [vmem:[#allocation4 + $0x150] sm:$0xff]
          %v501 = vld [vmem:[#allocation4 + $0x158] sm:$0xff]
          %v502 = vld [vmem:[#allocation4 + $0x160] sm:$0xff]
          %v503 = vld [vmem:[#allocation4 + $0x168] sm:$0xff]
          %v504 = vld [vmem:[#allocation4 + $0x170] sm:$0xff]
          %v505 = vld [vmem:[#allocation4 + $0x178] sm:$0xff]
          %v506 = vld [vmem:[#allocation4 + $0x180] sm:$0xff]
          %v507 = vld [vmem:[#allocation4 + $0x188] sm:$0xff]
          %v508 = vld [vmem:[#allocation4 + $0x190] sm:$0xff]
          %v509 = vld [vmem:[#allocation4 + $0x198] sm:$0xff]
          %v510 = vld [vmem:[#allocation4 + $0x1a0] sm:$0xff]
          %v511 = vld [vmem:[#allocation4 + $0x1a8] sm:$0xff]
          %v512 = vld [vmem:[#allocation4 + $0x1b0] sm:$0xff]
          %v513 = vld [vmem:[#allocation4 + $0x1b8] sm:$0xff]
          %v514 = vld [vmem:[#allocation4 + $0x1c0] sm:$0xff]
          %v515 = vld [vmem:[#allocation4 + $0x1c8] sm:$0xff]
          %v516 = vld [vmem:[#allocation4 + $0x1d0] sm:$0xff]
          %v517 = vld [vmem:[#allocation4 + $0x1d8] sm:$0xff]
          %v518 = vld [vmem:[#allocation4 + $0x1e0] sm:$0xff]
          %v519 = vld [vmem:[#allocation4 + $0x1e8] sm:$0xff]
          %v520 = vld [vmem:[#allocation4 + $0x1f0] sm:$0xff]
          %v521 = vld [vmem:[#allocation4 + $0x1f8] sm:$0xff]
          %v522 = vpack.c.bf16 %v460, %v458
          %v523 = vpack.c.bf16 %v461, %v459
          %v524 = vpack.c.bf16 %v464, %v462
          %v525 = vpack.c.bf16 %v465, %v463
          %v526 = vpack.c.bf16 %v468, %v466
          %v527 = vpack.c.bf16 %v469, %v467
          %v528 = vpack.c.bf16 %v472, %v470
          %v529 = vpack.c.bf16 %v473, %v471
          %v530 = vpack.c.bf16 %v476, %v474
          %v531 = vpack.c.bf16 %v477, %v475
          %v532 = vpack.c.bf16 %v480, %v478
          %v533 = vpack.c.bf16 %v481, %v479
          %v534 = vpack.c.bf16 %v484, %v482
          %v535 = vpack.c.bf16 %v485, %v483
          %v536 = vpack.c.bf16 %v488, %v486
          %v537 = vpack.c.bf16 %v489, %v487
          %v538 = vpack.c.bf16 %v492, %v490
          %v539 = vpack.c.bf16 %v493, %v491
          %v540 = vpack.c.bf16 %v496, %v494
          %v541 = vpack.c.bf16 %v497, %v495
          %v542 = vpack.c.bf16 %v500, %v498
          %v543 = vpack.c.bf16 %v501, %v499
          %v544 = vpack.c.bf16 %v504, %v502
          %v545 = vpack.c.bf16 %v505, %v503
          %v546 = vpack.c.bf16 %v508, %v506
          %v547 = vpack.c.bf16 %v509, %v507
          %v548 = vpack.c.bf16 %v512, %v510
          %v549 = vpack.c.bf16 %v513, %v511
          %v550 = vpack.c.bf16 %v516, %v514
          %v551 = vpack.c.bf16 %v517, %v515
          %v552 = vpack.c.bf16 %v520, %v518
          %v553 = vpack.c.bf16 %v521, %v519
          %v554 = vld [vmem:[#allocation7] sm:$0xff]
          %v555 = vld [vmem:[#allocation7 + $0x8] sm:$0xff]
          %v556 = vld [vmem:[#allocation7 + $0x10] sm:$0xff]
          %v557 = vld [vmem:[#allocation7 + $0x18] sm:$0xff]
          %v558 = vld [vmem:[#allocation7 + $0x20] sm:$0xff]
          %v559 = vld [vmem:[#allocation7 + $0x28] sm:$0xff]
          %v560 = vld [vmem:[#allocation7 + $0x30] sm:$0xff]
          %v561 = vld [vmem:[#allocation7 + $0x38] sm:$0xff]
          %v562 = vld [vmem:[#allocation7 + $0x40] sm:$0xff]
          %v563 = vld [vmem:[#allocation7 + $0x48] sm:$0xff]
          %v564 = vld [vmem:[#allocation7 + $0x50] sm:$0xff]
          %v565 = vld [vmem:[#allocation7 + $0x58] sm:$0xff]
          %v566 = vld [vmem:[#allocation7 + $0x60] sm:$0xff]
          %v567 = vld [vmem:[#allocation7 + $0x68] sm:$0xff]
          %v568 = vld [vmem:[#allocation7 + $0x70] sm:$0xff]
          %v569 = vld [vmem:[#allocation7 + $0x78] sm:$0xff]
          %v570 = vld [vmem:[#allocation7 + $0x80] sm:$0xff]
          %v571 = vld [vmem:[#allocation7 + $0x88] sm:$0xff]
          %v572 = vld [vmem:[#allocation7 + $0x90] sm:$0xff]
          %v573 = vld [vmem:[#allocation7 + $0x98] sm:$0xff]
          %v574 = vld [vmem:[#allocation7 + $0xa0] sm:$0xff]
          %v575 = vld [vmem:[#allocation7 + $0xa8] sm:$0xff]
          %v576 = vld [vmem:[#allocation7 + $0xb0] sm:$0xff]
          %v577 = vld [vmem:[#allocation7 + $0xb8] sm:$0xff]
          %v578 = vld [vmem:[#allocation7 + $0xc0] sm:$0xff]
          %v579 = vld [vmem:[#allocation7 + $0xc8] sm:$0xff]
          %v580 = vld [vmem:[#allocation7 + $0xd0] sm:$0xff]
          %v581 = vld [vmem:[#allocation7 + $0xd8] sm:$0xff]
          %v582 = vld [vmem:[#allocation7 + $0xe0] sm:$0xff]
          %v583 = vld [vmem:[#allocation7 + $0xe8] sm:$0xff]
          %v584 = vld [vmem:[#allocation7 + $0xf0] sm:$0xff]
          %v585 = vld [vmem:[#allocation7 + $0xf8] sm:$0xff]
          %v586 = vld [vmem:[#allocation7 + $0x100] sm:$0xff]
          %v587 = vld [vmem:[#allocation7 + $0x108] sm:$0xff]
          %v588 = vld [vmem:[#allocation7 + $0x110] sm:$0xff]
          %v589 = vld [vmem:[#allocation7 + $0x118] sm:$0xff]
          %v590 = vld [vmem:[#allocation7 + $0x120] sm:$0xff]
          %v591 = vld [vmem:[#allocation7 + $0x128] sm:$0xff]
          %v592 = vld [vmem:[#allocation7 + $0x130] sm:$0xff]
          %v593 = vld [vmem:[#allocation7 + $0x138] sm:$0xff]
          %v594 = vld [vmem:[#allocation7 + $0x140] sm:$0xff]
          %v595 = vld [vmem:[#allocation7 + $0x148] sm:$0xff]
          %v596 = vld [vmem:[#allocation7 + $0x150] sm:$0xff]
          %v597 = vld [vmem:[#allocation7 + $0x158] sm:$0xff]
          %v598 = vld [vmem:[#allocation7 + $0x160] sm:$0xff]
          %v599 = vld [vmem:[#allocation7 + $0x168] sm:$0xff]
          %v600 = vld [vmem:[#allocation7 + $0x170] sm:$0xff]
          %v601 = vld [vmem:[#allocation7 + $0x178] sm:$0xff]
          %v602 = vld [vmem:[#allocation7 + $0x180] sm:$0xff]
          %v603 = vld [vmem:[#allocation7 + $0x188] sm:$0xff]
          %v604 = vld [vmem:[#allocation7 + $0x190] sm:$0xff]
          %v605 = vld [vmem:[#allocation7 + $0x198] sm:$0xff]
          %v606 = vld [vmem:[#allocation7 + $0x1a0] sm:$0xff]
          %v607 = vld [vmem:[#allocation7 + $0x1a8] sm:$0xff]
          %v608 = vld [vmem:[#allocation7 + $0x1b0] sm:$0xff]
          %v609 = vld [vmem:[#allocation7 + $0x1b8] sm:$0xff]
          %v610 = vld [vmem:[#allocation7 + $0x1c0] sm:$0xff]
          %v611 = vld [vmem:[#allocation7 + $0x1c8] sm:$0xff]
          %v612 = vld [vmem:[#allocation7 + $0x1d0] sm:$0xff]
          %v613 = vld [vmem:[#allocation7 + $0x1d8] sm:$0xff]
          %v614 = vld [vmem:[#allocation7 + $0x1e0] sm:$0xff]
          %v615 = vld [vmem:[#allocation7 + $0x1e8] sm:$0xff]
          %v616 = vld [vmem:[#allocation7 + $0x1f0] sm:$0xff]
          %v617 = vld [vmem:[#allocation7 + $0x1f8] sm:$0xff]
          %v618 = vld [vmem:[#allocation9] sm:$0xf]
          %v620 = vperm.slane %v618, 0
          %v621 = vperm.slane %v618, 1
          %v622 = vperm.slane %v618, 2
          %v623 = vperm.slane %v618, 3
          %v692 = vunpack.c.l.b16 %v554
          %v693 = vunpack.c.h.b16 %v554
          %v694 = vunpack.c.l.b16 %v555
          %v695 = vunpack.c.h.b16 %v555
          %v696 = vunpack.c.l.b16 %v556
          %v697 = vunpack.c.h.b16 %v556
          %v698 = vunpack.c.l.b16 %v557
          %v699 = vunpack.c.h.b16 %v557
          %v700 = vunpack.c.l.b16 %v558
          %v701 = vunpack.c.h.b16 %v558
          %v702 = vunpack.c.l.b16 %v559
          %v703 = vunpack.c.h.b16 %v559
          %v704 = vunpack.c.l.b16 %v560
          %v705 = vunpack.c.h.b16 %v560
          %v706 = vunpack.c.l.b16 %v561
          %v707 = vunpack.c.h.b16 %v561
          %v708 = vunpack.c.l.b16 %v562
          %v709 = vunpack.c.h.b16 %v562
          %v710 = vunpack.c.l.b16 %v563
          %v711 = vunpack.c.h.b16 %v563
          %v712 = vunpack.c.l.b16 %v564
          %v713 = vunpack.c.h.b16 %v564
          %v714 = vunpack.c.l.b16 %v565
          %v715 = vunpack.c.h.b16 %v565
          %v716 = vunpack.c.l.b16 %v566
          %v717 = vunpack.c.h.b16 %v566
          %v718 = vunpack.c.l.b16 %v567
          %v719 = vunpack.c.h.b16 %v567
          %v720 = vunpack.c.l.b16 %v568
          %v721 = vunpack.c.h.b16 %v568
          %v722 = vunpack.c.l.b16 %v569
          %v723 = vunpack.c.h.b16 %v569
          %v724 = vunpack.c.l.b16 %v570
          %v725 = vunpack.c.h.b16 %v570
          %v726 = vunpack.c.l.b16 %v571
          %v727 = vunpack.c.h.b16 %v571
          %v728 = vunpack.c.l.b16 %v572
          %v729 = vunpack.c.h.b16 %v572
          %v730 = vunpack.c.l.b16 %v573
          %v731 = vunpack.c.h.b16 %v573
          %v732 = vunpack.c.l.b16 %v574
          %v733 = vunpack.c.h.b16 %v574
          %v734 = vunpack.c.l.b16 %v575
          %v735 = vunpack.c.h.b16 %v575
          %v736 = vunpack.c.l.b16 %v576
          %v737 = vunpack.c.h.b16 %v576
          %v738 = vunpack.c.l.b16 %v577
          %v739 = vunpack.c.h.b16 %v577
          %v740 = vunpack.c.l.b16 %v578
          %v741 = vunpack.c.h.b16 %v578
          %v742 = vunpack.c.l.b16 %v579
          %v743 = vunpack.c.h.b16 %v579
          %v744 = vunpack.c.l.b16 %v580
          %v745 = vunpack.c.h.b16 %v580
          %v746 = vunpack.c.l.b16 %v581
          %v747 = vunpack.c.h.b16 %v581
          %v748 = vunpack.c.l.b16 %v582
          %v749 = vunpack.c.h.b16 %v582
          %v750 = vunpack.c.l.b16 %v583
          %v751 = vunpack.c.h.b16 %v583
          %v752 = vunpack.c.l.b16 %v584
          %v753 = vunpack.c.h.b16 %v584
          %v754 = vunpack.c.l.b16 %v585
          %v755 = vunpack.c.h.b16 %v585
          %v756 = vunpack.c.l.b16 %v586
          %v757 = vunpack.c.h.b16 %v586
          %v758 = vunpack.c.l.b16 %v587
          %v759 = vunpack.c.h.b16 %v587
          %v760 = vunpack.c.l.b16 %v588
          %v761 = vunpack.c.h.b16 %v588
          %v762 = vunpack.c.l.b16 %v589
          %v763 = vunpack.c.h.b16 %v589
          %v764 = vunpack.c.l.b16 %v590
          %v765 = vunpack.c.h.b16 %v590
          %v766 = vunpack.c.l.b16 %v591
          %v767 = vunpack.c.h.b16 %v591
          %v768 = vunpack.c.l.b16 %v592
          %v769 = vunpack.c.h.b16 %v592
          %v770 = vunpack.c.l.b16 %v593
          %v771 = vunpack.c.h.b16 %v593
          %v772 = vunpack.c.l.b16 %v594
          %v773 = vunpack.c.h.b16 %v594
          %v774 = vunpack.c.l.b16 %v595
          %v775 = vunpack.c.h.b16 %v595
          %v776 = vunpack.c.l.b16 %v596
          %v777 = vunpack.c.h.b16 %v596
          %v778 = vunpack.c.l.b16 %v597
          %v779 = vunpack.c.h.b16 %v597
          %v780 = vunpack.c.l.b16 %v598
          %v781 = vunpack.c.h.b16 %v598
          %v782 = vunpack.c.l.b16 %v599
          %v783 = vunpack.c.h.b16 %v599
          %v784 = vunpack.c.l.b16 %v600
          %v785 = vunpack.c.h.b16 %v600
          %v786 = vunpack.c.l.b16 %v601
          %v787 = vunpack.c.h.b16 %v601
          %v788 = vunpack.c.l.b16 %v602
          %v789 = vunpack.c.h.b16 %v602
          %v790 = vunpack.c.l.b16 %v603
          %v791 = vunpack.c.h.b16 %v603
          %v792 = vunpack.c.l.b16 %v604
          %v793 = vunpack.c.h.b16 %v604
          %v794 = vunpack.c.l.b16 %v605
          %v795 = vunpack.c.h.b16 %v605
          %v796 = vunpack.c.l.b16 %v606
          %v797 = vunpack.c.h.b16 %v606
          %v798 = vunpack.c.l.b16 %v607
          %v799 = vunpack.c.h.b16 %v607
          %v800 = vunpack.c.l.b16 %v608
          %v801 = vunpack.c.h.b16 %v608
          %v802 = vunpack.c.l.b16 %v609
          %v803 = vunpack.c.h.b16 %v609
          %v804 = vunpack.c.l.b16 %v610
          %v805 = vunpack.c.h.b16 %v610
          %v806 = vunpack.c.l.b16 %v611
          %v807 = vunpack.c.h.b16 %v611
          %v808 = vunpack.c.l.b16 %v612
          %v809 = vunpack.c.h.b16 %v612
          %v810 = vunpack.c.l.b16 %v613
          %v811 = vunpack.c.h.b16 %v613
          %v812 = vunpack.c.l.b16 %v614
          %v813 = vunpack.c.h.b16 %v614
          %v814 = vunpack.c.l.b16 %v615
          %v815 = vunpack.c.h.b16 %v615
          %v816 = vunpack.c.l.b16 %v616
          %v817 = vunpack.c.h.b16 %v616
          %v818 = vunpack.c.l.b16 %v617
          %v819 = vunpack.c.h.b16 %v617
          %v820 = vpack.c.b16 %v696, %v692
          %v821 = vpack.c.b16 %v697, %v693
          %v822 = vpack.c.b16 %v698, %v694
          %v823 = vpack.c.b16 %v699, %v695
          %v824 = vpack.c.b16 %v704, %v700
          %v825 = vpack.c.b16 %v705, %v701
          %v826 = vpack.c.b16 %v706, %v702
          %v827 = vpack.c.b16 %v707, %v703
          %v828 = vpack.c.b16 %v712, %v708
          %v829 = vpack.c.b16 %v713, %v709
          %v830 = vpack.c.b16 %v714, %v710
          %v831 = vpack.c.b16 %v715, %v711
          %v832 = vpack.c.b16 %v720, %v716
          %v833 = vpack.c.b16 %v721, %v717
          %v834 = vpack.c.b16 %v722, %v718
          %v835 = vpack.c.b16 %v723, %v719
          %v836 = vpack.c.b16 %v728, %v724
          %v837 = vpack.c.b16 %v729, %v725
          %v838 = vpack.c.b16 %v730, %v726
          %v839 = vpack.c.b16 %v731, %v727
          %v840 = vpack.c.b16 %v736, %v732
          %v841 = vpack.c.b16 %v737, %v733
          %v842 = vpack.c.b16 %v738, %v734
          %v843 = vpack.c.b16 %v739, %v735
          %v844 = vpack.c.b16 %v744, %v740
          %v845 = vpack.c.b16 %v745, %v741
          %v846 = vpack.c.b16 %v746, %v742
          %v847 = vpack.c.b16 %v747, %v743
          %v848 = vpack.c.b16 %v752, %v748
          %v849 = vpack.c.b16 %v753, %v749
          %v850 = vpack.c.b16 %v754, %v750
          %v851 = vpack.c.b16 %v755, %v751
          %v852 = vpack.c.b16 %v760, %v756
          %v853 = vpack.c.b16 %v761, %v757
          %v854 = vpack.c.b16 %v762, %v758
          %v855 = vpack.c.b16 %v763, %v759
          %v856 = vpack.c.b16 %v768, %v764
          %v857 = vpack.c.b16 %v769, %v765
          %v858 = vpack.c.b16 %v770, %v766
          %v859 = vpack.c.b16 %v771, %v767
          %v860 = vpack.c.b16 %v776, %v772
          %v861 = vpack.c.b16 %v777, %v773
          %v862 = vpack.c.b16 %v778, %v774
          %v863 = vpack.c.b16 %v779, %v775
          %v864 = vpack.c.b16 %v784, %v780
          %v865 = vpack.c.b16 %v785, %v781
          %v866 = vpack.c.b16 %v786, %v782
          %v867 = vpack.c.b16 %v787, %v783
          %v868 = vpack.c.b16 %v792, %v788
          %v869 = vpack.c.b16 %v793, %v789
          %v870 = vpack.c.b16 %v794, %v790
          %v871 = vpack.c.b16 %v795, %v791
          %v872 = vpack.c.b16 %v800, %v796
          %v873 = vpack.c.b16 %v801, %v797
          %v874 = vpack.c.b16 %v802, %v798
          %v875 = vpack.c.b16 %v803, %v799
          %v876 = vpack.c.b16 %v808, %v804
          %v877 = vpack.c.b16 %v809, %v805
          %v878 = vpack.c.b16 %v810, %v806
          %v879 = vpack.c.b16 %v811, %v807
          %v880 = vpack.c.b16 %v816, %v812
          %v881 = vpack.c.b16 %v817, %v813
          %v882 = vpack.c.b16 %v818, %v814
          %v883 = vpack.c.b16 %v819, %v815
          %948 = vmatpush.bf16.msra.mxu0 %v848
          %949 = vmatpush.bf16.msra.mxu0 %v844
          %950 = vmatpush.bf16.msra.mxu0 %v840
          %951 = vmatpush.bf16.msra.mxu0 %v836
          %952 = vmatpush.bf16.msra.mxu0 %v832
          %953 = vmatpush.bf16.msra.mxu0 %v828
          %954 = vmatpush.bf16.msra.mxu0 %v824
          %955 = vmatpush.bf16.msra.mxu0 %v820
          %956 = vmatmul.bf16.gmra.mxu0 %v522
          %v957 = vpop.f32.mrf.mxu0
          %v958 = vadd.f32 %v620, %v957
          %v959 = vpop.f32.mrf.mxu0
          %v960 = vadd.f32 %v620, %v959
          %961 = vmatmul.bf16.gmra.mxu0 %v524
          %v962 = vpop.f32.mrf.mxu0
          %v963 = vadd.f32 %v620, %v962
          %v964 = vpop.f32.mrf.mxu0
          %v965 = vadd.f32 %v620, %v964
          %966 = vmatmul.bf16.gmra.mxu0 %v526
          %v967 = vpop.f32.mrf.mxu0
          %v968 = vadd.f32 %v620, %v967
          %v969 = vpop.f32.mrf.mxu0
          %v970 = vadd.f32 %v620, %v969
          %971 = vmatmul.bf16.gmra.mxu0 %v528
          %v972 = vpop.f32.mrf.mxu0
          %v973 = vadd.f32 %v620, %v972
          %v974 = vpop.f32.mrf.mxu0
          %v975 = vadd.f32 %v620, %v974
          %976 = vmatmul.bf16.gmra.mxu0 %v530
          %v977 = vpop.f32.mrf.mxu0
          %v978 = vadd.f32 %v620, %v977
          %v979 = vpop.f32.mrf.mxu0
          %v980 = vadd.f32 %v620, %v979
          %981 = vmatmul.bf16.gmra.mxu0 %v532
          %v982 = vpop.f32.mrf.mxu0
          %v983 = vadd.f32 %v620, %v982
          %v984 = vpop.f32.mrf.mxu0
          %v985 = vadd.f32 %v620, %v984
          %986 = vmatmul.bf16.gmra.mxu0 %v534
          %v987 = vpop.f32.mrf.mxu0
          %v988 = vadd.f32 %v620, %v987
          %v989 = vpop.f32.mrf.mxu0
          %v990 = vadd.f32 %v620, %v989
          %991 = vmatmul.bf16.gmra.mxu0 %v536
          %v992 = vpop.f32.mrf.mxu0
          %v993 = vadd.f32 %v620, %v992
          %v994 = vpop.f32.mrf.mxu0
          %v995 = vadd.f32 %v620, %v994
          %996 = vmatmul.bf16.gmra.mxu0 %v538
          %v997 = vpop.f32.mrf.mxu0
          %v998 = vadd.f32 %v620, %v997
          %v999 = vpop.f32.mrf.mxu0
          %v1000 = vadd.f32 %v620, %v999
          %1001 = vmatmul.bf16.gmra.mxu0 %v540
          %v1002 = vpop.f32.mrf.mxu0
          %v1003 = vadd.f32 %v620, %v1002
          %v1004 = vpop.f32.mrf.mxu0
          %v1005 = vadd.f32 %v620, %v1004
          %1006 = vmatmul.bf16.gmra.mxu0 %v542
          %v1007 = vpop.f32.mrf.mxu0
          %v1008 = vadd.f32 %v620, %v1007
          %v1009 = vpop.f32.mrf.mxu0
          %v1010 = vadd.f32 %v620, %v1009
          %1011 = vmatmul.bf16.gmra.mxu0 %v544
          %v1012 = vpop.f32.mrf.mxu0
          %v1013 = vadd.f32 %v620, %v1012
          %v1014 = vpop.f32.mrf.mxu0
          %v1015 = vadd.f32 %v620, %v1014
          %1016 = vmatmul.bf16.gmra.mxu0 %v546
          %v1017 = vpop.f32.mrf.mxu0
          %v1018 = vadd.f32 %v620, %v1017
          %v1019 = vpop.f32.mrf.mxu0
          %v1020 = vadd.f32 %v620, %v1019
          %1021 = vmatmul.bf16.gmra.mxu0 %v548
          %v1022 = vpop.f32.mrf.mxu0
          %v1023 = vadd.f32 %v620, %v1022
          %v1024 = vpop.f32.mrf.mxu0
          %v1025 = vadd.f32 %v620, %v1024
          %1026 = vmatmul.bf16.gmra.mxu0 %v550
          %v1027 = vpop.f32.mrf.mxu0
          %v1028 = vadd.f32 %v620, %v1027
          %v1029 = vpop.f32.mrf.mxu0
          %v1030 = vadd.f32 %v620, %v1029
          %1031 = vmatmul.bf16.gmra.mxu0 %v552
          %v1032 = vpop.f32.mrf.mxu0
          %v1033 = vadd.f32 %v620, %v1032
          %v1034 = vpop.f32.mrf.mxu0
          %v1035 = vadd.f32 %v620, %v1034
          %1036 = vdwg.mxu0
          %1037 = vmatpush.bf16.msra.mxu0 %v880
          %1038 = vmatpush.bf16.msra.mxu0 %v876
          %1039 = vmatpush.bf16.msra.mxu0 %v872
          %1040 = vmatpush.bf16.msra.mxu0 %v868
          %1041 = vmatpush.bf16.msra.mxu0 %v864
          %1042 = vmatpush.bf16.msra.mxu0 %v860
          %1043 = vmatpush.bf16.msra.mxu0 %v856
          %1044 = vmatpush.bf16.msra.mxu0 %v852
          %1045 = vmatmul.bf16.gmra.mxu0 %v523
          %v1046 = vpop.f32.mrf.mxu0
          %v1047 = vadd.f32 %v958, %v1046
          %v1048 = vpop.f32.mrf.mxu0
          %v1049 = vadd.f32 %v960, %v1048
          %1050 = vmatmul.bf16.gmra.mxu0 %v525
          %v1051 = vpop.f32.mrf.mxu0
          %v1052 = vadd.f32 %v963, %v1051
          %v1053 = vpop.f32.mrf.mxu0
          %v1054 = vadd.f32 %v965, %v1053
          %1055 = vmatmul.bf16.gmra.mxu0 %v527
          %v1056 = vpop.f32.mrf.mxu0
          %v1057 = vadd.f32 %v968, %v1056
          %v1058 = vpop.f32.mrf.mxu0
          %v1059 = vadd.f32 %v970, %v1058
          %1060 = vmatmul.bf16.gmra.mxu0 %v529
          %v1061 = vpop.f32.mrf.mxu0
          %v1062 = vadd.f32 %v973, %v1061
          %v1063 = vpop.f32.mrf.mxu0
          %v1064 = vadd.f32 %v975, %v1063
          %1065 = vmatmul.bf16.gmra.mxu0 %v531
          %v1066 = vpop.f32.mrf.mxu0
          %v1067 = vadd.f32 %v978, %v1066
          %v1068 = vpop.f32.mrf.mxu0
          %v1069 = vadd.f32 %v980, %v1068
          %1070 = vmatmul.bf16.gmra.mxu0 %v533
          %v1071 = vpop.f32.mrf.mxu0
          %v1072 = vadd.f32 %v983, %v1071
          %v1073 = vpop.f32.mrf.mxu0
          %v1074 = vadd.f32 %v985, %v1073
          %1075 = vmatmul.bf16.gmra.mxu0 %v535
          %v1076 = vpop.f32.mrf.mxu0
          %v1077 = vadd.f32 %v988, %v1076
          %v1078 = vpop.f32.mrf.mxu0
          %v1079 = vadd.f32 %v990, %v1078
          %1080 = vmatmul.bf16.gmra.mxu0 %v537
          %v1081 = vpop.f32.mrf.mxu0
          %v1082 = vadd.f32 %v993, %v1081
          %v1083 = vpop.f32.mrf.mxu0
          %v1084 = vadd.f32 %v995, %v1083
          %1085 = vmatmul.bf16.gmra.mxu0 %v539
          %v1086 = vpop.f32.mrf.mxu0
          %v1087 = vadd.f32 %v998, %v1086
          %v1088 = vpop.f32.mrf.mxu0
          %v1089 = vadd.f32 %v1000, %v1088
          %1090 = vmatmul.bf16.gmra.mxu0 %v541
          %v1091 = vpop.f32.mrf.mxu0
          %v1092 = vadd.f32 %v1003, %v1091
          %v1093 = vpop.f32.mrf.mxu0
          %v1094 = vadd.f32 %v1005, %v1093
          %1095 = vmatmul.bf16.gmra.mxu0 %v543
          %v1096 = vpop.f32.mrf.mxu0
          %v1097 = vadd.f32 %v1008, %v1096
          %v1098 = vpop.f32.mrf.mxu0
          %v1099 = vadd.f32 %v1010, %v1098
          %1100 = vmatmul.bf16.gmra.mxu0 %v545
          %v1101 = vpop.f32.mrf.mxu0
          %v1102 = vadd.f32 %v1013, %v1101
          %v1103 = vpop.f32.mrf.mxu0
          %v1104 = vadd.f32 %v1015, %v1103
          %1105 = vmatmul.bf16.gmra.mxu0 %v547
          %v1106 = vpop.f32.mrf.mxu0
          %v1107 = vadd.f32 %v1018, %v1106
          %v1108 = vpop.f32.mrf.mxu0
          %v1109 = vadd.f32 %v1020, %v1108
          %1110 = vmatmul.bf16.gmra.mxu0 %v549
          %v1111 = vpop.f32.mrf.mxu0
          %v1112 = vadd.f32 %v1023, %v1111
          %v1113 = vpop.f32.mrf.mxu0
          %v1114 = vadd.f32 %v1025, %v1113
          %1115 = vmatmul.bf16.gmra.mxu0 %v551
          %v1116 = vpop.f32.mrf.mxu0
          %v1117 = vadd.f32 %v1028, %v1116
          %v1118 = vpop.f32.mrf.mxu0
          %v1119 = vadd.f32 %v1030, %v1118
          %1120 = vmatmul.bf16.gmra.mxu0 %v553
          %v1121 = vpop.f32.mrf.mxu0
          %v1122 = vadd.f32 %v1033, %v1121
          %v1123 = vpop.f32.mrf.mxu0
          %v1124 = vadd.f32 %v1035, %v1123
          %1125 = vdwg.mxu0
          %1126 = vmatpush.bf16.msra.mxu0 %v849
          %1127 = vmatpush.bf16.msra.mxu0 %v845
          %1128 = vmatpush.bf16.msra.mxu0 %v841
          %1129 = vmatpush.bf16.msra.mxu0 %v837
          %1130 = vmatpush.bf16.msra.mxu0 %v833
          %1131 = vmatpush.bf16.msra.mxu0 %v829
          %1132 = vmatpush.bf16.msra.mxu0 %v825
          %1133 = vmatpush.bf16.msra.mxu0 %v821
          %1134 = vmatmul.bf16.gmra.mxu0 %v522
          %v1135 = vpop.f32.mrf.mxu0
          %v1136 = vadd.f32 %v621, %v1135
          %v1137 = vpop.f32.mrf.mxu0
          %v1138 = vadd.f32 %v621, %v1137
          %1139 = vmatmul.bf16.gmra.mxu0 %v524
          %v1140 = vpop.f32.mrf.mxu0
          %v1141 = vadd.f32 %v621, %v1140
          %v1142 = vpop.f32.mrf.mxu0
          %v1143 = vadd.f32 %v621, %v1142
          %1144 = vmatmul.bf16.gmra.mxu0 %v526
          %v1145 = vpop.f32.mrf.mxu0
          %v1146 = vadd.f32 %v621, %v1145
          %v1147 = vpop.f32.mrf.mxu0
          %v1148 = vadd.f32 %v621, %v1147
          %1149 = vmatmul.bf16.gmra.mxu0 %v528
          %v1150 = vpop.f32.mrf.mxu0
          %v1151 = vadd.f32 %v621, %v1150
          %v1152 = vpop.f32.mrf.mxu0
          %v1153 = vadd.f32 %v621, %v1152
          %1154 = vmatmul.bf16.gmra.mxu0 %v530
          %v1155 = vpop.f32.mrf.mxu0
          %v1156 = vadd.f32 %v621, %v1155
          %v1157 = vpop.f32.mrf.mxu0
          %v1158 = vadd.f32 %v621, %v1157
          %1159 = vmatmul.bf16.gmra.mxu0 %v532
          %v1160 = vpop.f32.mrf.mxu0
          %v1161 = vadd.f32 %v621, %v1160
          %v1162 = vpop.f32.mrf.mxu0
          %v1163 = vadd.f32 %v621, %v1162
          %1164 = vmatmul.bf16.gmra.mxu0 %v534
          %v1165 = vpop.f32.mrf.mxu0
          %v1166 = vadd.f32 %v621, %v1165
          %v1167 = vpop.f32.mrf.mxu0
          %v1168 = vadd.f32 %v621, %v1167
          %1169 = vmatmul.bf16.gmra.mxu0 %v536
          %v1170 = vpop.f32.mrf.mxu0
          %v1171 = vadd.f32 %v621, %v1170
          %v1172 = vpop.f32.mrf.mxu0
          %v1173 = vadd.f32 %v621, %v1172
          %1174 = vmatmul.bf16.gmra.mxu0 %v538
          %v1175 = vpop.f32.mrf.mxu0
          %v1176 = vadd.f32 %v621, %v1175
          %v1177 = vpop.f32.mrf.mxu0
          %v1178 = vadd.f32 %v621, %v1177
          %1179 = vmatmul.bf16.gmra.mxu0 %v540
          %v1180 = vpop.f32.mrf.mxu0
          %v1181 = vadd.f32 %v621, %v1180
          %v1182 = vpop.f32.mrf.mxu0
          %v1183 = vadd.f32 %v621, %v1182
          %1184 = vmatmul.bf16.gmra.mxu0 %v542
          %v1185 = vpop.f32.mrf.mxu0
          %v1186 = vadd.f32 %v621, %v1185
          %v1187 = vpop.f32.mrf.mxu0
          %v1188 = vadd.f32 %v621, %v1187
          %1189 = vmatmul.bf16.gmra.mxu0 %v544
          %v1190 = vpop.f32.mrf.mxu0
          %v1191 = vadd.f32 %v621, %v1190
          %v1192 = vpop.f32.mrf.mxu0
          %v1193 = vadd.f32 %v621, %v1192
          %1194 = vmatmul.bf16.gmra.mxu0 %v546
          %v1195 = vpop.f32.mrf.mxu0
          %v1196 = vadd.f32 %v621, %v1195
          %v1197 = vpop.f32.mrf.mxu0
          %v1198 = vadd.f32 %v621, %v1197
          %1199 = vmatmul.bf16.gmra.mxu0 %v548
          %v1200 = vpop.f32.mrf.mxu0
          %v1201 = vadd.f32 %v621, %v1200
          %v1202 = vpop.f32.mrf.mxu0
          %v1203 = vadd.f32 %v621, %v1202
          %1204 = vmatmul.bf16.gmra.mxu0 %v550
          %v1205 = vpop.f32.mrf.mxu0
          %v1206 = vadd.f32 %v621, %v1205
          %v1207 = vpop.f32.mrf.mxu0
          %v1208 = vadd.f32 %v621, %v1207
          %1209 = vmatmul.bf16.gmra.mxu0 %v552
          %v1210 = vpop.f32.mrf.mxu0
          %v1211 = vadd.f32 %v621, %v1210
          %v1212 = vpop.f32.mrf.mxu0
          %v1213 = vadd.f32 %v621, %v1212
          %1214 = vdwg.mxu0
          %1215 = vmatpush.bf16.msra.mxu0 %v881
          %1216 = vmatpush.bf16.msra.mxu0 %v877
          %1217 = vmatpush.bf16.msra.mxu0 %v873
          %1218 = vmatpush.bf16.msra.mxu0 %v869
          %1219 = vmatpush.bf16.msra.mxu0 %v865
          %1220 = vmatpush.bf16.msra.mxu0 %v861
          %1221 = vmatpush.bf16.msra.mxu0 %v857
          %1222 = vmatpush.bf16.msra.mxu0 %v853
          %1223 = vmatmul.bf16.gmra.mxu0 %v523
          %v1224 = vpop.f32.mrf.mxu0
          %v1225 = vadd.f32 %v1136, %v1224
          %v1226 = vpop.f32.mrf.mxu0
          %v1227 = vadd.f32 %v1138, %v1226
          %1228 = vmatmul.bf16.gmra.mxu0 %v525
          %v1229 = vpop.f32.mrf.mxu0
          %v1230 = vadd.f32 %v1141, %v1229
          %v1231 = vpop.f32.mrf.mxu0
          %v1232 = vadd.f32 %v1143, %v1231
          %1233 = vmatmul.bf16.gmra.mxu0 %v527
          %v1234 = vpop.f32.mrf.mxu0
          %v1235 = vadd.f32 %v1146, %v1234
          %v1236 = vpop.f32.mrf.mxu0
          %v1237 = vadd.f32 %v1148, %v1236
          %1238 = vmatmul.bf16.gmra.mxu0 %v529
          %v1239 = vpop.f32.mrf.mxu0
          %v1240 = vadd.f32 %v1151, %v1239
          %v1241 = vpop.f32.mrf.mxu0
          %v1242 = vadd.f32 %v1153, %v1241
          %1243 = vmatmul.bf16.gmra.mxu0 %v531
          %v1244 = vpop.f32.mrf.mxu0
          %v1245 = vadd.f32 %v1156, %v1244
          %v1246 = vpop.f32.mrf.mxu0
          %v1247 = vadd.f32 %v1158, %v1246
          %1248 = vmatmul.bf16.gmra.mxu0 %v533
          %v1249 = vpop.f32.mrf.mxu0
          %v1250 = vadd.f32 %v1161, %v1249
          %v1251 = vpop.f32.mrf.mxu0
          %v1252 = vadd.f32 %v1163, %v1251
          %1253 = vmatmul.bf16.gmra.mxu0 %v535
          %v1254 = vpop.f32.mrf.mxu0
          %v1255 = vadd.f32 %v1166, %v1254
          %v1256 = vpop.f32.mrf.mxu0
          %v1257 = vadd.f32 %v1168, %v1256
          %1258 = vmatmul.bf16.gmra.mxu0 %v537
          %v1259 = vpop.f32.mrf.mxu0
          %v1260 = vadd.f32 %v1171, %v1259
          %v1261 = vpop.f32.mrf.mxu0
          %v1262 = vadd.f32 %v1173, %v1261
          %1263 = vmatmul.bf16.gmra.mxu0 %v539
          %v1264 = vpop.f32.mrf.mxu0
          %v1265 = vadd.f32 %v1176, %v1264
          %v1266 = vpop.f32.mrf.mxu0
          %v1267 = vadd.f32 %v1178, %v1266
          %1268 = vmatmul.bf16.gmra.mxu0 %v541
          %v1269 = vpop.f32.mrf.mxu0
          %v1270 = vadd.f32 %v1181, %v1269
          %v1271 = vpop.f32.mrf.mxu0
          %v1272 = vadd.f32 %v1183, %v1271
          %1273 = vmatmul.bf16.gmra.mxu0 %v543
          %v1274 = vpop.f32.mrf.mxu0
          %v1275 = vadd.f32 %v1186, %v1274
          %v1276 = vpop.f32.mrf.mxu0
          %v1277 = vadd.f32 %v1188, %v1276
          %1278 = vmatmul.bf16.gmra.mxu0 %v545
          %v1279 = vpop.f32.mrf.mxu0
          %v1280 = vadd.f32 %v1191, %v1279
          %v1281 = vpop.f32.mrf.mxu0
          %v1282 = vadd.f32 %v1193, %v1281
          %1283 = vmatmul.bf16.gmra.mxu0 %v547
          %v1284 = vpop.f32.mrf.mxu0
          %v1285 = vadd.f32 %v1196, %v1284
          %v1286 = vpop.f32.mrf.mxu0
          %v1287 = vadd.f32 %v1198, %v1286
          %1288 = vmatmul.bf16.gmra.mxu0 %v549
          %v1289 = vpop.f32.mrf.mxu0
          %v1290 = vadd.f32 %v1201, %v1289
          %v1291 = vpop.f32.mrf.mxu0
          %v1292 = vadd.f32 %v1203, %v1291
          %1293 = vmatmul.bf16.gmra.mxu0 %v551
          %v1294 = vpop.f32.mrf.mxu0
          %v1295 = vadd.f32 %v1206, %v1294
          %v1296 = vpop.f32.mrf.mxu0
          %v1297 = vadd.f32 %v1208, %v1296
          %1298 = vmatmul.bf16.gmra.mxu0 %v553
          %v1299 = vpop.f32.mrf.mxu0
          %v1300 = vadd.f32 %v1211, %v1299
          %v1301 = vpop.f32.mrf.mxu0
          %v1302 = vadd.f32 %v1213, %v1301
          %1303 = vdwg.mxu0
          %1304 = vmatpush.bf16.msra.mxu0 %v850
          %1305 = vmatpush.bf16.msra.mxu0 %v846
          %1306 = vmatpush.bf16.msra.mxu0 %v842
          %1307 = vmatpush.bf16.msra.mxu0 %v838
          %1308 = vmatpush.bf16.msra.mxu0 %v834
          %1309 = vmatpush.bf16.msra.mxu0 %v830
          %1310 = vmatpush.bf16.msra.mxu0 %v826
          %1311 = vmatpush.bf16.msra.mxu0 %v822
          %1312 = vmatmul.bf16.gmra.mxu0 %v522
          %v1313 = vpop.f32.mrf.mxu0
          %v1314 = vadd.f32 %v622, %v1313
          %v1315 = vpop.f32.mrf.mxu0
          %v1316 = vadd.f32 %v622, %v1315
          %1317 = vmatmul.bf16.gmra.mxu0 %v524
          %v1318 = vpop.f32.mrf.mxu0
          %v1319 = vadd.f32 %v622, %v1318
          %v1320 = vpop.f32.mrf.mxu0
          %v1321 = vadd.f32 %v622, %v1320
          %1322 = vmatmul.bf16.gmra.mxu0 %v526
          %v1323 = vpop.f32.mrf.mxu0
          %v1324 = vadd.f32 %v622, %v1323
          %v1325 = vpop.f32.mrf.mxu0
          %v1326 = vadd.f32 %v622, %v1325
          %1327 = vmatmul.bf16.gmra.mxu0 %v528
          %v1328 = vpop.f32.mrf.mxu0
          %v1329 = vadd.f32 %v622, %v1328
          %v1330 = vpop.f32.mrf.mxu0
          %v1331 = vadd.f32 %v622, %v1330
          %1332 = vmatmul.bf16.gmra.mxu0 %v530
          %v1333 = vpop.f32.mrf.mxu0
          %v1334 = vadd.f32 %v622, %v1333
          %v1335 = vpop.f32.mrf.mxu0
          %v1336 = vadd.f32 %v622, %v1335
          %1337 = vmatmul.bf16.gmra.mxu0 %v532
          %v1338 = vpop.f32.mrf.mxu0
          %v1339 = vadd.f32 %v622, %v1338
          %v1340 = vpop.f32.mrf.mxu0
          %v1341 = vadd.f32 %v622, %v1340
          %1342 = vmatmul.bf16.gmra.mxu0 %v534
          %v1343 = vpop.f32.mrf.mxu0
          %v1344 = vadd.f32 %v622, %v1343
          %v1345 = vpop.f32.mrf.mxu0
          %v1346 = vadd.f32 %v622, %v1345
          %1347 = vmatmul.bf16.gmra.mxu0 %v536
          %v1348 = vpop.f32.mrf.mxu0
          %v1349 = vadd.f32 %v622, %v1348
          %v1350 = vpop.f32.mrf.mxu0
          %v1351 = vadd.f32 %v622, %v1350
          %1352 = vmatmul.bf16.gmra.mxu0 %v538
          %v1353 = vpop.f32.mrf.mxu0
          %v1354 = vadd.f32 %v622, %v1353
          %v1355 = vpop.f32.mrf.mxu0
          %v1356 = vadd.f32 %v622, %v1355
          %1357 = vmatmul.bf16.gmra.mxu0 %v540
          %v1358 = vpop.f32.mrf.mxu0
          %v1359 = vadd.f32 %v622, %v1358
          %v1360 = vpop.f32.mrf.mxu0
          %v1361 = vadd.f32 %v622, %v1360
          %1362 = vmatmul.bf16.gmra.mxu0 %v542
          %v1363 = vpop.f32.mrf.mxu0
          %v1364 = vadd.f32 %v622, %v1363
          %v1365 = vpop.f32.mrf.mxu0
          %v1366 = vadd.f32 %v622, %v1365
          %1367 = vmatmul.bf16.gmra.mxu0 %v544
          %v1368 = vpop.f32.mrf.mxu0
          %v1369 = vadd.f32 %v622, %v1368
          %v1370 = vpop.f32.mrf.mxu0
          %v1371 = vadd.f32 %v622, %v1370
          %1372 = vmatmul.bf16.gmra.mxu0 %v546
          %v1373 = vpop.f32.mrf.mxu0
          %v1374 = vadd.f32 %v622, %v1373
          %v1375 = vpop.f32.mrf.mxu0
          %v1376 = vadd.f32 %v622, %v1375
          %1377 = vmatmul.bf16.gmra.mxu0 %v548
          %v1378 = vpop.f32.mrf.mxu0
          %v1379 = vadd.f32 %v622, %v1378
          %v1380 = vpop.f32.mrf.mxu0
          %v1381 = vadd.f32 %v622, %v1380
          %1382 = vmatmul.bf16.gmra.mxu0 %v550
          %v1383 = vpop.f32.mrf.mxu0
          %v1384 = vadd.f32 %v622, %v1383
          %v1385 = vpop.f32.mrf.mxu0
          %v1386 = vadd.f32 %v622, %v1385
          %1387 = vmatmul.bf16.gmra.mxu0 %v552
          %v1388 = vpop.f32.mrf.mxu0
          %v1389 = vadd.f32 %v622, %v1388
          %v1390 = vpop.f32.mrf.mxu0
          %v1391 = vadd.f32 %v622, %v1390
          %1392 = vdwg.mxu0
          %1393 = vmatpush.bf16.msra.mxu0 %v882
          %1394 = vmatpush.bf16.msra.mxu0 %v878
          %1395 = vmatpush.bf16.msra.mxu0 %v874
          %1396 = vmatpush.bf16.msra.mxu0 %v870
          %1397 = vmatpush.bf16.msra.mxu0 %v866
          %1398 = vmatpush.bf16.msra.mxu0 %v862
          %1399 = vmatpush.bf16.msra.mxu0 %v858
          %1400 = vmatpush.bf16.msra.mxu0 %v854
          %1401 = vmatmul.bf16.gmra.mxu0 %v523
          %v1402 = vpop.f32.mrf.mxu0
          %v1403 = vadd.f32 %v1314, %v1402
          %v1404 = vpop.f32.mrf.mxu0
          %v1405 = vadd.f32 %v1316, %v1404
          %1406 = vmatmul.bf16.gmra.mxu0 %v525
          %v1407 = vpop.f32.mrf.mxu0
          %v1408 = vadd.f32 %v1319, %v1407
          %v1409 = vpop.f32.mrf.mxu0
          %v1410 = vadd.f32 %v1321, %v1409
          %1411 = vmatmul.bf16.gmra.mxu0 %v527
          %v1412 = vpop.f32.mrf.mxu0
          %v1413 = vadd.f32 %v1324, %v1412
          %v1414 = vpop.f32.mrf.mxu0
          %v1415 = vadd.f32 %v1326, %v1414
          %1416 = vmatmul.bf16.gmra.mxu0 %v529
          %v1417 = vpop.f32.mrf.mxu0
          %v1418 = vadd.f32 %v1329, %v1417
          %v1419 = vpop.f32.mrf.mxu0
          %v1420 = vadd.f32 %v1331, %v1419
          %1421 = vmatmul.bf16.gmra.mxu0 %v531
          %v1422 = vpop.f32.mrf.mxu0
          %v1423 = vadd.f32 %v1334, %v1422
          %v1424 = vpop.f32.mrf.mxu0
          %v1425 = vadd.f32 %v1336, %v1424
          %1426 = vmatmul.bf16.gmra.mxu0 %v533
          %v1427 = vpop.f32.mrf.mxu0
          %v1428 = vadd.f32 %v1339, %v1427
          %v1429 = vpop.f32.mrf.mxu0
          %v1430 = vadd.f32 %v1341, %v1429
          %1431 = vmatmul.bf16.gmra.mxu0 %v535
          %v1432 = vpop.f32.mrf.mxu0
          %v1433 = vadd.f32 %v1344, %v1432
          %v1434 = vpop.f32.mrf.mxu0
          %v1435 = vadd.f32 %v1346, %v1434
          %1436 = vmatmul.bf16.gmra.mxu0 %v537
          %v1437 = vpop.f32.mrf.mxu0
          %v1438 = vadd.f32 %v1349, %v1437
          %v1439 = vpop.f32.mrf.mxu0
          %v1440 = vadd.f32 %v1351, %v1439
          %1441 = vmatmul.bf16.gmra.mxu0 %v539
          %v1442 = vpop.f32.mrf.mxu0
          %v1443 = vadd.f32 %v1354, %v1442
          %v1444 = vpop.f32.mrf.mxu0
          %v1445 = vadd.f32 %v1356, %v1444
          %1446 = vmatmul.bf16.gmra.mxu0 %v541
          %v1447 = vpop.f32.mrf.mxu0
          %v1448 = vadd.f32 %v1359, %v1447
          %v1449 = vpop.f32.mrf.mxu0
          %v1450 = vadd.f32 %v1361, %v1449
          %1451 = vmatmul.bf16.gmra.mxu0 %v543
          %v1452 = vpop.f32.mrf.mxu0
          %v1453 = vadd.f32 %v1364, %v1452
          %v1454 = vpop.f32.mrf.mxu0
          %v1455 = vadd.f32 %v1366, %v1454
          %1456 = vmatmul.bf16.gmra.mxu0 %v545
          %v1457 = vpop.f32.mrf.mxu0
          %v1458 = vadd.f32 %v1369, %v1457
          %v1459 = vpop.f32.mrf.mxu0
          %v1460 = vadd.f32 %v1371, %v1459
          %1461 = vmatmul.bf16.gmra.mxu0 %v547
          %v1462 = vpop.f32.mrf.mxu0
          %v1463 = vadd.f32 %v1374, %v1462
          %v1464 = vpop.f32.mrf.mxu0
          %v1465 = vadd.f32 %v1376, %v1464
          %1466 = vmatmul.bf16.gmra.mxu0 %v549
          %v1467 = vpop.f32.mrf.mxu0
          %v1468 = vadd.f32 %v1379, %v1467
          %v1469 = vpop.f32.mrf.mxu0
          %v1470 = vadd.f32 %v1381, %v1469
          %1471 = vmatmul.bf16.gmra.mxu0 %v551
          %v1472 = vpop.f32.mrf.mxu0
          %v1473 = vadd.f32 %v1384, %v1472
          %v1474 = vpop.f32.mrf.mxu0
          %v1475 = vadd.f32 %v1386, %v1474
          %1476 = vmatmul.bf16.gmra.mxu0 %v553
          %v1477 = vpop.f32.mrf.mxu0
          %v1478 = vadd.f32 %v1389, %v1477
          %v1479 = vpop.f32.mrf.mxu0
          %v1480 = vadd.f32 %v1391, %v1479
          %1481 = vdwg.mxu0
          %1482 = vmatpush.bf16.msra.mxu0 %v851
          %1483 = vmatpush.bf16.msra.mxu0 %v847
          %1484 = vmatpush.bf16.msra.mxu0 %v843
          %1485 = vmatpush.bf16.msra.mxu0 %v839
          %1486 = vmatpush.bf16.msra.mxu0 %v835
          %1487 = vmatpush.bf16.msra.mxu0 %v831
          %1488 = vmatpush.bf16.msra.mxu0 %v827
          %1489 = vmatpush.bf16.msra.mxu0 %v823
          %1490 = vmatmul.bf16.gmra.mxu0 %v522
          %v1491 = vpop.f32.mrf.mxu0
          %v1492 = vadd.f32 %v623, %v1491
          %v1493 = vpop.f32.mrf.mxu0
          %v1494 = vadd.f32 %v623, %v1493
          %1495 = vmatmul.bf16.gmra.mxu0 %v524
          %v1496 = vpop.f32.mrf.mxu0
          %v1497 = vadd.f32 %v623, %v1496
          %v1498 = vpop.f32.mrf.mxu0
          %v1499 = vadd.f32 %v623, %v1498
          %1500 = vmatmul.bf16.gmra.mxu0 %v526
          %v1501 = vpop.f32.mrf.mxu0
          %v1502 = vadd.f32 %v623, %v1501
          %v1503 = vpop.f32.mrf.mxu0
          %v1504 = vadd.f32 %v623, %v1503
          %1505 = vmatmul.bf16.gmra.mxu0 %v528
          %v1506 = vpop.f32.mrf.mxu0
          %v1507 = vadd.f32 %v623, %v1506
          %v1508 = vpop.f32.mrf.mxu0
          %v1509 = vadd.f32 %v623, %v1508
          %1510 = vmatmul.bf16.gmra.mxu0 %v530
          %v1511 = vpop.f32.mrf.mxu0
          %v1512 = vadd.f32 %v623, %v1511
          %v1513 = vpop.f32.mrf.mxu0
          %v1514 = vadd.f32 %v623, %v1513
          %1515 = vmatmul.bf16.gmra.mxu0 %v532
          %v1516 = vpop.f32.mrf.mxu0
          %v1517 = vadd.f32 %v623, %v1516
          %v1518 = vpop.f32.mrf.mxu0
          %v1519 = vadd.f32 %v623, %v1518
          %1520 = vmatmul.bf16.gmra.mxu0 %v534
          %v1521 = vpop.f32.mrf.mxu0
          %v1522 = vadd.f32 %v623, %v1521
          %v1523 = vpop.f32.mrf.mxu0
          %v1524 = vadd.f32 %v623, %v1523
          %1525 = vmatmul.bf16.gmra.mxu0 %v536
          %v1526 = vpop.f32.mrf.mxu0
          %v1527 = vadd.f32 %v623, %v1526
          %v1528 = vpop.f32.mrf.mxu0
          %v1529 = vadd.f32 %v623, %v1528
          %1530 = vmatmul.bf16.gmra.mxu0 %v538
          %v1531 = vpop.f32.mrf.mxu0
          %v1532 = vadd.f32 %v623, %v1531
          %v1533 = vpop.f32.mrf.mxu0
          %v1534 = vadd.f32 %v623, %v1533
          %1535 = vmatmul.bf16.gmra.mxu0 %v540
          %v1536 = vpop.f32.mrf.mxu0
          %v1537 = vadd.f32 %v623, %v1536
          %v1538 = vpop.f32.mrf.mxu0
          %v1539 = vadd.f32 %v623, %v1538
          %1540 = vmatmul.bf16.gmra.mxu0 %v542
          %v1541 = vpop.f32.mrf.mxu0
          %v1542 = vadd.f32 %v623, %v1541
          %v1543 = vpop.f32.mrf.mxu0
          %v1544 = vadd.f32 %v623, %v1543
          %1545 = vmatmul.bf16.gmra.mxu0 %v544
          %v1546 = vpop.f32.mrf.mxu0
          %v1547 = vadd.f32 %v623, %v1546
          %v1548 = vpop.f32.mrf.mxu0
          %v1549 = vadd.f32 %v623, %v1548
          %1550 = vmatmul.bf16.gmra.mxu0 %v546
          %v1551 = vpop.f32.mrf.mxu0
          %v1552 = vadd.f32 %v623, %v1551
          %v1553 = vpop.f32.mrf.mxu0
          %v1554 = vadd.f32 %v623, %v1553
          %1555 = vmatmul.bf16.gmra.mxu0 %v548
          %v1556 = vpop.f32.mrf.mxu0
          %v1557 = vadd.f32 %v623, %v1556
          %v1558 = vpop.f32.mrf.mxu0
          %v1559 = vadd.f32 %v623, %v1558
          %1560 = vmatmul.bf16.gmra.mxu0 %v550
          %v1561 = vpop.f32.mrf.mxu0
          %v1562 = vadd.f32 %v623, %v1561
          %v1563 = vpop.f32.mrf.mxu0
          %v1564 = vadd.f32 %v623, %v1563
          %1565 = vmatmul.bf16.gmra.mxu0 %v552
          %v1566 = vpop.f32.mrf.mxu0
          %v1567 = vadd.f32 %v623, %v1566
          %v1568 = vpop.f32.mrf.mxu0
          %v1569 = vadd.f32 %v623, %v1568
          %1570 = vdwg.mxu0
          %1571 = vmatpush.bf16.msra.mxu0 %v883
          %1572 = vmatpush.bf16.msra.mxu0 %v879
          %1573 = vmatpush.bf16.msra.mxu0 %v875
          %1574 = vmatpush.bf16.msra.mxu0 %v871
          %1575 = vmatpush.bf16.msra.mxu0 %v867
          %1576 = vmatpush.bf16.msra.mxu0 %v863
          %1577 = vmatpush.bf16.msra.mxu0 %v859
          %1578 = vmatpush.bf16.msra.mxu0 %v855
          %1579 = vmatmul.bf16.gmra.mxu0 %v523
          %v1580 = vpop.f32.mrf.mxu0
          %v1581 = vadd.f32 %v1492, %v1580
          %v1582 = vpop.f32.mrf.mxu0
          %v1583 = vadd.f32 %v1494, %v1582
          %1584 = vmatmul.bf16.gmra.mxu0 %v525
          %v1585 = vpop.f32.mrf.mxu0
          %v1586 = vadd.f32 %v1497, %v1585
          %v1587 = vpop.f32.mrf.mxu0
          %v1588 = vadd.f32 %v1499, %v1587
          %1589 = vmatmul.bf16.gmra.mxu0 %v527
          %v1590 = vpop.f32.mrf.mxu0
          %v1591 = vadd.f32 %v1502, %v1590
          %v1592 = vpop.f32.mrf.mxu0
          %v1593 = vadd.f32 %v1504, %v1592
          %1594 = vmatmul.bf16.gmra.mxu0 %v529
          %v1595 = vpop.f32.mrf.mxu0
          %v1596 = vadd.f32 %v1507, %v1595
          %v1597 = vpop.f32.mrf.mxu0
          %v1598 = vadd.f32 %v1509, %v1597
          %1599 = vmatmul.bf16.gmra.mxu0 %v531
          %v1600 = vpop.f32.mrf.mxu0
          %v1601 = vadd.f32 %v1512, %v1600
          %v1602 = vpop.f32.mrf.mxu0
          %v1603 = vadd.f32 %v1514, %v1602
          %1604 = vmatmul.bf16.gmra.mxu0 %v533
          %v1605 = vpop.f32.mrf.mxu0
          %v1606 = vadd.f32 %v1517, %v1605
          %v1607 = vpop.f32.mrf.mxu0
          %v1608 = vadd.f32 %v1519, %v1607
          %1609 = vmatmul.bf16.gmra.mxu0 %v535
          %v1610 = vpop.f32.mrf.mxu0
          %v1611 = vadd.f32 %v1522, %v1610
          %v1612 = vpop.f32.mrf.mxu0
          %v1613 = vadd.f32 %v1524, %v1612
          %1614 = vmatmul.bf16.gmra.mxu0 %v537
          %v1615 = vpop.f32.mrf.mxu0
          %v1616 = vadd.f32 %v1527, %v1615
          %v1617 = vpop.f32.mrf.mxu0
          %v1618 = vadd.f32 %v1529, %v1617
          %1619 = vmatmul.bf16.gmra.mxu0 %v539
          %v1620 = vpop.f32.mrf.mxu0
          %v1621 = vadd.f32 %v1532, %v1620
          %v1622 = vpop.f32.mrf.mxu0
          %v1623 = vadd.f32 %v1534, %v1622
          %1624 = vmatmul.bf16.gmra.mxu0 %v541
          %v1625 = vpop.f32.mrf.mxu0
          %v1626 = vadd.f32 %v1537, %v1625
          %v1627 = vpop.f32.mrf.mxu0
          %v1628 = vadd.f32 %v1539, %v1627
          %1629 = vmatmul.bf16.gmra.mxu0 %v543
          %v1630 = vpop.f32.mrf.mxu0
          %v1631 = vadd.f32 %v1542, %v1630
          %v1632 = vpop.f32.mrf.mxu0
          %v1633 = vadd.f32 %v1544, %v1632
          %1634 = vmatmul.bf16.gmra.mxu0 %v545
          %v1635 = vpop.f32.mrf.mxu0
          %v1636 = vadd.f32 %v1547, %v1635
          %v1637 = vpop.f32.mrf.mxu0
          %v1638 = vadd.f32 %v1549, %v1637
          %1639 = vmatmul.bf16.gmra.mxu0 %v547
          %v1640 = vpop.f32.mrf.mxu0
          %v1641 = vadd.f32 %v1552, %v1640
          %v1642 = vpop.f32.mrf.mxu0
          %v1643 = vadd.f32 %v1554, %v1642
          %1644 = vmatmul.bf16.gmra.mxu0 %v549
          %v1645 = vpop.f32.mrf.mxu0
          %v1646 = vadd.f32 %v1557, %v1645
          %v1647 = vpop.f32.mrf.mxu0
          %v1648 = vadd.f32 %v1559, %v1647
          %1649 = vmatmul.bf16.gmra.mxu0 %v551
          %v1650 = vpop.f32.mrf.mxu0
          %v1651 = vadd.f32 %v1562, %v1650
          %v1652 = vpop.f32.mrf.mxu0
          %v1653 = vadd.f32 %v1564, %v1652
          %1654 = vmatmul.bf16.gmra.mxu0 %v553
          %v1655 = vpop.f32.mrf.mxu0
          %v1656 = vadd.f32 %v1567, %v1655
          %v1657 = vpop.f32.mrf.mxu0
          %v1658 = vadd.f32 %v1569, %v1657
          %1659 = vdwg.mxu0
          %v1660 = vtanh.pop %v1047
          %v1661 = vtanh.pop %v1225
          %v1662 = vtanh.pop %v1403
          %v1663 = vtanh.pop %v1581
          %v1664 = vtanh.pop %v1049
          %v1665 = vtanh.pop %v1227
          %v1666 = vtanh.pop %v1405
          %v1667 = vtanh.pop %v1583
          %v1668 = vtanh.pop %v1052
          %v1669 = vtanh.pop %v1230
          %v1670 = vtanh.pop %v1408
          %v1671 = vtanh.pop %v1586
          %v1672 = vtanh.pop %v1054
          %v1673 = vtanh.pop %v1232
          %v1674 = vtanh.pop %v1410
          %v1675 = vtanh.pop %v1588
          %v1676 = vtanh.pop %v1057
          %v1677 = vtanh.pop %v1235
          %v1678 = vtanh.pop %v1413
          %v1679 = vtanh.pop %v1591
          %v1680 = vtanh.pop %v1059
          %v1681 = vtanh.pop %v1237
          %v1682 = vtanh.pop %v1415
          %v1683 = vtanh.pop %v1593
          %v1684 = vtanh.pop %v1062
          %v1685 = vtanh.pop %v1240
          %v1686 = vtanh.pop %v1418
          %v1687 = vtanh.pop %v1596
          %v1688 = vtanh.pop %v1064
          %v1689 = vtanh.pop %v1242
          %v1690 = vtanh.pop %v1420
          %v1691 = vtanh.pop %v1598
          %v1692 = vtanh.pop %v1067
          %v1693 = vtanh.pop %v1245
          %v1694 = vtanh.pop %v1423
          %v1695 = vtanh.pop %v1601
          %v1696 = vtanh.pop %v1069
          %v1697 = vtanh.pop %v1247
          %v1698 = vtanh.pop %v1425
          %v1699 = vtanh.pop %v1603
          %v1700 = vtanh.pop %v1072
          %v1701 = vtanh.pop %v1250
          %v1702 = vtanh.pop %v1428
          %v1703 = vtanh.pop %v1606
          %v1704 = vtanh.pop %v1074
          %v1705 = vtanh.pop %v1252
          %v1706 = vtanh.pop %v1430
          %v1707 = vtanh.pop %v1608
          %v1708 = vtanh.pop %v1077
          %v1709 = vtanh.pop %v1255
          %v1710 = vtanh.pop %v1433
          %v1711 = vtanh.pop %v1611
          %v1712 = vtanh.pop %v1079
          %v1713 = vtanh.pop %v1257
          %v1714 = vtanh.pop %v1435
          %v1715 = vtanh.pop %v1613
          %v1716 = vtanh.pop %v1082
          %v1717 = vtanh.pop %v1260
          %v1718 = vtanh.pop %v1438
          %v1719 = vtanh.pop %v1616
          %v1720 = vtanh.pop %v1084
          %v1721 = vtanh.pop %v1262
          %v1722 = vtanh.pop %v1440
          %v1723 = vtanh.pop %v1618
          %v1724 = vtanh.pop %v1087
          %v1725 = vtanh.pop %v1265
          %v1726 = vtanh.pop %v1443
          %v1727 = vtanh.pop %v1621
          %v1728 = vtanh.pop %v1089
          %v1729 = vtanh.pop %v1267
          %v1730 = vtanh.pop %v1445
          %v1731 = vtanh.pop %v1623
          %v1732 = vtanh.pop %v1092
          %v1733 = vtanh.pop %v1270
          %v1734 = vtanh.pop %v1448
          %v1735 = vtanh.pop %v1626
          %v1736 = vtanh.pop %v1094
          %v1737 = vtanh.pop %v1272
          %v1738 = vtanh.pop %v1450
          %v1739 = vtanh.pop %v1628
          %v1740 = vtanh.pop %v1097
          %v1741 = vtanh.pop %v1275
          %v1742 = vtanh.pop %v1453
          %v1743 = vtanh.pop %v1631
          %v1744 = vtanh.pop %v1099
          %v1745 = vtanh.pop %v1277
          %v1746 = vtanh.pop %v1455
          %v1747 = vtanh.pop %v1633
          %v1748 = vtanh.pop %v1102
          %v1749 = vtanh.pop %v1280
          %v1750 = vtanh.pop %v1458
          %v1751 = vtanh.pop %v1636
          %v1752 = vtanh.pop %v1104
          %v1753 = vtanh.pop %v1282
          %v1754 = vtanh.pop %v1460
          %v1755 = vtanh.pop %v1638
          %v1756 = vtanh.pop %v1107
          %v1757 = vtanh.pop %v1285
          %v1758 = vtanh.pop %v1463
          %v1759 = vtanh.pop %v1641
          %v1760 = vtanh.pop %v1109
          %v1761 = vtanh.pop %v1287
          %v1762 = vtanh.pop %v1465
          %v1763 = vtanh.pop %v1643
          %v1764 = vtanh.pop %v1112
          %v1765 = vtanh.pop %v1290
          %v1766 = vtanh.pop %v1468
          %v1767 = vtanh.pop %v1646
          %v1768 = vtanh.pop %v1114
          %v1769 = vtanh.pop %v1292
          %v1770 = vtanh.pop %v1470
          %v1771 = vtanh.pop %v1648
          %v1772 = vtanh.pop %v1117
          %v1773 = vtanh.pop %v1295
          %v1774 = vtanh.pop %v1473
          %v1775 = vtanh.pop %v1651
          %v1776 = vtanh.pop %v1119
          %v1777 = vtanh.pop %v1297
          %v1778 = vtanh.pop %v1475
          %v1779 = vtanh.pop %v1653
          %v1780 = vtanh.pop %v1122
          %v1781 = vtanh.pop %v1300
          %v1782 = vtanh.pop %v1478
          %v1783 = vtanh.pop %v1656
          %v1784 = vtanh.pop %v1124
          %v1785 = vtanh.pop %v1302
          %v1786 = vtanh.pop %v1480
          %v1787 = vtanh.pop %v1658
          %v1788 = vpack.c.bf16 %v1661, %v1660
          %v1789 = vpack.c.bf16 %v1665, %v1664
          %v1790 = vpack.c.bf16 %v1669, %v1668
          %v1791 = vpack.c.bf16 %v1673, %v1672
          %v1792 = vpack.c.bf16 %v1677, %v1676
          %v1793 = vpack.c.bf16 %v1681, %v1680
          %v1794 = vpack.c.bf16 %v1685, %v1684
          %v1795 = vpack.c.bf16 %v1689, %v1688
          %v1796 = vpack.c.bf16 %v1693, %v1692
          %v1797 = vpack.c.bf16 %v1697, %v1696
          %v1798 = vpack.c.bf16 %v1701, %v1700
          %v1799 = vpack.c.bf16 %v1705, %v1704
          %v1800 = vpack.c.bf16 %v1709, %v1708
          %v1801 = vpack.c.bf16 %v1713, %v1712
          %v1802 = vpack.c.bf16 %v1717, %v1716
          %v1803 = vpack.c.bf16 %v1721, %v1720
          %v1804 = vpack.c.bf16 %v1725, %v1724
          %v1805 = vpack.c.bf16 %v1729, %v1728
          %v1806 = vpack.c.bf16 %v1733, %v1732
          %v1807 = vpack.c.bf16 %v1737, %v1736
          %v1808 = vpack.c.bf16 %v1741, %v1740
          %v1809 = vpack.c.bf16 %v1745, %v1744
          %v1810 = vpack.c.bf16 %v1749, %v1748
          %v1811 = vpack.c.bf16 %v1753, %v1752
          %v1812 = vpack.c.bf16 %v1757, %v1756
          %v1813 = vpack.c.bf16 %v1761, %v1760
          %v1814 = vpack.c.bf16 %v1765, %v1764
          %v1815 = vpack.c.bf16 %v1769, %v1768
          %v1816 = vpack.c.bf16 %v1773, %v1772
          %v1817 = vpack.c.bf16 %v1777, %v1776
          %v1818 = vpack.c.bf16 %v1781, %v1780
          %v1819 = vpack.c.bf16 %v1785, %v1784
          %1820 = vst [vmem:[#allocation2] sm:$0xff] %v1788
          %1821 = vst [vmem:[#allocation2 + $0x8] sm:$0xff] %v1789
          %1822 = vst [vmem:[#allocation2 + $0x10] sm:$0xff] %v1790
          %1823 = vst [vmem:[#allocation2 + $0x18] sm:$0xff] %v1791
          %1824 = vst [vmem:[#allocation2 + $0x20] sm:$0xff] %v1792
          %1825 = vst [vmem:[#allocation2 + $0x28] sm:$0xff] %v1793
          %1826 = vst [vmem:[#allocation2 + $0x30] sm:$0xff] %v1794
          %1827 = vst [vmem:[#allocation2 + $0x38] sm:$0xff] %v1795
          %1828 = vst [vmem:[#allocation2 + $0x40] sm:$0xff] %v1796
          %1829 = vst [vmem:[#allocation2 + $0x48] sm:$0xff] %v1797
          %1830 = vst [vmem:[#allocation2 + $0x50] sm:$0xff] %v1798
          %1831 = vst [vmem:[#allocation2 + $0x58] sm:$0xff] %v1799
          %1832 = vst [vmem:[#allocation2 + $0x60] sm:$0xff] %v1800
          %1833 = vst [vmem:[#allocation2 + $0x68] sm:$0xff] %v1801
          %1834 = vst [vmem:[#allocation2 + $0x70] sm:$0xff] %v1802
          %1835 = vst [vmem:[#allocation2 + $0x78] sm:$0xff] %v1803
          %1836 = vst [vmem:[#allocation2 + $0x80] sm:$0xff] %v1804
          %1837 = vst [vmem:[#allocation2 + $0x88] sm:$0xff] %v1805
          %1838 = vst [vmem:[#allocation2 + $0x90] sm:$0xff] %v1806
          %1839 = vst [vmem:[#allocation2 + $0x98] sm:$0xff] %v1807
          %1840 = vst [vmem:[#allocation2 + $0xa0] sm:$0xff] %v1808
          %1841 = vst [vmem:[#allocation2 + $0xa8] sm:$0xff] %v1809
          %1842 = vst [vmem:[#allocation2 + $0xb0] sm:$0xff] %v1810
          %1843 = vst [vmem:[#allocation2 + $0xb8] sm:$0xff] %v1811
          %1844 = vst [vmem:[#allocation2 + $0xc0] sm:$0xff] %v1812
          %1845 = vst [vmem:[#allocation2 + $0xc8] sm:$0xff] %v1813
          %1846 = vst [vmem:[#allocation2 + $0xd0] sm:$0xff] %v1814
          %1847 = vst [vmem:[#allocation2 + $0xd8] sm:$0xff] %v1815
          %1848 = vst [vmem:[#allocation2 + $0xe0] sm:$0xff] %v1816
          %1849 = vst [vmem:[#allocation2 + $0xe8] sm:$0xff] %v1817
          %1850 = vst [vmem:[#allocation2 + $0xf0] sm:$0xff] %v1818
          %1851 = vst [vmem:[#allocation2 + $0xf8] sm:$0xff] %v1819
          %v1852 = vld [vmem:[%s5] sm:$0x3]
          %v1854 = vperm.slane %v1852, 0
          %v1855 = vperm.slane %v1852, 1
          %v1858 = vmul.f32 %v1662, %v1854
          %v1859 = vmul.f32 %v1663, %v1855
          %v1860 = vmul.f32 %v1666, %v1854
          %v1861 = vmul.f32 %v1667, %v1855
          %v1862 = vmul.f32 %v1670, %v1854
          %v1863 = vmul.f32 %v1671, %v1855
          %v1864 = vmul.f32 %v1674, %v1854
          %v1865 = vmul.f32 %v1675, %v1855
          %v1866 = vmul.f32 %v1678, %v1854
          %v1867 = vmul.f32 %v1679, %v1855
          %v1868 = vmul.f32 %v1682, %v1854
          %v1869 = vmul.f32 %v1683, %v1855
          %v1870 = vmul.f32 %v1686, %v1854
          %v1871 = vmul.f32 %v1687, %v1855
          %v1872 = vmul.f32 %v1690, %v1854
          %v1873 = vmul.f32 %v1691, %v1855
          %v1874 = vmul.f32 %v1694, %v1854
          %v1875 = vmul.f32 %v1695, %v1855
          %v1876 = vmul.f32 %v1698, %v1854
          %v1877 = vmul.f32 %v1699, %v1855
          %v1878 = vmul.f32 %v1702, %v1854
          %v1879 = vmul.f32 %v1703, %v1855
          %v1880 = vmul.f32 %v1706, %v1854
          %v1881 = vmul.f32 %v1707, %v1855
          %v1882 = vmul.f32 %v1710, %v1854
          %v1883 = vmul.f32 %v1711, %v1855
          %v1884 = vmul.f32 %v1714, %v1854
          %v1885 = vmul.f32 %v1715, %v1855
          %v1886 = vmul.f32 %v1718, %v1854
          %v1887 = vmul.f32 %v1719, %v1855
          %v1888 = vmul.f32 %v1722, %v1854
          %v1889 = vmul.f32 %v1723, %v1855
          %v1890 = vmul.f32 %v1726, %v1854
          %v1891 = vmul.f32 %v1727, %v1855
          %v1892 = vmul.f32 %v1730, %v1854
          %v1893 = vmul.f32 %v1731, %v1855
          %v1894 = vmul.f32 %v1734, %v1854
          %v1895 = vmul.f32 %v1735, %v1855
          %v1896 = vmul.f32 %v1738, %v1854
          %v1897 = vmul.f32 %v1739, %v1855
          %v1898 = vmul.f32 %v1742, %v1854
          %v1899 = vmul.f32 %v1743, %v1855
          %v1900 = vmul.f32 %v1746, %v1854
          %v1901 = vmul.f32 %v1747, %v1855
          %v1902 = vmul.f32 %v1750, %v1854
          %v1903 = vmul.f32 %v1751, %v1855
          %v1904 = vmul.f32 %v1754, %v1854
          %v1905 = vmul.f32 %v1755, %v1855
          %v1906 = vmul.f32 %v1758, %v1854
          %v1907 = vmul.f32 %v1759, %v1855
          %v1908 = vmul.f32 %v1762, %v1854
          %v1909 = vmul.f32 %v1763, %v1855
          %v1910 = vmul.f32 %v1766, %v1854
          %v1911 = vmul.f32 %v1767, %v1855
          %v1912 = vmul.f32 %v1770, %v1854
          %v1913 = vmul.f32 %v1771, %v1855
          %v1914 = vmul.f32 %v1774, %v1854
          %v1915 = vmul.f32 %v1775, %v1855
          %v1916 = vmul.f32 %v1778, %v1854
          %v1917 = vmul.f32 %v1779, %v1855
          %v1918 = vmul.f32 %v1782, %v1854
          %v1919 = vmul.f32 %v1783, %v1855
          %v1920 = vmul.f32 %v1786, %v1854
          %v1921 = vmul.f32 %v1787, %v1855
          %v1922 = vadd.f32 %v1858, %v1859
          %1923 = vadd.xlane.f32.xlu0 %v1922
          %v1924 = vpop.xlane.xlu0 %1923
          %v1925 = vadd.f32 %v1860, %v1861
          %1926 = vadd.xlane.f32.xlu0 %v1925
          %v1927 = vpop.xlane.xlu0 %1926
          %v1928 = vadd.f32 %v1862, %v1863
          %1929 = vadd.xlane.f32.xlu0 %v1928
          %v1930 = vpop.xlane.xlu0 %1929
          %v1931 = vadd.f32 %v1864, %v1865
          %1932 = vadd.xlane.f32.xlu0 %v1931
          %v1933 = vpop.xlane.xlu0 %1932
          %v1934 = vadd.f32 %v1866, %v1867
          %1935 = vadd.xlane.f32.xlu0 %v1934
          %v1936 = vpop.xlane.xlu0 %1935
          %v1937 = vadd.f32 %v1868, %v1869
          %1938 = vadd.xlane.f32.xlu0 %v1937
          %v1939 = vpop.xlane.xlu0 %1938
          %v1940 = vadd.f32 %v1870, %v1871
          %1941 = vadd.xlane.f32.xlu0 %v1940
          %v1942 = vpop.xlane.xlu0 %1941
          %v1943 = vadd.f32 %v1872, %v1873
          %1944 = vadd.xlane.f32.xlu0 %v1943
          %v1945 = vpop.xlane.xlu0 %1944
          %v1946 = vadd.f32 %v1874, %v1875
          %1947 = vadd.xlane.f32.xlu0 %v1946
          %v1948 = vpop.xlane.xlu0 %1947
          %v1949 = vadd.f32 %v1876, %v1877
          %1950 = vadd.xlane.f32.xlu0 %v1949
          %v1951 = vpop.xlane.xlu0 %1950
          %v1952 = vadd.f32 %v1878, %v1879
          %1953 = vadd.xlane.f32.xlu0 %v1952
          %v1954 = vpop.xlane.xlu0 %1953
          %v1955 = vadd.f32 %v1880, %v1881
          %1956 = vadd.xlane.f32.xlu0 %v1955
          %v1957 = vpop.xlane.xlu0 %1956
          %v1958 = vadd.f32 %v1882, %v1883
          %1959 = vadd.xlane.f32.xlu0 %v1958
          %v1960 = vpop.xlane.xlu0 %1959
          %v1961 = vadd.f32 %v1884, %v1885
          %1962 = vadd.xlane.f32.xlu0 %v1961
          %v1963 = vpop.xlane.xlu0 %1962
          %v1964 = vadd.f32 %v1886, %v1887
          %1965 = vadd.xlane.f32.xlu0 %v1964
          %v1966 = vpop.xlane.xlu0 %1965
          %v1967 = vadd.f32 %v1888, %v1889
          %1968 = vadd.xlane.f32.xlu0 %v1967
          %v1969 = vpop.xlane.xlu0 %1968
          %v1970 = vadd.f32 %v1890, %v1891
          %1971 = vadd.xlane.f32.xlu0 %v1970
          %v1972 = vpop.xlane.xlu0 %1971
          %v1973 = vadd.f32 %v1892, %v1893
          %1974 = vadd.xlane.f32.xlu0 %v1973
          %v1975 = vpop.xlane.xlu0 %1974
          %v1976 = vadd.f32 %v1894, %v1895
          %1977 = vadd.xlane.f32.xlu0 %v1976
          %v1978 = vpop.xlane.xlu0 %1977
          %v1979 = vadd.f32 %v1896, %v1897
          %1980 = vadd.xlane.f32.xlu0 %v1979
          %v1981 = vpop.xlane.xlu0 %1980
          %v1982 = vadd.f32 %v1898, %v1899
          %1983 = vadd.xlane.f32.xlu0 %v1982
          %v1984 = vpop.xlane.xlu0 %1983
          %v1985 = vadd.f32 %v1900, %v1901
          %1986 = vadd.xlane.f32.xlu0 %v1985
          %v1987 = vpop.xlane.xlu0 %1986
          %v1988 = vadd.f32 %v1902, %v1903
          %1989 = vadd.xlane.f32.xlu0 %v1988
          %v1990 = vpop.xlane.xlu0 %1989
          %v1991 = vadd.f32 %v1904, %v1905
          %1992 = vadd.xlane.f32.xlu0 %v1991
          %v1993 = vpop.xlane.xlu0 %1992
          %v1994 = vadd.f32 %v1906, %v1907
          %1995 = vadd.xlane.f32.xlu0 %v1994
          %v1996 = vpop.xlane.xlu0 %1995
          %v1997 = vadd.f32 %v1908, %v1909
          %1998 = vadd.xlane.f32.xlu0 %v1997
          %v1999 = vpop.xlane.xlu0 %1998
          %v2000 = vadd.f32 %v1910, %v1911
          %2001 = vadd.xlane.f32.xlu0 %v2000
          %v2002 = vpop.xlane.xlu0 %2001
          %v2003 = vadd.f32 %v1912, %v1913
          %2004 = vadd.xlane.f32.xlu0 %v2003
          %v2005 = vpop.xlane.xlu0 %2004
          %v2006 = vadd.f32 %v1914, %v1915
          %2007 = vadd.xlane.f32.xlu0 %v2006
          %v2008 = vpop.xlane.xlu0 %2007
          %v2009 = vadd.f32 %v1916, %v1917
          %2010 = vadd.xlane.f32.xlu0 %v2009
          %v2011 = vpop.xlane.xlu0 %2010
          %v2012 = vadd.f32 %v1918, %v1919
          %2013 = vadd.xlane.f32.xlu0 %v2012
          %v2014 = vpop.xlane.xlu0 %2013
          %v2015 = vadd.f32 %v1920, %v1921
          %2016 = vadd.xlane.f32.xlu0 %v2015
          %v2017 = vpop.xlane.xlu0 %2016
          %v2018 = vld [vmem:[#allocation3] sm:$0x1]
          %v2020 = vperm.slane %v2018, 0
          %v2022 = vadd.f32 %v1924, %v2020
          %v2023 = vadd.f32 %v1927, %v2020
          %v2024 = vadd.f32 %v1930, %v2020
          %v2025 = vadd.f32 %v1933, %v2020
          %v2026 = vadd.f32 %v1936, %v2020
          %v2027 = vadd.f32 %v1939, %v2020
          %v2028 = vadd.f32 %v1942, %v2020
          %v2029 = vadd.f32 %v1945, %v2020
          %v2030 = vadd.f32 %v1948, %v2020
          %v2031 = vadd.f32 %v1951, %v2020
          %v2032 = vadd.f32 %v1954, %v2020
          %v2033 = vadd.f32 %v1957, %v2020
          %v2034 = vadd.f32 %v1960, %v2020
          %v2035 = vadd.f32 %v1963, %v2020
          %v2036 = vadd.f32 %v1966, %v2020
          %v2037 = vadd.f32 %v1969, %v2020
          %v2038 = vadd.f32 %v1972, %v2020
          %v2039 = vadd.f32 %v1975, %v2020
          %v2040 = vadd.f32 %v1978, %v2020
          %v2041 = vadd.f32 %v1981, %v2020
          %v2042 = vadd.f32 %v1984, %v2020
          %v2043 = vadd.f32 %v1987, %v2020
          %v2044 = vadd.f32 %v1990, %v2020
          %v2045 = vadd.f32 %v1993, %v2020
          %v2046 = vadd.f32 %v1996, %v2020
          %v2047 = vadd.f32 %v1999, %v2020
          %v2048 = vadd.f32 %v2002, %v2020
          %v2049 = vadd.f32 %v2005, %v2020
          %v2050 = vadd.f32 %v2008, %v2020
          %v2051 = vadd.f32 %v2011, %v2020
          %v2052 = vadd.f32 %v2014, %v2020
          %v2053 = vadd.f32 %v2017, %v2020
          %2055 = vset.pattern.permute.xlu0 0
          %2056 = vperm.xlu0 %2055, %v2022
          %v2057 = vpop.permute.xlu0 %2056
          %2060 = vset.pattern.permute.xlu0 0
          %2061 = vperm.xlu0 %2060, %v2023
          %v2062 = vpop.permute.xlu0 %2061
          %2065 = vset.pattern.permute.xlu0 0
          %2066 = vperm.xlu0 %2065, %v2024
          %v2067 = vpop.permute.xlu0 %2066
          %2070 = vset.pattern.permute.xlu0 0
          %2071 = vperm.xlu0 %2070, %v2025
          %v2072 = vpop.permute.xlu0 %2071
          %2075 = vset.pattern.permute.xlu0 0
          %2076 = vperm.xlu0 %2075, %v2026
          %v2077 = vpop.permute.xlu0 %2076
          %2080 = vset.pattern.permute.xlu0 0
          %2081 = vperm.xlu0 %2080, %v2027
          %v2082 = vpop.permute.xlu0 %2081
          %2085 = vset.pattern.permute.xlu0 0
          %2086 = vperm.xlu0 %2085, %v2028
          %v2087 = vpop.permute.xlu0 %2086
          %2090 = vset.pattern.permute.xlu0 0
          %2091 = vperm.xlu0 %2090, %v2029
          %v2092 = vpop.permute.xlu0 %2091
          %2095 = vset.pattern.permute.xlu0 0
          %2096 = vperm.xlu0 %2095, %v2030
          %v2097 = vpop.permute.xlu0 %2096
          %2100 = vset.pattern.permute.xlu0 0
          %2101 = vperm.xlu0 %2100, %v2031
          %v2102 = vpop.permute.xlu0 %2101
          %2105 = vset.pattern.permute.xlu0 0
          %2106 = vperm.xlu0 %2105, %v2032
          %v2107 = vpop.permute.xlu0 %2106
          %2110 = vset.pattern.permute.xlu0 0
          %2111 = vperm.xlu0 %2110, %v2033
          %v2112 = vpop.permute.xlu0 %2111
          %2115 = vset.pattern.permute.xlu0 0
          %2116 = vperm.xlu0 %2115, %v2034
          %v2117 = vpop.permute.xlu0 %2116
          %2120 = vset.pattern.permute.xlu0 0
          %2121 = vperm.xlu0 %2120, %v2035
          %v2122 = vpop.permute.xlu0 %2121
          %2125 = vset.pattern.permute.xlu0 0
          %2126 = vperm.xlu0 %2125, %v2036
          %v2127 = vpop.permute.xlu0 %2126
          %2130 = vset.pattern.permute.xlu0 0
          %2131 = vperm.xlu0 %2130, %v2037
          %v2132 = vpop.permute.xlu0 %2131
          %2135 = vset.pattern.permute.xlu0 0
          %2136 = vperm.xlu0 %2135, %v2038
          %v2137 = vpop.permute.xlu0 %2136
          %2140 = vset.pattern.permute.xlu0 0
          %2141 = vperm.xlu0 %2140, %v2039
          %v2142 = vpop.permute.xlu0 %2141
          %2145 = vset.pattern.permute.xlu0 0
          %2146 = vperm.xlu0 %2145, %v2040
          %v2147 = vpop.permute.xlu0 %2146
          %2150 = vset.pattern.permute.xlu0 0
          %2151 = vperm.xlu0 %2150, %v2041
          %v2152 = vpop.permute.xlu0 %2151
          %2155 = vset.pattern.permute.xlu0 0
          %2156 = vperm.xlu0 %2155, %v2042
          %v2157 = vpop.permute.xlu0 %2156
          %2160 = vset.pattern.permute.xlu0 0
          %2161 = vperm.xlu0 %2160, %v2043
          %v2162 = vpop.permute.xlu0 %2161
          %2165 = vset.pattern.permute.xlu0 0
          %2166 = vperm.xlu0 %2165, %v2044
          %v2167 = vpop.permute.xlu0 %2166
          %2170 = vset.pattern.permute.xlu0 0
          %2171 = vperm.xlu0 %2170, %v2045
          %v2172 = vpop.permute.xlu0 %2171
          %2175 = vset.pattern.permute.xlu0 0
          %2176 = vperm.xlu0 %2175, %v2046
          %v2177 = vpop.permute.xlu0 %2176
          %2180 = vset.pattern.permute.xlu0 0
          %2181 = vperm.xlu0 %2180, %v2047
          %v2182 = vpop.permute.xlu0 %2181
          %2185 = vset.pattern.permute.xlu0 0
          %2186 = vperm.xlu0 %2185, %v2048
          %v2187 = vpop.permute.xlu0 %2186
          %2190 = vset.pattern.permute.xlu0 0
          %2191 = vperm.xlu0 %2190, %v2049
          %v2192 = vpop.permute.xlu0 %2191
          %2195 = vset.pattern.permute.xlu0 0
          %2196 = vperm.xlu0 %2195, %v2050
          %v2197 = vpop.permute.xlu0 %2196
          %2200 = vset.pattern.permute.xlu0 0
          %2201 = vperm.xlu0 %2200, %v2051
          %v2202 = vpop.permute.xlu0 %2201
          %2205 = vset.pattern.permute.xlu0 0
          %2206 = vperm.xlu0 %2205, %v2052
          %v2207 = vpop.permute.xlu0 %2206
          %2210 = vset.pattern.permute.xlu0 0
          %2211 = vperm.xlu0 %2210, %v2053
          %v2212 = vpop.permute.xlu0 %2211
          %2214 = vst [vmem:[%s452] sm:$0xff] %v2057
          %2215 = vst [vmem:[%s452 + $0x8] sm:$0xff] %v2062
          %2216 = vst [vmem:[%s452 + $0x10] sm:$0xff] %v2067
          %2217 = vst [vmem:[%s452 + $0x18] sm:$0xff] %v2072
          %2218 = vst [vmem:[%s452 + $0x20] sm:$0xff] %v2077
          %2219 = vst [vmem:[%s452 + $0x28] sm:$0xff] %v2082
          %2220 = vst [vmem:[%s452 + $0x30] sm:$0xff] %v2087
          %2221 = vst [vmem:[%s452 + $0x38] sm:$0xff] %v2092
          %2222 = vst [vmem:[%s452 + $0x40] sm:$0xff] %v2097
          %2223 = vst [vmem:[%s452 + $0x48] sm:$0xff] %v2102
          %2224 = vst [vmem:[%s452 + $0x50] sm:$0xff] %v2107
          %2225 = vst [vmem:[%s452 + $0x58] sm:$0xff] %v2112
          %2226 = vst [vmem:[%s452 + $0x60] sm:$0xff] %v2117
          %2227 = vst [vmem:[%s452 + $0x68] sm:$0xff] %v2122
          %2228 = vst [vmem:[%s452 + $0x70] sm:$0xff] %v2127
          %2229 = vst [vmem:[%s452 + $0x78] sm:$0xff] %v2132
          %2230 = vst [vmem:[%s452 + $0x80] sm:$0xff] %v2137
          %2231 = vst [vmem:[%s452 + $0x88] sm:$0xff] %v2142
          %2232 = vst [vmem:[%s452 + $0x90] sm:$0xff] %v2147
          %2233 = vst [vmem:[%s452 + $0x98] sm:$0xff] %v2152
          %2234 = vst [vmem:[%s452 + $0xa0] sm:$0xff] %v2157
          %2235 = vst [vmem:[%s452 + $0xa8] sm:$0xff] %v2162
          %2236 = vst [vmem:[%s452 + $0xb0] sm:$0xff] %v2167
          %2237 = vst [vmem:[%s452 + $0xb8] sm:$0xff] %v2172
          %2238 = vst [vmem:[%s452 + $0xc0] sm:$0xff] %v2177
          %2239 = vst [vmem:[%s452 + $0xc8] sm:$0xff] %v2182
          %2240 = vst [vmem:[%s452 + $0xd0] sm:$0xff] %v2187
          %2241 = vst [vmem:[%s452 + $0xd8] sm:$0xff] %v2192
          %2242 = vst [vmem:[%s452 + $0xe0] sm:$0xff] %v2197
          %2243 = vst [vmem:[%s452 + $0xe8] sm:$0xff] %v2202
          %2244 = vst [vmem:[%s452 + $0xf0] sm:$0xff] %v2207
          %2245 = vst [vmem:[%s452 + $0xf8] sm:$0xff] %v2212
        $region72: #{policy_and_value_forward.1} parent=47 // pred_fallthru
          _
        %v2246 = vld [vmem:[#allocation2] sm:$0xff]
        %v2247 = vld [vmem:[#allocation2 + $0x8] sm:$0xff]
        %v2248 = vld [vmem:[#allocation2 + $0x10] sm:$0xff]
        %v2249 = vld [vmem:[#allocation2 + $0x18] sm:$0xff]
        %v2250 = vld [vmem:[#allocation2 + $0x20] sm:$0xff]
        %v2251 = vld [vmem:[#allocation2 + $0x28] sm:$0xff]
        %v2252 = vld [vmem:[#allocation2 + $0x30] sm:$0xff]
        %v2253 = vld [vmem:[#allocation2 + $0x38] sm:$0xff]
        %v2254 = vld [vmem:[#allocation2 + $0x40] sm:$0xff]
        %v2255 = vld [vmem:[#allocation2 + $0x48] sm:$0xff]
        %v2256 = vld [vmem:[#allocation2 + $0x50] sm:$0xff]
        %v2257 = vld [vmem:[#allocation2 + $0x58] sm:$0xff]
        %v2258 = vld [vmem:[#allocation2 + $0x60] sm:$0xff]
        %v2259 = vld [vmem:[#allocation2 + $0x68] sm:$0xff]
        %v2260 = vld [vmem:[#allocation2 + $0x70] sm:$0xff]
        %v2261 = vld [vmem:[#allocation2 + $0x78] sm:$0xff]
        %v2262 = vld [vmem:[#allocation2 + $0x80] sm:$0xff]
        %v2263 = vld [vmem:[#allocation2 + $0x88] sm:$0xff]
        %v2264 = vld [vmem:[#allocation2 + $0x90] sm:$0xff]
        %v2265 = vld [vmem:[#allocation2 + $0x98] sm:$0xff]
        %v2266 = vld [vmem:[#allocation2 + $0xa0] sm:$0xff]
        %v2267 = vld [vmem:[#allocation2 + $0xa8] sm:$0xff]
        %v2268 = vld [vmem:[#allocation2 + $0xb0] sm:$0xff]
        %v2269 = vld [vmem:[#allocation2 + $0xb8] sm:$0xff]
        %v2270 = vld [vmem:[#allocation2 + $0xc0] sm:$0xff]
        %v2271 = vld [vmem:[#allocation2 + $0xc8] sm:$0xff]
        %v2272 = vld [vmem:[#allocation2 + $0xd0] sm:$0xff]
        %v2273 = vld [vmem:[#allocation2 + $0xd8] sm:$0xff]
        %v2274 = vld [vmem:[#allocation2 + $0xe0] sm:$0xff]
        %v2275 = vld [vmem:[#allocation2 + $0xe8] sm:$0xff]
        %v2276 = vld [vmem:[#allocation2 + $0xf0] sm:$0xff]
        %v2277 = vld [vmem:[#allocation2 + $0xf8] sm:$0xff]
        %v2278 = vld [vmem:[%s389] sm:$0xff]
        %v2279 = vld [vmem:[%s389 + $0x8] sm:$0xff]
        %v2280 = vld [vmem:[%s389 + $0x10] sm:$0xff]
        %v2281 = vld [vmem:[%s389 + $0x18] sm:$0xff]
        %v2282 = vld [vmem:[%s389 + $0x20] sm:$0xff]
        %v2283 = vld [vmem:[%s389 + $0x28] sm:$0xff]
        %v2284 = vld [vmem:[%s389 + $0x30] sm:$0xff]
        %v2285 = vld [vmem:[%s389 + $0x38] sm:$0xff]
        %v2286 = vld [vmem:[%s389 + $0x40] sm:$0xff]
        %v2287 = vld [vmem:[%s389 + $0x48] sm:$0xff]
        %v2288 = vld [vmem:[%s389 + $0x50] sm:$0xff]
        %v2289 = vld [vmem:[%s389 + $0x58] sm:$0xff]
        %v2290 = vld [vmem:[%s389 + $0x60] sm:$0xff]
        %v2291 = vld [vmem:[%s389 + $0x68] sm:$0xff]
        %v2292 = vld [vmem:[%s389 + $0x70] sm:$0xff]
        %v2293 = vld [vmem:[%s389 + $0x78] sm:$0xff]
        %v2294 = vld [vmem:[%s389 + $0x80] sm:$0xff]
        %v2295 = vld [vmem:[%s389 + $0x88] sm:$0xff]
        %v2296 = vld [vmem:[%s389 + $0x90] sm:$0xff]
        %v2297 = vld [vmem:[%s389 + $0x98] sm:$0xff]
        %v2298 = vld [vmem:[%s389 + $0xa0] sm:$0xff]
        %v2299 = vld [vmem:[%s389 + $0xa8] sm:$0xff]
        %v2300 = vld [vmem:[%s389 + $0xb0] sm:$0xff]
        %v2301 = vld [vmem:[%s389 + $0xb8] sm:$0xff]
        %v2302 = vld [vmem:[%s389 + $0xc0] sm:$0xff]
        %v2303 = vld [vmem:[%s389 + $0xc8] sm:$0xff]
        %v2304 = vld [vmem:[%s389 + $0xd0] sm:$0xff]
        %v2305 = vld [vmem:[%s389 + $0xd8] sm:$0xff]
        %v2306 = vld [vmem:[%s389 + $0xe0] sm:$0xff]
        %v2307 = vld [vmem:[%s389 + $0xe8] sm:$0xff]
        %v2308 = vld [vmem:[%s389 + $0xf0] sm:$0xff]
        %v2309 = vld [vmem:[%s389 + $0xf8] sm:$0xff]
        %v2310 = vld [vmem:[%s389 + $0x100] sm:$0xff]
        %v2311 = vld [vmem:[%s389 + $0x108] sm:$0xff]
        %v2312 = vld [vmem:[%s389 + $0x110] sm:$0xff]
        %v2313 = vld [vmem:[%s389 + $0x118] sm:$0xff]
        %v2314 = vld [vmem:[%s389 + $0x120] sm:$0xff]
        %v2315 = vld [vmem:[%s389 + $0x128] sm:$0xff]
        %v2316 = vld [vmem:[%s389 + $0x130] sm:$0xff]
        %v2317 = vld [vmem:[%s389 + $0x138] sm:$0xff]
        %v2318 = vld [vmem:[%s389 + $0x140] sm:$0xff]
        %v2319 = vld [vmem:[%s389 + $0x148] sm:$0xff]
        %v2320 = vld [vmem:[%s389 + $0x150] sm:$0xff]
        %v2321 = vld [vmem:[%s389 + $0x158] sm:$0xff]
        %v2322 = vld [vmem:[%s389 + $0x160] sm:$0xff]
        %v2323 = vld [vmem:[%s389 + $0x168] sm:$0xff]
        %v2324 = vld [vmem:[%s389 + $0x170] sm:$0xff]
        %v2325 = vld [vmem:[%s389 + $0x178] sm:$0xff]
        %v2326 = vld [vmem:[%s389 + $0x180] sm:$0xff]
        %v2327 = vld [vmem:[%s389 + $0x188] sm:$0xff]
        %v2328 = vld [vmem:[%s389 + $0x190] sm:$0xff]
        %v2329 = vld [vmem:[%s389 + $0x198] sm:$0xff]
        %v2330 = vld [vmem:[%s389 + $0x1a0] sm:$0xff]
        %v2331 = vld [vmem:[%s389 + $0x1a8] sm:$0xff]
        %v2332 = vld [vmem:[%s389 + $0x1b0] sm:$0xff]
        %v2333 = vld [vmem:[%s389 + $0x1b8] sm:$0xff]
        %v2334 = vld [vmem:[%s389 + $0x1c0] sm:$0xff]
        %v2335 = vld [vmem:[%s389 + $0x1c8] sm:$0xff]
        %v2336 = vld [vmem:[%s389 + $0x1d0] sm:$0xff]
        %v2337 = vld [vmem:[%s389 + $0x1d8] sm:$0xff]
        %v2338 = vld [vmem:[%s389 + $0x1e0] sm:$0xff]
        %v2339 = vld [vmem:[%s389 + $0x1e8] sm:$0xff]
        %v2340 = vld [vmem:[%s389 + $0x1f0] sm:$0xff]
        %v2341 = vld [vmem:[%s389 + $0x1f8] sm:$0xff]
        %v2342 = vld [vmem:[%s399] sm:$0xf]
        %v2344 = vperm.slane %v2342, 0
        %v2345 = vperm.slane %v2342, 1
        %v2346 = vperm.slane %v2342, 2
        %v2347 = vperm.slane %v2342, 3
        %v2384 = vunpack.c.l.b16 %v2246
        %v2385 = vunpack.c.h.b16 %v2246
        %v2386 = vunpack.c.l.b16 %v2247
        %v2387 = vunpack.c.h.b16 %v2247
        %v2388 = vunpack.c.l.b16 %v2248
        %v2389 = vunpack.c.h.b16 %v2248
        %v2390 = vunpack.c.l.b16 %v2249
        %v2391 = vunpack.c.h.b16 %v2249
        %v2392 = vunpack.c.l.b16 %v2250
        %v2393 = vunpack.c.h.b16 %v2250
        %v2394 = vunpack.c.l.b16 %v2251
        %v2395 = vunpack.c.h.b16 %v2251
        %v2396 = vunpack.c.l.b16 %v2252
        %v2397 = vunpack.c.h.b16 %v2252
        %v2398 = vunpack.c.l.b16 %v2253
        %v2399 = vunpack.c.h.b16 %v2253
        %v2400 = vunpack.c.l.b16 %v2254
        %v2401 = vunpack.c.h.b16 %v2254
        %v2402 = vunpack.c.l.b16 %v2255
        %v2403 = vunpack.c.h.b16 %v2255
        %v2404 = vunpack.c.l.b16 %v2256
        %v2405 = vunpack.c.h.b16 %v2256
        %v2406 = vunpack.c.l.b16 %v2257
        %v2407 = vunpack.c.h.b16 %v2257
        %v2408 = vunpack.c.l.b16 %v2258
        %v2409 = vunpack.c.h.b16 %v2258
        %v2410 = vunpack.c.l.b16 %v2259
        %v2411 = vunpack.c.h.b16 %v2259
        %v2412 = vunpack.c.l.b16 %v2260
        %v2413 = vunpack.c.h.b16 %v2260
        %v2414 = vunpack.c.l.b16 %v2261
        %v2415 = vunpack.c.h.b16 %v2261
        %v2416 = vunpack.c.l.b16 %v2262
        %v2417 = vunpack.c.h.b16 %v2262
        %v2418 = vunpack.c.l.b16 %v2263
        %v2419 = vunpack.c.h.b16 %v2263
        %v2420 = vunpack.c.l.b16 %v2264
        %v2421 = vunpack.c.h.b16 %v2264
        %v2422 = vunpack.c.l.b16 %v2265
        %v2423 = vunpack.c.h.b16 %v2265
        %v2424 = vunpack.c.l.b16 %v2266
        %v2425 = vunpack.c.h.b16 %v2266
        %v2426 = vunpack.c.l.b16 %v2267
        %v2427 = vunpack.c.h.b16 %v2267
        %v2428 = vunpack.c.l.b16 %v2268
        %v2429 = vunpack.c.h.b16 %v2268
        %v2430 = vunpack.c.l.b16 %v2269
        %v2431 = vunpack.c.h.b16 %v2269
        %v2432 = vunpack.c.l.b16 %v2270
        %v2433 = vunpack.c.h.b16 %v2270
        %v2434 = vunpack.c.l.b16 %v2271
        %v2435 = vunpack.c.h.b16 %v2271
        %v2436 = vunpack.c.l.b16 %v2272
        %v2437 = vunpack.c.h.b16 %v2272
        %v2438 = vunpack.c.l.b16 %v2273
        %v2439 = vunpack.c.h.b16 %v2273
        %v2440 = vunpack.c.l.b16 %v2274
        %v2441 = vunpack.c.h.b16 %v2274
        %v2442 = vunpack.c.l.b16 %v2275
        %v2443 = vunpack.c.h.b16 %v2275
        %v2444 = vunpack.c.l.b16 %v2276
        %v2445 = vunpack.c.h.b16 %v2276
        %v2446 = vunpack.c.l.b16 %v2277
        %v2447 = vunpack.c.h.b16 %v2277
        %v2448 = vpack.c.b16 %v2386, %v2384
        %v2449 = vpack.c.b16 %v2387, %v2385
        %v2450 = vpack.c.b16 %v2390, %v2388
        %v2451 = vpack.c.b16 %v2391, %v2389
        %v2452 = vpack.c.b16 %v2394, %v2392
        %v2453 = vpack.c.b16 %v2395, %v2393
        %v2454 = vpack.c.b16 %v2398, %v2396
        %v2455 = vpack.c.b16 %v2399, %v2397
        %v2456 = vpack.c.b16 %v2402, %v2400
        %v2457 = vpack.c.b16 %v2403, %v2401
        %v2458 = vpack.c.b16 %v2406, %v2404
        %v2459 = vpack.c.b16 %v2407, %v2405
        %v2460 = vpack.c.b16 %v2410, %v2408
        %v2461 = vpack.c.b16 %v2411, %v2409
        %v2462 = vpack.c.b16 %v2414, %v2412
        %v2463 = vpack.c.b16 %v2415, %v2413
        %v2464 = vpack.c.b16 %v2418, %v2416
        %v2465 = vpack.c.b16 %v2419, %v2417
        %v2466 = vpack.c.b16 %v2422, %v2420
        %v2467 = vpack.c.b16 %v2423, %v2421
        %v2468 = vpack.c.b16 %v2426, %v2424
        %v2469 = vpack.c.b16 %v2427, %v2425
        %v2470 = vpack.c.b16 %v2430, %v2428
        %v2471 = vpack.c.b16 %v2431, %v2429
        %v2472 = vpack.c.b16 %v2434, %v2432
        %v2473 = vpack.c.b16 %v2435, %v2433
        %v2474 = vpack.c.b16 %v2438, %v2436
        %v2475 = vpack.c.b16 %v2439, %v2437
        %v2476 = vpack.c.b16 %v2442, %v2440
        %v2477 = vpack.c.b16 %v2443, %v2441
        %v2478 = vpack.c.b16 %v2446, %v2444
        %v2479 = vpack.c.b16 %v2447, %v2445
        %v2576 = vunpack.c.l.b16 %v2278
        %v2577 = vunpack.c.h.b16 %v2278
        %v2578 = vunpack.c.l.b16 %v2279
        %v2579 = vunpack.c.h.b16 %v2279
        %v2580 = vunpack.c.l.b16 %v2280
        %v2581 = vunpack.c.h.b16 %v2280
        %v2582 = vunpack.c.l.b16 %v2281
        %v2583 = vunpack.c.h.b16 %v2281
        %v2584 = vunpack.c.l.b16 %v2282
        %v2585 = vunpack.c.h.b16 %v2282
        %v2586 = vunpack.c.l.b16 %v2283
        %v2587 = vunpack.c.h.b16 %v2283
        %v2588 = vunpack.c.l.b16 %v2284
        %v2589 = vunpack.c.h.b16 %v2284
        %v2590 = vunpack.c.l.b16 %v2285
        %v2591 = vunpack.c.h.b16 %v2285
        %v2592 = vunpack.c.l.b16 %v2286
        %v2593 = vunpack.c.h.b16 %v2286
        %v2594 = vunpack.c.l.b16 %v2287
        %v2595 = vunpack.c.h.b16 %v2287
        %v2596 = vunpack.c.l.b16 %v2288
        %v2597 = vunpack.c.h.b16 %v2288
        %v2598 = vunpack.c.l.b16 %v2289
        %v2599 = vunpack.c.h.b16 %v2289
        %v2600 = vunpack.c.l.b16 %v2290
        %v2601 = vunpack.c.h.b16 %v2290
        %v2602 = vunpack.c.l.b16 %v2291
        %v2603 = vunpack.c.h.b16 %v2291
        %v2604 = vunpack.c.l.b16 %v2292
        %v2605 = vunpack.c.h.b16 %v2292
        %v2606 = vunpack.c.l.b16 %v2293
        %v2607 = vunpack.c.h.b16 %v2293
        %v2608 = vunpack.c.l.b16 %v2294
        %v2609 = vunpack.c.h.b16 %v2294
        %v2610 = vunpack.c.l.b16 %v2295
        %v2611 = vunpack.c.h.b16 %v2295
        %v2612 = vunpack.c.l.b16 %v2296
        %v2613 = vunpack.c.h.b16 %v2296
        %v2614 = vunpack.c.l.b16 %v2297
        %v2615 = vunpack.c.h.b16 %v2297
        %v2616 = vunpack.c.l.b16 %v2298
        %v2617 = vunpack.c.h.b16 %v2298
        %v2618 = vunpack.c.l.b16 %v2299
        %v2619 = vunpack.c.h.b16 %v2299
        %v2620 = vunpack.c.l.b16 %v2300
        %v2621 = vunpack.c.h.b16 %v2300
        %v2622 = vunpack.c.l.b16 %v2301
        %v2623 = vunpack.c.h.b16 %v2301
        %v2624 = vunpack.c.l.b16 %v2302
        %v2625 = vunpack.c.h.b16 %v2302
        %v2626 = vunpack.c.l.b16 %v2303
        %v2627 = vunpack.c.h.b16 %v2303
        %v2628 = vunpack.c.l.b16 %v2304
        %v2629 = vunpack.c.h.b16 %v2304
        %v2630 = vunpack.c.l.b16 %v2305
        %v2631 = vunpack.c.h.b16 %v2305
        %v2632 = vunpack.c.l.b16 %v2306
        %v2633 = vunpack.c.h.b16 %v2306
        %v2634 = vunpack.c.l.b16 %v2307
        %v2635 = vunpack.c.h.b16 %v2307
        %v2636 = vunpack.c.l.b16 %v2308
        %v2637 = vunpack.c.h.b16 %v2308
        %v2638 = vunpack.c.l.b16 %v2309
        %v2639 = vunpack.c.h.b16 %v2309
        %v2640 = vunpack.c.l.b16 %v2310
        %v2641 = vunpack.c.h.b16 %v2310
        %v2642 = vunpack.c.l.b16 %v2311
        %v2643 = vunpack.c.h.b16 %v2311
        %v2644 = vunpack.c.l.b16 %v2312
        %v2645 = vunpack.c.h.b16 %v2312
        %v2646 = vunpack.c.l.b16 %v2313
        %v2647 = vunpack.c.h.b16 %v2313
        %v2648 = vunpack.c.l.b16 %v2314
        %v2649 = vunpack.c.h.b16 %v2314
        %v2650 = vunpack.c.l.b16 %v2315
        %v2651 = vunpack.c.h.b16 %v2315
        %v2652 = vunpack.c.l.b16 %v2316
        %v2653 = vunpack.c.h.b16 %v2316
        %v2654 = vunpack.c.l.b16 %v2317
        %v2655 = vunpack.c.h.b16 %v2317
        %v2656 = vunpack.c.l.b16 %v2318
        %v2657 = vunpack.c.h.b16 %v2318
        %v2658 = vunpack.c.l.b16 %v2319
        %v2659 = vunpack.c.h.b16 %v2319
        %v2660 = vunpack.c.l.b16 %v2320
        %v2661 = vunpack.c.h.b16 %v2320
        %v2662 = vunpack.c.l.b16 %v2321
        %v2663 = vunpack.c.h.b16 %v2321
        %v2664 = vunpack.c.l.b16 %v2322
        %v2665 = vunpack.c.h.b16 %v2322
        %v2666 = vunpack.c.l.b16 %v2323
        %v2667 = vunpack.c.h.b16 %v2323
        %v2668 = vunpack.c.l.b16 %v2324
        %v2669 = vunpack.c.h.b16 %v2324
        %v2670 = vunpack.c.l.b16 %v2325
        %v2671 = vunpack.c.h.b16 %v2325
        %v2672 = vunpack.c.l.b16 %v2326
        %v2673 = vunpack.c.h.b16 %v2326
        %v2674 = vunpack.c.l.b16 %v2327
        %v2675 = vunpack.c.h.b16 %v2327
        %v2676 = vunpack.c.l.b16 %v2328
        %v2677 = vunpack.c.h.b16 %v2328
        %v2678 = vunpack.c.l.b16 %v2329
        %v2679 = vunpack.c.h.b16 %v2329
        %v2680 = vunpack.c.l.b16 %v2330
        %v2681 = vunpack.c.h.b16 %v2330
        %v2682 = vunpack.c.l.b16 %v2331
        %v2683 = vunpack.c.h.b16 %v2331
        %v2684 = vunpack.c.l.b16 %v2332
        %v2685 = vunpack.c.h.b16 %v2332
        %v2686 = vunpack.c.l.b16 %v2333
        %v2687 = vunpack.c.h.b16 %v2333
        %v2688 = vunpack.c.l.b16 %v2334
        %v2689 = vunpack.c.h.b16 %v2334
        %v2690 = vunpack.c.l.b16 %v2335
        %v2691 = vunpack.c.h.b16 %v2335
        %v2692 = vunpack.c.l.b16 %v2336
        %v2693 = vunpack.c.h.b16 %v2336
        %v2694 = vunpack.c.l.b16 %v2337
        %v2695 = vunpack.c.h.b16 %v2337
        %v2696 = vunpack.c.l.b16 %v2338
        %v2697 = vunpack.c.h.b16 %v2338
        %v2698 = vunpack.c.l.b16 %v2339
        %v2699 = vunpack.c.h.b16 %v2339
        %v2700 = vunpack.c.l.b16 %v2340
        %v2701 = vunpack.c.h.b16 %v2340
        %v2702 = vunpack.c.l.b16 %v2341
        %v2703 = vunpack.c.h.b16 %v2341
        %v2704 = vpack.c.b16 %v2580, %v2576
        %v2705 = vpack.c.b16 %v2581, %v2577
        %v2706 = vpack.c.b16 %v2582, %v2578
        %v2707 = vpack.c.b16 %v2583, %v2579
        %v2708 = vpack.c.b16 %v2588, %v2584
        %v2709 = vpack.c.b16 %v2589, %v2585
        %v2710 = vpack.c.b16 %v2590, %v2586
        %v2711 = vpack.c.b16 %v2591, %v2587
        %v2712 = vpack.c.b16 %v2596, %v2592
        %v2713 = vpack.c.b16 %v2597, %v2593
        %v2714 = vpack.c.b16 %v2598, %v2594
        %v2715 = vpack.c.b16 %v2599, %v2595
        %v2716 = vpack.c.b16 %v2604, %v2600
        %v2717 = vpack.c.b16 %v2605, %v2601
        %v2718 = vpack.c.b16 %v2606, %v2602
        %v2719 = vpack.c.b16 %v2607, %v2603
        %v2720 = vpack.c.b16 %v2612, %v2608
        %v2721 = vpack.c.b16 %v2613, %v2609
        %v2722 = vpack.c.b16 %v2614, %v2610
        %v2723 = vpack.c.b16 %v2615, %v2611
        %v2724 = vpack.c.b16 %v2620, %v2616
        %v2725 = vpack.c.b16 %v2621, %v2617
        %v2726 = vpack.c.b16 %v2622, %v2618
        %v2727 = vpack.c.b16 %v2623, %v2619
        %v2728 = vpack.c.b16 %v2628, %v2624
        %v2729 = vpack.c.b16 %v2629, %v2625
        %v2730 = vpack.c.b16 %v2630, %v2626
        %v2731 = vpack.c.b16 %v2631, %v2627
        %v2732 = vpack.c.b16 %v2636, %v2632
        %v2733 = vpack.c.b16 %v2637, %v2633
        %v2734 = vpack.c.b16 %v2638, %v2634
        %v2735 = vpack.c.b16 %v2639, %v2635
        %v2736 = vpack.c.b16 %v2644, %v2640
        %v2737 = vpack.c.b16 %v2645, %v2641
        %v2738 = vpack.c.b16 %v2646, %v2642
        %v2739 = vpack.c.b16 %v2647, %v2643
        %v2740 = vpack.c.b16 %v2652, %v2648
        %v2741 = vpack.c.b16 %v2653, %v2649
        %v2742 = vpack.c.b16 %v2654, %v2650
        %v2743 = vpack.c.b16 %v2655, %v2651
        %v2744 = vpack.c.b16 %v2660, %v2656
        %v2745 = vpack.c.b16 %v2661, %v2657
        %v2746 = vpack.c.b16 %v2662, %v2658
        %v2747 = vpack.c.b16 %v2663, %v2659
        %v2748 = vpack.c.b16 %v2668, %v2664
        %v2749 = vpack.c.b16 %v2669, %v2665
        %v2750 = vpack.c.b16 %v2670, %v2666
        %v2751 = vpack.c.b16 %v2671, %v2667
        %v2752 = vpack.c.b16 %v2676, %v2672
        %v2753 = vpack.c.b16 %v2677, %v2673
        %v2754 = vpack.c.b16 %v2678, %v2674
        %v2755 = vpack.c.b16 %v2679, %v2675
        %v2756 = vpack.c.b16 %v2684, %v2680
        %v2757 = vpack.c.b16 %v2685, %v2681
        %v2758 = vpack.c.b16 %v2686, %v2682
        %v2759 = vpack.c.b16 %v2687, %v2683
        %v2760 = vpack.c.b16 %v2692, %v2688
        %v2761 = vpack.c.b16 %v2693, %v2689
        %v2762 = vpack.c.b16 %v2694, %v2690
        %v2763 = vpack.c.b16 %v2695, %v2691
        %v2764 = vpack.c.b16 %v2700, %v2696
        %v2765 = vpack.c.b16 %v2701, %v2697
        %v2766 = vpack.c.b16 %v2702, %v2698
        %v2767 = vpack.c.b16 %v2703, %v2699
        %2832 = vmatpush.bf16.msra.mxu0 %v2732
        %2833 = vmatpush.bf16.msra.mxu0 %v2728
        %2834 = vmatpush.bf16.msra.mxu0 %v2724
        %2835 = vmatpush.bf16.msra.mxu0 %v2720
        %2836 = vmatpush.bf16.msra.mxu0 %v2716
        %2837 = vmatpush.bf16.msra.mxu0 %v2712
        %2838 = vmatpush.bf16.msra.mxu0 %v2708
        %2839 = vmatpush.bf16.msra.mxu0 %v2704
        %2840 = vmatmul.bf16.gmra.mxu0 %v2448
        %v2841 = vpop.f32.mrf.mxu0
        %v2842 = vadd.f32 %v2344, %v2841
        %v2843 = vpop.f32.mrf.mxu0
        %v2844 = vadd.f32 %v2344, %v2843
        %2845 = vmatmul.bf16.gmra.mxu0 %v2450
        %v2846 = vpop.f32.mrf.mxu0
        %v2847 = vadd.f32 %v2344, %v2846
        %v2848 = vpop.f32.mrf.mxu0
        %v2849 = vadd.f32 %v2344, %v2848
        %2850 = vmatmul.bf16.gmra.mxu0 %v2452
        %v2851 = vpop.f32.mrf.mxu0
        %v2852 = vadd.f32 %v2344, %v2851
        %v2853 = vpop.f32.mrf.mxu0
        %v2854 = vadd.f32 %v2344, %v2853
        %2855 = vmatmul.bf16.gmra.mxu0 %v2454
        %v2856 = vpop.f32.mrf.mxu0
        %v2857 = vadd.f32 %v2344, %v2856
        %v2858 = vpop.f32.mrf.mxu0
        %v2859 = vadd.f32 %v2344, %v2858
        %2860 = vmatmul.bf16.gmra.mxu0 %v2456
        %v2861 = vpop.f32.mrf.mxu0
        %v2862 = vadd.f32 %v2344, %v2861
        %v2863 = vpop.f32.mrf.mxu0
        %v2864 = vadd.f32 %v2344, %v2863
        %2865 = vmatmul.bf16.gmra.mxu0 %v2458
        %v2866 = vpop.f32.mrf.mxu0
        %v2867 = vadd.f32 %v2344, %v2866
        %v2868 = vpop.f32.mrf.mxu0
        %v2869 = vadd.f32 %v2344, %v2868
        %2870 = vmatmul.bf16.gmra.mxu0 %v2460
        %v2871 = vpop.f32.mrf.mxu0
        %v2872 = vadd.f32 %v2344, %v2871
        %v2873 = vpop.f32.mrf.mxu0
        %v2874 = vadd.f32 %v2344, %v2873
        %2875 = vmatmul.bf16.gmra.mxu0 %v2462
        %v2876 = vpop.f32.mrf.mxu0
        %v2877 = vadd.f32 %v2344, %v2876
        %v2878 = vpop.f32.mrf.mxu0
        %v2879 = vadd.f32 %v2344, %v2878
        %2880 = vmatmul.bf16.gmra.mxu0 %v2464
        %v2881 = vpop.f32.mrf.mxu0
        %v2882 = vadd.f32 %v2344, %v2881
        %v2883 = vpop.f32.mrf.mxu0
        %v2884 = vadd.f32 %v2344, %v2883
        %2885 = vmatmul.bf16.gmra.mxu0 %v2466
        %v2886 = vpop.f32.mrf.mxu0
        %v2887 = vadd.f32 %v2344, %v2886
        %v2888 = vpop.f32.mrf.mxu0
        %v2889 = vadd.f32 %v2344, %v2888
        %2890 = vmatmul.bf16.gmra.mxu0 %v2468
        %v2891 = vpop.f32.mrf.mxu0
        %v2892 = vadd.f32 %v2344, %v2891
        %v2893 = vpop.f32.mrf.mxu0
        %v2894 = vadd.f32 %v2344, %v2893
        %2895 = vmatmul.bf16.gmra.mxu0 %v2470
        %v2896 = vpop.f32.mrf.mxu0
        %v2897 = vadd.f32 %v2344, %v2896
        %v2898 = vpop.f32.mrf.mxu0
        %v2899 = vadd.f32 %v2344, %v2898
        %2900 = vmatmul.bf16.gmra.mxu0 %v2472
        %v2901 = vpop.f32.mrf.mxu0
        %v2902 = vadd.f32 %v2344, %v2901
        %v2903 = vpop.f32.mrf.mxu0
        %v2904 = vadd.f32 %v2344, %v2903
        %2905 = vmatmul.bf16.gmra.mxu0 %v2474
        %v2906 = vpop.f32.mrf.mxu0
        %v2907 = vadd.f32 %v2344, %v2906
        %v2908 = vpop.f32.mrf.mxu0
        %v2909 = vadd.f32 %v2344, %v2908
        %2910 = vmatmul.bf16.gmra.mxu0 %v2476
        %v2911 = vpop.f32.mrf.mxu0
        %v2912 = vadd.f32 %v2344, %v2911
        %v2913 = vpop.f32.mrf.mxu0
        %v2914 = vadd.f32 %v2344, %v2913
        %2915 = vmatmul.bf16.gmra.mxu0 %v2478
        %v2916 = vpop.f32.mrf.mxu0
        %v2917 = vadd.f32 %v2344, %v2916
        %v2918 = vpop.f32.mrf.mxu0
        %v2919 = vadd.f32 %v2344, %v2918
        %2920 = vdwg.mxu0
        %2921 = vmatpush.bf16.msra.mxu0 %v2764
        %2922 = vmatpush.bf16.msra.mxu0 %v2760
        %2923 = vmatpush.bf16.msra.mxu0 %v2756
        %2924 = vmatpush.bf16.msra.mxu0 %v2752
        %2925 = vmatpush.bf16.msra.mxu0 %v2748
        %2926 = vmatpush.bf16.msra.mxu0 %v2744
        %2927 = vmatpush.bf16.msra.mxu0 %v2740
        %2928 = vmatpush.bf16.msra.mxu0 %v2736
        %2929 = vmatmul.bf16.gmra.mxu0 %v2449
        %v2930 = vpop.f32.mrf.mxu0
        %v2931 = vadd.f32 %v2842, %v2930
        %v2932 = vpop.f32.mrf.mxu0
        %v2933 = vadd.f32 %v2844, %v2932
        %2934 = vmatmul.bf16.gmra.mxu0 %v2451
        %v2935 = vpop.f32.mrf.mxu0
        %v2936 = vadd.f32 %v2847, %v2935
        %v2937 = vpop.f32.mrf.mxu0
        %v2938 = vadd.f32 %v2849, %v2937
        %2939 = vmatmul.bf16.gmra.mxu0 %v2453
        %v2940 = vpop.f32.mrf.mxu0
        %v2941 = vadd.f32 %v2852, %v2940
        %v2942 = vpop.f32.mrf.mxu0
        %v2943 = vadd.f32 %v2854, %v2942
        %2944 = vmatmul.bf16.gmra.mxu0 %v2455
        %v2945 = vpop.f32.mrf.mxu0
        %v2946 = vadd.f32 %v2857, %v2945
        %v2947 = vpop.f32.mrf.mxu0
        %v2948 = vadd.f32 %v2859, %v2947
        %2949 = vmatmul.bf16.gmra.mxu0 %v2457
        %v2950 = vpop.f32.mrf.mxu0
        %v2951 = vadd.f32 %v2862, %v2950
        %v2952 = vpop.f32.mrf.mxu0
        %v2953 = vadd.f32 %v2864, %v2952
        %2954 = vmatmul.bf16.gmra.mxu0 %v2459
        %v2955 = vpop.f32.mrf.mxu0
        %v2956 = vadd.f32 %v2867, %v2955
        %v2957 = vpop.f32.mrf.mxu0
        %v2958 = vadd.f32 %v2869, %v2957
        %2959 = vmatmul.bf16.gmra.mxu0 %v2461
        %v2960 = vpop.f32.mrf.mxu0
        %v2961 = vadd.f32 %v2872, %v2960
        %v2962 = vpop.f32.mrf.mxu0
        %v2963 = vadd.f32 %v2874, %v2962
        %2964 = vmatmul.bf16.gmra.mxu0 %v2463
        %v2965 = vpop.f32.mrf.mxu0
        %v2966 = vadd.f32 %v2877, %v2965
        %v2967 = vpop.f32.mrf.mxu0
        %v2968 = vadd.f32 %v2879, %v2967
        %2969 = vmatmul.bf16.gmra.mxu0 %v2465
        %v2970 = vpop.f32.mrf.mxu0
        %v2971 = vadd.f32 %v2882, %v2970
        %v2972 = vpop.f32.mrf.mxu0
        %v2973 = vadd.f32 %v2884, %v2972
        %2974 = vmatmul.bf16.gmra.mxu0 %v2467
        %v2975 = vpop.f32.mrf.mxu0
        %v2976 = vadd.f32 %v2887, %v2975
        %v2977 = vpop.f32.mrf.mxu0
        %v2978 = vadd.f32 %v2889, %v2977
        %2979 = vmatmul.bf16.gmra.mxu0 %v2469
        %v2980 = vpop.f32.mrf.mxu0
        %v2981 = vadd.f32 %v2892, %v2980
        %v2982 = vpop.f32.mrf.mxu0
        %v2983 = vadd.f32 %v2894, %v2982
        %2984 = vmatmul.bf16.gmra.mxu0 %v2471
        %v2985 = vpop.f32.mrf.mxu0
        %v2986 = vadd.f32 %v2897, %v2985
        %v2987 = vpop.f32.mrf.mxu0
        %v2988 = vadd.f32 %v2899, %v2987
        %2989 = vmatmul.bf16.gmra.mxu0 %v2473
        %v2990 = vpop.f32.mrf.mxu0
        %v2991 = vadd.f32 %v2902, %v2990
        %v2992 = vpop.f32.mrf.mxu0
        %v2993 = vadd.f32 %v2904, %v2992
        %2994 = vmatmul.bf16.gmra.mxu0 %v2475
        %v2995 = vpop.f32.mrf.mxu0
        %v2996 = vadd.f32 %v2907, %v2995
        %v2997 = vpop.f32.mrf.mxu0
        %v2998 = vadd.f32 %v2909, %v2997
        %2999 = vmatmul.bf16.gmra.mxu0 %v2477
        %v3000 = vpop.f32.mrf.mxu0
        %v3001 = vadd.f32 %v2912, %v3000
        %v3002 = vpop.f32.mrf.mxu0
        %v3003 = vadd.f32 %v2914, %v3002
        %3004 = vmatmul.bf16.gmra.mxu0 %v2479
        %v3005 = vpop.f32.mrf.mxu0
        %v3006 = vadd.f32 %v2917, %v3005
        %v3007 = vpop.f32.mrf.mxu0
        %v3008 = vadd.f32 %v2919, %v3007
        %3009 = vdwg.mxu0
        %3010 = vmatpush.bf16.msra.mxu0 %v2733
        %3011 = vmatpush.bf16.msra.mxu0 %v2729
        %3012 = vmatpush.bf16.msra.mxu0 %v2725
        %3013 = vmatpush.bf16.msra.mxu0 %v2721
        %3014 = vmatpush.bf16.msra.mxu0 %v2717
        %3015 = vmatpush.bf16.msra.mxu0 %v2713
        %3016 = vmatpush.bf16.msra.mxu0 %v2709
        %3017 = vmatpush.bf16.msra.mxu0 %v2705
        %3018 = vmatmul.bf16.gmra.mxu0 %v2448
        %v3019 = vpop.f32.mrf.mxu0
        %v3020 = vadd.f32 %v2345, %v3019
        %v3021 = vpop.f32.mrf.mxu0
        %v3022 = vadd.f32 %v2345, %v3021
        %3023 = vmatmul.bf16.gmra.mxu0 %v2450
        %v3024 = vpop.f32.mrf.mxu0
        %v3025 = vadd.f32 %v2345, %v3024
        %v3026 = vpop.f32.mrf.mxu0
        %v3027 = vadd.f32 %v2345, %v3026
        %3028 = vmatmul.bf16.gmra.mxu0 %v2452
        %v3029 = vpop.f32.mrf.mxu0
        %v3030 = vadd.f32 %v2345, %v3029
        %v3031 = vpop.f32.mrf.mxu0
        %v3032 = vadd.f32 %v2345, %v3031
        %3033 = vmatmul.bf16.gmra.mxu0 %v2454
        %v3034 = vpop.f32.mrf.mxu0
        %v3035 = vadd.f32 %v2345, %v3034
        %v3036 = vpop.f32.mrf.mxu0
        %v3037 = vadd.f32 %v2345, %v3036
        %3038 = vmatmul.bf16.gmra.mxu0 %v2456
        %v3039 = vpop.f32.mrf.mxu0
        %v3040 = vadd.f32 %v2345, %v3039
        %v3041 = vpop.f32.mrf.mxu0
        %v3042 = vadd.f32 %v2345, %v3041
        %3043 = vmatmul.bf16.gmra.mxu0 %v2458
        %v3044 = vpop.f32.mrf.mxu0
        %v3045 = vadd.f32 %v2345, %v3044
        %v3046 = vpop.f32.mrf.mxu0
        %v3047 = vadd.f32 %v2345, %v3046
        %3048 = vmatmul.bf16.gmra.mxu0 %v2460
        %v3049 = vpop.f32.mrf.mxu0
        %v3050 = vadd.f32 %v2345, %v3049
        %v3051 = vpop.f32.mrf.mxu0
        %v3052 = vadd.f32 %v2345, %v3051
        %3053 = vmatmul.bf16.gmra.mxu0 %v2462
        %v3054 = vpop.f32.mrf.mxu0
        %v3055 = vadd.f32 %v2345, %v3054
        %v3056 = vpop.f32.mrf.mxu0
        %v3057 = vadd.f32 %v2345, %v3056
        %3058 = vmatmul.bf16.gmra.mxu0 %v2464
        %v3059 = vpop.f32.mrf.mxu0
        %v3060 = vadd.f32 %v2345, %v3059
        %v3061 = vpop.f32.mrf.mxu0
        %v3062 = vadd.f32 %v2345, %v3061
        %3063 = vmatmul.bf16.gmra.mxu0 %v2466
        %v3064 = vpop.f32.mrf.mxu0
        %v3065 = vadd.f32 %v2345, %v3064
        %v3066 = vpop.f32.mrf.mxu0
        %v3067 = vadd.f32 %v2345, %v3066
        %3068 = vmatmul.bf16.gmra.mxu0 %v2468
        %v3069 = vpop.f32.mrf.mxu0
        %v3070 = vadd.f32 %v2345, %v3069
        %v3071 = vpop.f32.mrf.mxu0
        %v3072 = vadd.f32 %v2345, %v3071
        %3073 = vmatmul.bf16.gmra.mxu0 %v2470
        %v3074 = vpop.f32.mrf.mxu0
        %v3075 = vadd.f32 %v2345, %v3074
        %v3076 = vpop.f32.mrf.mxu0
        %v3077 = vadd.f32 %v2345, %v3076
        %3078 = vmatmul.bf16.gmra.mxu0 %v2472
        %v3079 = vpop.f32.mrf.mxu0
        %v3080 = vadd.f32 %v2345, %v3079
        %v3081 = vpop.f32.mrf.mxu0
        %v3082 = vadd.f32 %v2345, %v3081
        %3083 = vmatmul.bf16.gmra.mxu0 %v2474
        %v3084 = vpop.f32.mrf.mxu0
        %v3085 = vadd.f32 %v2345, %v3084
        %v3086 = vpop.f32.mrf.mxu0
        %v3087 = vadd.f32 %v2345, %v3086
        %3088 = vmatmul.bf16.gmra.mxu0 %v2476
        %v3089 = vpop.f32.mrf.mxu0
        %v3090 = vadd.f32 %v2345, %v3089
        %v3091 = vpop.f32.mrf.mxu0
        %v3092 = vadd.f32 %v2345, %v3091
        %3093 = vmatmul.bf16.gmra.mxu0 %v2478
        %v3094 = vpop.f32.mrf.mxu0
        %v3095 = vadd.f32 %v2345, %v3094
        %v3096 = vpop.f32.mrf.mxu0
        %v3097 = vadd.f32 %v2345, %v3096
        %3098 = vdwg.mxu0
        %3099 = vmatpush.bf16.msra.mxu0 %v2765
        %3100 = vmatpush.bf16.msra.mxu0 %v2761
        %3101 = vmatpush.bf16.msra.mxu0 %v2757
        %3102 = vmatpush.bf16.msra.mxu0 %v2753
        %3103 = vmatpush.bf16.msra.mxu0 %v2749
        %3104 = vmatpush.bf16.msra.mxu0 %v2745
        %3105 = vmatpush.bf16.msra.mxu0 %v2741
        %3106 = vmatpush.bf16.msra.mxu0 %v2737
        %3107 = vmatmul.bf16.gmra.mxu0 %v2449
        %v3108 = vpop.f32.mrf.mxu0
        %v3109 = vadd.f32 %v3020, %v3108
        %v3110 = vpop.f32.mrf.mxu0
        %v3111 = vadd.f32 %v3022, %v3110
        %3112 = vmatmul.bf16.gmra.mxu0 %v2451
        %v3113 = vpop.f32.mrf.mxu0
        %v3114 = vadd.f32 %v3025, %v3113
        %v3115 = vpop.f32.mrf.mxu0
        %v3116 = vadd.f32 %v3027, %v3115
        %3117 = vmatmul.bf16.gmra.mxu0 %v2453
        %v3118 = vpop.f32.mrf.mxu0
        %v3119 = vadd.f32 %v3030, %v3118
        %v3120 = vpop.f32.mrf.mxu0
        %v3121 = vadd.f32 %v3032, %v3120
        %3122 = vmatmul.bf16.gmra.mxu0 %v2455
        %v3123 = vpop.f32.mrf.mxu0
        %v3124 = vadd.f32 %v3035, %v3123
        %v3125 = vpop.f32.mrf.mxu0
        %v3126 = vadd.f32 %v3037, %v3125
        %3127 = vmatmul.bf16.gmra.mxu0 %v2457
        %v3128 = vpop.f32.mrf.mxu0
        %v3129 = vadd.f32 %v3040, %v3128
        %v3130 = vpop.f32.mrf.mxu0
        %v3131 = vadd.f32 %v3042, %v3130
        %3132 = vmatmul.bf16.gmra.mxu0 %v2459
        %v3133 = vpop.f32.mrf.mxu0
        %v3134 = vadd.f32 %v3045, %v3133
        %v3135 = vpop.f32.mrf.mxu0
        %v3136 = vadd.f32 %v3047, %v3135
        %3137 = vmatmul.bf16.gmra.mxu0 %v2461
        %v3138 = vpop.f32.mrf.mxu0
        %v3139 = vadd.f32 %v3050, %v3138
        %v3140 = vpop.f32.mrf.mxu0
        %v3141 = vadd.f32 %v3052, %v3140
        %3142 = vmatmul.bf16.gmra.mxu0 %v2463
        %v3143 = vpop.f32.mrf.mxu0
        %v3144 = vadd.f32 %v3055, %v3143
        %v3145 = vpop.f32.mrf.mxu0
        %v3146 = vadd.f32 %v3057, %v3145
        %3147 = vmatmul.bf16.gmra.mxu0 %v2465
        %v3148 = vpop.f32.mrf.mxu0
        %v3149 = vadd.f32 %v3060, %v3148
        %v3150 = vpop.f32.mrf.mxu0
        %v3151 = vadd.f32 %v3062, %v3150
        %3152 = vmatmul.bf16.gmra.mxu0 %v2467
        %v3153 = vpop.f32.mrf.mxu0
        %v3154 = vadd.f32 %v3065, %v3153
        %v3155 = vpop.f32.mrf.mxu0
        %v3156 = vadd.f32 %v3067, %v3155
        %3157 = vmatmul.bf16.gmra.mxu0 %v2469
        %v3158 = vpop.f32.mrf.mxu0
        %v3159 = vadd.f32 %v3070, %v3158
        %v3160 = vpop.f32.mrf.mxu0
        %v3161 = vadd.f32 %v3072, %v3160
        %3162 = vmatmul.bf16.gmra.mxu0 %v2471
        %v3163 = vpop.f32.mrf.mxu0
        %v3164 = vadd.f32 %v3075, %v3163
        %v3165 = vpop.f32.mrf.mxu0
        %v3166 = vadd.f32 %v3077, %v3165
        %3167 = vmatmul.bf16.gmra.mxu0 %v2473
        %v3168 = vpop.f32.mrf.mxu0
        %v3169 = vadd.f32 %v3080, %v3168
        %v3170 = vpop.f32.mrf.mxu0
        %v3171 = vadd.f32 %v3082, %v3170
        %3172 = vmatmul.bf16.gmra.mxu0 %v2475
        %v3173 = vpop.f32.mrf.mxu0
        %v3174 = vadd.f32 %v3085, %v3173
        %v3175 = vpop.f32.mrf.mxu0
        %v3176 = vadd.f32 %v3087, %v3175
        %3177 = vmatmul.bf16.gmra.mxu0 %v2477
        %v3178 = vpop.f32.mrf.mxu0
        %v3179 = vadd.f32 %v3090, %v3178
        %v3180 = vpop.f32.mrf.mxu0
        %v3181 = vadd.f32 %v3092, %v3180
        %3182 = vmatmul.bf16.gmra.mxu0 %v2479
        %v3183 = vpop.f32.mrf.mxu0
        %v3184 = vadd.f32 %v3095, %v3183
        %v3185 = vpop.f32.mrf.mxu0
        %v3186 = vadd.f32 %v3097, %v3185
        %3187 = vdwg.mxu0
        %3188 = vmatpush.bf16.msra.mxu0 %v2734
        %3189 = vmatpush.bf16.msra.mxu0 %v2730
        %3190 = vmatpush.bf16.msra.mxu0 %v2726
        %3191 = vmatpush.bf16.msra.mxu0 %v2722
        %3192 = vmatpush.bf16.msra.mxu0 %v2718
        %3193 = vmatpush.bf16.msra.mxu0 %v2714
        %3194 = vmatpush.bf16.msra.mxu0 %v2710
        %3195 = vmatpush.bf16.msra.mxu0 %v2706
        %3196 = vmatmul.bf16.gmra.mxu0 %v2448
        %v3197 = vpop.f32.mrf.mxu0
        %v3198 = vadd.f32 %v2346, %v3197
        %v3199 = vpop.f32.mrf.mxu0
        %v3200 = vadd.f32 %v2346, %v3199
        %3201 = vmatmul.bf16.gmra.mxu0 %v2450
        %v3202 = vpop.f32.mrf.mxu0
        %v3203 = vadd.f32 %v2346, %v3202
        %v3204 = vpop.f32.mrf.mxu0
        %v3205 = vadd.f32 %v2346, %v3204
        %3206 = vmatmul.bf16.gmra.mxu0 %v2452
        %v3207 = vpop.f32.mrf.mxu0
        %v3208 = vadd.f32 %v2346, %v3207
        %v3209 = vpop.f32.mrf.mxu0
        %v3210 = vadd.f32 %v2346, %v3209
        %3211 = vmatmul.bf16.gmra.mxu0 %v2454
        %v3212 = vpop.f32.mrf.mxu0
        %v3213 = vadd.f32 %v2346, %v3212
        %v3214 = vpop.f32.mrf.mxu0
        %v3215 = vadd.f32 %v2346, %v3214
        %3216 = vmatmul.bf16.gmra.mxu0 %v2456
        %v3217 = vpop.f32.mrf.mxu0
        %v3218 = vadd.f32 %v2346, %v3217
        %v3219 = vpop.f32.mrf.mxu0
        %v3220 = vadd.f32 %v2346, %v3219
        %3221 = vmatmul.bf16.gmra.mxu0 %v2458
        %v3222 = vpop.f32.mrf.mxu0
        %v3223 = vadd.f32 %v2346, %v3222
        %v3224 = vpop.f32.mrf.mxu0
        %v3225 = vadd.f32 %v2346, %v3224
        %3226 = vmatmul.bf16.gmra.mxu0 %v2460
        %v3227 = vpop.f32.mrf.mxu0
        %v3228 = vadd.f32 %v2346, %v3227
        %v3229 = vpop.f32.mrf.mxu0
        %v3230 = vadd.f32 %v2346, %v3229
        %3231 = vmatmul.bf16.gmra.mxu0 %v2462
        %v3232 = vpop.f32.mrf.mxu0
        %v3233 = vadd.f32 %v2346, %v3232
        %v3234 = vpop.f32.mrf.mxu0
        %v3235 = vadd.f32 %v2346, %v3234
        %3236 = vmatmul.bf16.gmra.mxu0 %v2464
        %v3237 = vpop.f32.mrf.mxu0
        %v3238 = vadd.f32 %v2346, %v3237
        %v3239 = vpop.f32.mrf.mxu0
        %v3240 = vadd.f32 %v2346, %v3239
        %3241 = vmatmul.bf16.gmra.mxu0 %v2466
        %v3242 = vpop.f32.mrf.mxu0
        %v3243 = vadd.f32 %v2346, %v3242
        %v3244 = vpop.f32.mrf.mxu0
        %v3245 = vadd.f32 %v2346, %v3244
        %3246 = vmatmul.bf16.gmra.mxu0 %v2468
        %v3247 = vpop.f32.mrf.mxu0
        %v3248 = vadd.f32 %v2346, %v3247
        %v3249 = vpop.f32.mrf.mxu0
        %v3250 = vadd.f32 %v2346, %v3249
        %3251 = vmatmul.bf16.gmra.mxu0 %v2470
        %v3252 = vpop.f32.mrf.mxu0
        %v3253 = vadd.f32 %v2346, %v3252
        %v3254 = vpop.f32.mrf.mxu0
        %v3255 = vadd.f32 %v2346, %v3254
        %3256 = vmatmul.bf16.gmra.mxu0 %v2472
        %v3257 = vpop.f32.mrf.mxu0
        %v3258 = vadd.f32 %v2346, %v3257
        %v3259 = vpop.f32.mrf.mxu0
        %v3260 = vadd.f32 %v2346, %v3259
        %3261 = vmatmul.bf16.gmra.mxu0 %v2474
        %v3262 = vpop.f32.mrf.mxu0
        %v3263 = vadd.f32 %v2346, %v3262
        %v3264 = vpop.f32.mrf.mxu0
        %v3265 = vadd.f32 %v2346, %v3264
        %3266 = vmatmul.bf16.gmra.mxu0 %v2476
        %v3267 = vpop.f32.mrf.mxu0
        %v3268 = vadd.f32 %v2346, %v3267
        %v3269 = vpop.f32.mrf.mxu0
        %v3270 = vadd.f32 %v2346, %v3269
        %3271 = vmatmul.bf16.gmra.mxu0 %v2478
        %v3272 = vpop.f32.mrf.mxu0
        %v3273 = vadd.f32 %v2346, %v3272
        %v3274 = vpop.f32.mrf.mxu0
        %v3275 = vadd.f32 %v2346, %v3274
        %3276 = vdwg.mxu0
        %3277 = vmatpush.bf16.msra.mxu0 %v2766
        %3278 = vmatpush.bf16.msra.mxu0 %v2762
        %3279 = vmatpush.bf16.msra.mxu0 %v2758
        %3280 = vmatpush.bf16.msra.mxu0 %v2754
        %3281 = vmatpush.bf16.msra.mxu0 %v2750
        %3282 = vmatpush.bf16.msra.mxu0 %v2746
        %3283 = vmatpush.bf16.msra.mxu0 %v2742
        %3284 = vmatpush.bf16.msra.mxu0 %v2738
        %3285 = vmatmul.bf16.gmra.mxu0 %v2449
        %v3286 = vpop.f32.mrf.mxu0
        %v3287 = vadd.f32 %v3198, %v3286
        %v3288 = vpop.f32.mrf.mxu0
        %v3289 = vadd.f32 %v3200, %v3288
        %3290 = vmatmul.bf16.gmra.mxu0 %v2451
        %v3291 = vpop.f32.mrf.mxu0
        %v3292 = vadd.f32 %v3203, %v3291
        %v3293 = vpop.f32.mrf.mxu0
        %v3294 = vadd.f32 %v3205, %v3293
        %3295 = vmatmul.bf16.gmra.mxu0 %v2453
        %v3296 = vpop.f32.mrf.mxu0
        %v3297 = vadd.f32 %v3208, %v3296
        %v3298 = vpop.f32.mrf.mxu0
        %v3299 = vadd.f32 %v3210, %v3298
        %3300 = vmatmul.bf16.gmra.mxu0 %v2455
        %v3301 = vpop.f32.mrf.mxu0
        %v3302 = vadd.f32 %v3213, %v3301
        %v3303 = vpop.f32.mrf.mxu0
        %v3304 = vadd.f32 %v3215, %v3303
        %3305 = vmatmul.bf16.gmra.mxu0 %v2457
        %v3306 = vpop.f32.mrf.mxu0
        %v3307 = vadd.f32 %v3218, %v3306
        %v3308 = vpop.f32.mrf.mxu0
        %v3309 = vadd.f32 %v3220, %v3308
        %3310 = vmatmul.bf16.gmra.mxu0 %v2459
        %v3311 = vpop.f32.mrf.mxu0
        %v3312 = vadd.f32 %v3223, %v3311
        %v3313 = vpop.f32.mrf.mxu0
        %v3314 = vadd.f32 %v3225, %v3313
        %3315 = vmatmul.bf16.gmra.mxu0 %v2461
        %v3316 = vpop.f32.mrf.mxu0
        %v3317 = vadd.f32 %v3228, %v3316
        %v3318 = vpop.f32.mrf.mxu0
        %v3319 = vadd.f32 %v3230, %v3318
        %3320 = vmatmul.bf16.gmra.mxu0 %v2463
        %v3321 = vpop.f32.mrf.mxu0
        %v3322 = vadd.f32 %v3233, %v3321
        %v3323 = vpop.f32.mrf.mxu0
        %v3324 = vadd.f32 %v3235, %v3323
        %3325 = vmatmul.bf16.gmra.mxu0 %v2465
        %v3326 = vpop.f32.mrf.mxu0
        %v3327 = vadd.f32 %v3238, %v3326
        %v3328 = vpop.f32.mrf.mxu0
        %v3329 = vadd.f32 %v3240, %v3328
        %3330 = vmatmul.bf16.gmra.mxu0 %v2467
        %v3331 = vpop.f32.mrf.mxu0
        %v3332 = vadd.f32 %v3243, %v3331
        %v3333 = vpop.f32.mrf.mxu0
        %v3334 = vadd.f32 %v3245, %v3333
        %3335 = vmatmul.bf16.gmra.mxu0 %v2469
        %v3336 = vpop.f32.mrf.mxu0
        %v3337 = vadd.f32 %v3248, %v3336
        %v3338 = vpop.f32.mrf.mxu0
        %v3339 = vadd.f32 %v3250, %v3338
        %3340 = vmatmul.bf16.gmra.mxu0 %v2471
        %v3341 = vpop.f32.mrf.mxu0
        %v3342 = vadd.f32 %v3253, %v3341
        %v3343 = vpop.f32.mrf.mxu0
        %v3344 = vadd.f32 %v3255, %v3343
        %3345 = vmatmul.bf16.gmra.mxu0 %v2473
        %v3346 = vpop.f32.mrf.mxu0
        %v3347 = vadd.f32 %v3258, %v3346
        %v3348 = vpop.f32.mrf.mxu0
        %v3349 = vadd.f32 %v3260, %v3348
        %3350 = vmatmul.bf16.gmra.mxu0 %v2475
        %v3351 = vpop.f32.mrf.mxu0
        %v3352 = vadd.f32 %v3263, %v3351
        %v3353 = vpop.f32.mrf.mxu0
        %v3354 = vadd.f32 %v3265, %v3353
        %3355 = vmatmul.bf16.gmra.mxu0 %v2477
        %v3356 = vpop.f32.mrf.mxu0
        %v3357 = vadd.f32 %v3268, %v3356
        %v3358 = vpop.f32.mrf.mxu0
        %v3359 = vadd.f32 %v3270, %v3358
        %3360 = vmatmul.bf16.gmra.mxu0 %v2479
        %v3361 = vpop.f32.mrf.mxu0
        %v3362 = vadd.f32 %v3273, %v3361
        %v3363 = vpop.f32.mrf.mxu0
        %v3364 = vadd.f32 %v3275, %v3363
        %3365 = vdwg.mxu0
        %3366 = vmatpush.bf16.msra.mxu0 %v2735
        %3367 = vmatpush.bf16.msra.mxu0 %v2731
        %3368 = vmatpush.bf16.msra.mxu0 %v2727
        %3369 = vmatpush.bf16.msra.mxu0 %v2723
        %3370 = vmatpush.bf16.msra.mxu0 %v2719
        %3371 = vmatpush.bf16.msra.mxu0 %v2715
        %3372 = vmatpush.bf16.msra.mxu0 %v2711
        %3373 = vmatpush.bf16.msra.mxu0 %v2707
        %3374 = vmatmul.bf16.gmra.mxu0 %v2448
        %v3375 = vpop.f32.mrf.mxu0
        %v3376 = vadd.f32 %v2347, %v3375
        %v3377 = vpop.f32.mrf.mxu0
        %v3378 = vadd.f32 %v2347, %v3377
        %3379 = vmatmul.bf16.gmra.mxu0 %v2450
        %v3380 = vpop.f32.mrf.mxu0
        %v3381 = vadd.f32 %v2347, %v3380
        %v3382 = vpop.f32.mrf.mxu0
        %v3383 = vadd.f32 %v2347, %v3382
        %3384 = vmatmul.bf16.gmra.mxu0 %v2452
        %v3385 = vpop.f32.mrf.mxu0
        %v3386 = vadd.f32 %v2347, %v3385
        %v3387 = vpop.f32.mrf.mxu0
        %v3388 = vadd.f32 %v2347, %v3387
        %3389 = vmatmul.bf16.gmra.mxu0 %v2454
        %v3390 = vpop.f32.mrf.mxu0
        %v3391 = vadd.f32 %v2347, %v3390
        %v3392 = vpop.f32.mrf.mxu0
        %v3393 = vadd.f32 %v2347, %v3392
        %3394 = vmatmul.bf16.gmra.mxu0 %v2456
        %v3395 = vpop.f32.mrf.mxu0
        %v3396 = vadd.f32 %v2347, %v3395
        %v3397 = vpop.f32.mrf.mxu0
        %v3398 = vadd.f32 %v2347, %v3397
        %3399 = vmatmul.bf16.gmra.mxu0 %v2458
        %v3400 = vpop.f32.mrf.mxu0
        %v3401 = vadd.f32 %v2347, %v3400
        %v3402 = vpop.f32.mrf.mxu0
        %v3403 = vadd.f32 %v2347, %v3402
        %3404 = vmatmul.bf16.gmra.mxu0 %v2460
        %v3405 = vpop.f32.mrf.mxu0
        %v3406 = vadd.f32 %v2347, %v3405
        %v3407 = vpop.f32.mrf.mxu0
        %v3408 = vadd.f32 %v2347, %v3407
        %3409 = vmatmul.bf16.gmra.mxu0 %v2462
        %v3410 = vpop.f32.mrf.mxu0
        %v3411 = vadd.f32 %v2347, %v3410
        %v3412 = vpop.f32.mrf.mxu0
        %v3413 = vadd.f32 %v2347, %v3412
        %3414 = vmatmul.bf16.gmra.mxu0 %v2464
        %v3415 = vpop.f32.mrf.mxu0
        %v3416 = vadd.f32 %v2347, %v3415
        %v3417 = vpop.f32.mrf.mxu0
        %v3418 = vadd.f32 %v2347, %v3417
        %3419 = vmatmul.bf16.gmra.mxu0 %v2466
        %v3420 = vpop.f32.mrf.mxu0
        %v3421 = vadd.f32 %v2347, %v3420
        %v3422 = vpop.f32.mrf.mxu0
        %v3423 = vadd.f32 %v2347, %v3422
        %3424 = vmatmul.bf16.gmra.mxu0 %v2468
        %v3425 = vpop.f32.mrf.mxu0
        %v3426 = vadd.f32 %v2347, %v3425
        %v3427 = vpop.f32.mrf.mxu0
        %v3428 = vadd.f32 %v2347, %v3427
        %3429 = vmatmul.bf16.gmra.mxu0 %v2470
        %v3430 = vpop.f32.mrf.mxu0
        %v3431 = vadd.f32 %v2347, %v3430
        %v3432 = vpop.f32.mrf.mxu0
        %v3433 = vadd.f32 %v2347, %v3432
        %3434 = vmatmul.bf16.gmra.mxu0 %v2472
        %v3435 = vpop.f32.mrf.mxu0
        %v3436 = vadd.f32 %v2347, %v3435
        %v3437 = vpop.f32.mrf.mxu0
        %v3438 = vadd.f32 %v2347, %v3437
        %3439 = vmatmul.bf16.gmra.mxu0 %v2474
        %v3440 = vpop.f32.mrf.mxu0
        %v3441 = vadd.f32 %v2347, %v3440
        %v3442 = vpop.f32.mrf.mxu0
        %v3443 = vadd.f32 %v2347, %v3442
        %3444 = vmatmul.bf16.gmra.mxu0 %v2476
        %v3445 = vpop.f32.mrf.mxu0
        %v3446 = vadd.f32 %v2347, %v3445
        %v3447 = vpop.f32.mrf.mxu0
        %v3448 = vadd.f32 %v2347, %v3447
        %3449 = vmatmul.bf16.gmra.mxu0 %v2478
        %v3450 = vpop.f32.mrf.mxu0
        %v3451 = vadd.f32 %v2347, %v3450
        %v3452 = vpop.f32.mrf.mxu0
        %v3453 = vadd.f32 %v2347, %v3452
        %3454 = vdwg.mxu0
        %3455 = vmatpush.bf16.msra.mxu0 %v2767
        %3456 = vmatpush.bf16.msra.mxu0 %v2763
        %3457 = vmatpush.bf16.msra.mxu0 %v2759
        %3458 = vmatpush.bf16.msra.mxu0 %v2755
        %3459 = vmatpush.bf16.msra.mxu0 %v2751
        %3460 = vmatpush.bf16.msra.mxu0 %v2747
        %3461 = vmatpush.bf16.msra.mxu0 %v2743
        %3462 = vmatpush.bf16.msra.mxu0 %v2739
        %3463 = vmatmul.bf16.gmra.mxu0 %v2449
        %v3464 = vpop.f32.mrf.mxu0
        %v3465 = vadd.f32 %v3376, %v3464
        %v3466 = vpop.f32.mrf.mxu0
        %v3467 = vadd.f32 %v3378, %v3466
        %3468 = vmatmul.bf16.gmra.mxu0 %v2451
        %v3469 = vpop.f32.mrf.mxu0
        %v3470 = vadd.f32 %v3381, %v3469
        %v3471 = vpop.f32.mrf.mxu0
        %v3472 = vadd.f32 %v3383, %v3471
        %3473 = vmatmul.bf16.gmra.mxu0 %v2453
        %v3474 = vpop.f32.mrf.mxu0
        %v3475 = vadd.f32 %v3386, %v3474
        %v3476 = vpop.f32.mrf.mxu0
        %v3477 = vadd.f32 %v3388, %v3476
        %3478 = vmatmul.bf16.gmra.mxu0 %v2455
        %v3479 = vpop.f32.mrf.mxu0
        %v3480 = vadd.f32 %v3391, %v3479
        %v3481 = vpop.f32.mrf.mxu0
        %v3482 = vadd.f32 %v3393, %v3481
        %3483 = vmatmul.bf16.gmra.mxu0 %v2457
        %v3484 = vpop.f32.mrf.mxu0
        %v3485 = vadd.f32 %v3396, %v3484
        %v3486 = vpop.f32.mrf.mxu0
        %v3487 = vadd.f32 %v3398, %v3486
        %3488 = vmatmul.bf16.gmra.mxu0 %v2459
        %v3489 = vpop.f32.mrf.mxu0
        %v3490 = vadd.f32 %v3401, %v3489
        %v3491 = vpop.f32.mrf.mxu0
        %v3492 = vadd.f32 %v3403, %v3491
        %3493 = vmatmul.bf16.gmra.mxu0 %v2461
        %v3494 = vpop.f32.mrf.mxu0
        %v3495 = vadd.f32 %v3406, %v3494
        %v3496 = vpop.f32.mrf.mxu0
        %v3497 = vadd.f32 %v3408, %v3496
        %3498 = vmatmul.bf16.gmra.mxu0 %v2463
        %v3499 = vpop.f32.mrf.mxu0
        %v3500 = vadd.f32 %v3411, %v3499
        %v3501 = vpop.f32.mrf.mxu0
        %v3502 = vadd.f32 %v3413, %v3501
        %3503 = vmatmul.bf16.gmra.mxu0 %v2465
        %v3504 = vpop.f32.mrf.mxu0
        %v3505 = vadd.f32 %v3416, %v3504
        %v3506 = vpop.f32.mrf.mxu0
        %v3507 = vadd.f32 %v3418, %v3506
        %3508 = vmatmul.bf16.gmra.mxu0 %v2467
        %v3509 = vpop.f32.mrf.mxu0
        %v3510 = vadd.f32 %v3421, %v3509
        %v3511 = vpop.f32.mrf.mxu0
        %v3512 = vadd.f32 %v3423, %v3511
        %3513 = vmatmul.bf16.gmra.mxu0 %v2469
        %v3514 = vpop.f32.mrf.mxu0
        %v3515 = vadd.f32 %v3426, %v3514
        %v3516 = vpop.f32.mrf.mxu0
        %v3517 = vadd.f32 %v3428, %v3516
        %3518 = vmatmul.bf16.gmra.mxu0 %v2471
        %v3519 = vpop.f32.mrf.mxu0
        %v3520 = vadd.f32 %v3431, %v3519
        %v3521 = vpop.f32.mrf.mxu0
        %v3522 = vadd.f32 %v3433, %v3521
        %3523 = vmatmul.bf16.gmra.mxu0 %v2473
        %v3524 = vpop.f32.mrf.mxu0
        %v3525 = vadd.f32 %v3436, %v3524
        %v3526 = vpop.f32.mrf.mxu0
        %v3527 = vadd.f32 %v3438, %v3526
        %3528 = vmatmul.bf16.gmra.mxu0 %v2475
        %v3529 = vpop.f32.mrf.mxu0
        %v3530 = vadd.f32 %v3441, %v3529
        %v3531 = vpop.f32.mrf.mxu0
        %v3532 = vadd.f32 %v3443, %v3531
        %3533 = vmatmul.bf16.gmra.mxu0 %v2477
        %v3534 = vpop.f32.mrf.mxu0
        %v3535 = vadd.f32 %v3446, %v3534
        %v3536 = vpop.f32.mrf.mxu0
        %v3537 = vadd.f32 %v3448, %v3536
        %3538 = vmatmul.bf16.gmra.mxu0 %v2479
        %v3539 = vpop.f32.mrf.mxu0
        %v3540 = vadd.f32 %v3451, %v3539
        %v3541 = vpop.f32.mrf.mxu0
        %v3542 = vadd.f32 %v3453, %v3541
        %3543 = vdwg.mxu0
        %v3544 = vpack.c.bf16 %v3109, %v2931
        %v3545 = vpack.c.bf16 %v3465, %v3287
        %v3546 = vpack.c.bf16 %v3111, %v2933
        %v3547 = vpack.c.bf16 %v3467, %v3289
        %v3548 = vpack.c.bf16 %v3114, %v2936
        %v3549 = vpack.c.bf16 %v3470, %v3292
        %v3550 = vpack.c.bf16 %v3116, %v2938
        %v3551 = vpack.c.bf16 %v3472, %v3294
        %v3552 = vpack.c.bf16 %v3119, %v2941
        %v3553 = vpack.c.bf16 %v3475, %v3297
        %v3554 = vpack.c.bf16 %v3121, %v2943
        %v3555 = vpack.c.bf16 %v3477, %v3299
        %v3556 = vpack.c.bf16 %v3124, %v2946
        %v3557 = vpack.c.bf16 %v3480, %v3302
        %v3558 = vpack.c.bf16 %v3126, %v2948
        %v3559 = vpack.c.bf16 %v3482, %v3304
        %v3560 = vpack.c.bf16 %v3129, %v2951
        %v3561 = vpack.c.bf16 %v3485, %v3307
        %v3562 = vpack.c.bf16 %v3131, %v2953
        %v3563 = vpack.c.bf16 %v3487, %v3309
        %v3564 = vpack.c.bf16 %v3134, %v2956
        %v3565 = vpack.c.bf16 %v3490, %v3312
        %v3566 = vpack.c.bf16 %v3136, %v2958
        %v3567 = vpack.c.bf16 %v3492, %v3314
        %v3568 = vpack.c.bf16 %v3139, %v2961
        %v3569 = vpack.c.bf16 %v3495, %v3317
        %v3570 = vpack.c.bf16 %v3141, %v2963
        %v3571 = vpack.c.bf16 %v3497, %v3319
        %v3572 = vpack.c.bf16 %v3144, %v2966
        %v3573 = vpack.c.bf16 %v3500, %v3322
        %v3574 = vpack.c.bf16 %v3146, %v2968
        %v3575 = vpack.c.bf16 %v3502, %v3324
        %v3576 = vpack.c.bf16 %v3149, %v2971
        %v3577 = vpack.c.bf16 %v3505, %v3327
        %v3578 = vpack.c.bf16 %v3151, %v2973
        %v3579 = vpack.c.bf16 %v3507, %v3329
        %v3580 = vpack.c.bf16 %v3154, %v2976
        %v3581 = vpack.c.bf16 %v3510, %v3332
        %v3582 = vpack.c.bf16 %v3156, %v2978
        %v3583 = vpack.c.bf16 %v3512, %v3334
        %v3584 = vpack.c.bf16 %v3159, %v2981
        %v3585 = vpack.c.bf16 %v3515, %v3337
        %v3586 = vpack.c.bf16 %v3161, %v2983
        %v3587 = vpack.c.bf16 %v3517, %v3339
        %v3588 = vpack.c.bf16 %v3164, %v2986
        %v3589 = vpack.c.bf16 %v3520, %v3342
        %v3590 = vpack.c.bf16 %v3166, %v2988
        %v3591 = vpack.c.bf16 %v3522, %v3344
        %v3592 = vpack.c.bf16 %v3169, %v2991
        %v3593 = vpack.c.bf16 %v3525, %v3347
        %v3594 = vpack.c.bf16 %v3171, %v2993
        %v3595 = vpack.c.bf16 %v3527, %v3349
        %v3596 = vpack.c.bf16 %v3174, %v2996
        %v3597 = vpack.c.bf16 %v3530, %v3352
        %v3598 = vpack.c.bf16 %v3176, %v2998
        %v3599 = vpack.c.bf16 %v3532, %v3354
        %v3600 = vpack.c.bf16 %v3179, %v3001
        %v3601 = vpack.c.bf16 %v3535, %v3357
        %v3602 = vpack.c.bf16 %v3181, %v3003
        %v3603 = vpack.c.bf16 %v3537, %v3359
        %v3604 = vpack.c.bf16 %v3184, %v3006
        %v3605 = vpack.c.bf16 %v3540, %v3362
        %v3606 = vpack.c.bf16 %v3186, %v3008
        %v3607 = vpack.c.bf16 %v3542, %v3364
        %3608 = vst [vmem:[%s435] sm:$0xff] %v3544
        %3609 = vst [vmem:[%s435 + $0x8] sm:$0xff] %v3545
        %3610 = vst [vmem:[%s435 + $0x10] sm:$0xff] %v3546
        %3611 = vst [vmem:[%s435 + $0x18] sm:$0xff] %v3547
        %3612 = vst [vmem:[%s435 + $0x20] sm:$0xff] %v3548
        %3613 = vst [vmem:[%s435 + $0x28] sm:$0xff] %v3549
        %3614 = vst [vmem:[%s435 + $0x30] sm:$0xff] %v3550
        %3615 = vst [vmem:[%s435 + $0x38] sm:$0xff] %v3551
        %3616 = vst [vmem:[%s435 + $0x40] sm:$0xff] %v3552
        %3617 = vst [vmem:[%s435 + $0x48] sm:$0xff] %v3553
        %3618 = vst [vmem:[%s435 + $0x50] sm:$0xff] %v3554
        %3619 = vst [vmem:[%s435 + $0x58] sm:$0xff] %v3555
        %3620 = vst [vmem:[%s435 + $0x60] sm:$0xff] %v3556
        %3621 = vst [vmem:[%s435 + $0x68] sm:$0xff] %v3557
        %3622 = vst [vmem:[%s435 + $0x70] sm:$0xff] %v3558
        %3623 = vst [vmem:[%s435 + $0x78] sm:$0xff] %v3559
        %3624 = vst [vmem:[%s435 + $0x80] sm:$0xff] %v3560
        %3625 = vst [vmem:[%s435 + $0x88] sm:$0xff] %v3561
        %3626 = vst [vmem:[%s435 + $0x90] sm:$0xff] %v3562
        %3627 = vst [vmem:[%s435 + $0x98] sm:$0xff] %v3563
        %3628 = vst [vmem:[%s435 + $0xa0] sm:$0xff] %v3564
        %3629 = vst [vmem:[%s435 + $0xa8] sm:$0xff] %v3565
        %3630 = vst [vmem:[%s435 + $0xb0] sm:$0xff] %v3566
        %3631 = vst [vmem:[%s435 + $0xb8] sm:$0xff] %v3567
        %3632 = vst [vmem:[%s435 + $0xc0] sm:$0xff] %v3568
        %3633 = vst [vmem:[%s435 + $0xc8] sm:$0xff] %v3569
        %3634 = vst [vmem:[%s435 + $0xd0] sm:$0xff] %v3570
        %3635 = vst [vmem:[%s435 + $0xd8] sm:$0xff] %v3571
        %3636 = vst [vmem:[%s435 + $0xe0] sm:$0xff] %v3572
        %3637 = vst [vmem:[%s435 + $0xe8] sm:$0xff] %v3573
        %3638 = vst [vmem:[%s435 + $0xf0] sm:$0xff] %v3574
        %3639 = vst [vmem:[%s435 + $0xf8] sm:$0xff] %v3575
        %3640 = vst [vmem:[%s435 + $0x100] sm:$0xff] %v3576
        %3641 = vst [vmem:[%s435 + $0x108] sm:$0xff] %v3577
        %3642 = vst [vmem:[%s435 + $0x110] sm:$0xff] %v3578
        %3643 = vst [vmem:[%s435 + $0x118] sm:$0xff] %v3579
        %3644 = vst [vmem:[%s435 + $0x120] sm:$0xff] %v3580
        %3645 = vst [vmem:[%s435 + $0x128] sm:$0xff] %v3581
        %3646 = vst [vmem:[%s435 + $0x130] sm:$0xff] %v3582
        %3647 = vst [vmem:[%s435 + $0x138] sm:$0xff] %v3583
        %3648 = vst [vmem:[%s435 + $0x140] sm:$0xff] %v3584
        %3649 = vst [vmem:[%s435 + $0x148] sm:$0xff] %v3585
        %3650 = vst [vmem:[%s435 + $0x150] sm:$0xff] %v3586
        %3651 = vst [vmem:[%s435 + $0x158] sm:$0xff] %v3587
        %3652 = vst [vmem:[%s435 + $0x160] sm:$0xff] %v3588
        %3653 = vst [vmem:[%s435 + $0x168] sm:$0xff] %v3589
        %3654 = vst [vmem:[%s435 + $0x170] sm:$0xff] %v3590
        %3655 = vst [vmem:[%s435 + $0x178] sm:$0xff] %v3591
        %3656 = vst [vmem:[%s435 + $0x180] sm:$0xff] %v3592
        %3657 = vst [vmem:[%s435 + $0x188] sm:$0xff] %v3593
        %3658 = vst [vmem:[%s435 + $0x190] sm:$0xff] %v3594
        %3659 = vst [vmem:[%s435 + $0x198] sm:$0xff] %v3595
        %3660 = vst [vmem:[%s435 + $0x1a0] sm:$0xff] %v3596
        %3661 = vst [vmem:[%s435 + $0x1a8] sm:$0xff] %v3597
        %3662 = vst [vmem:[%s435 + $0x1b0] sm:$0xff] %v3598
        %3663 = vst [vmem:[%s435 + $0x1b8] sm:$0xff] %v3599
        %3664 = vst [vmem:[%s435 + $0x1c0] sm:$0xff] %v3600
        %3665 = vst [vmem:[%s435 + $0x1c8] sm:$0xff] %v3601
        %3666 = vst [vmem:[%s435 + $0x1d0] sm:$0xff] %v3602
        %3667 = vst [vmem:[%s435 + $0x1d8] sm:$0xff] %v3603
        %3668 = vst [vmem:[%s435 + $0x1e0] sm:$0xff] %v3604
        %3669 = vst [vmem:[%s435 + $0x1e8] sm:$0xff] %v3605
        %3670 = vst [vmem:[%s435 + $0x1f0] sm:$0xff] %v3606
        %3671 = vst [vmem:[%s435 + $0x1f8] sm:$0xff] %v3607
        %s3672 = sand.u32 %s214, 1
        %s3673 = scalar_lea.sflag [#allocation6], %s3672
        %s3674 = sand.u32 %s214, 1
        %s3675 = smul.addr %s3674, 512
        %s3676 = scalar_lea.vmem [#allocation13], %s3675
        %s3677 = smul.u32 32, %s34
        %p3678 = scmp.lt.s32.totalorder %s3677, 63
        %s3679 = scalar_select %p3678, %s3677, 63
        %s3680 = smul.addr %s3679, 8
        %s3681 = scalar_lea.vmem %s8, %s3680
        // Predicated region
        $region73: #{policy_and_value_forward.1} parent=47 // pred_check
          %p3682 = pneg %p224
        $region74: #{policy_and_value_forward.1} parent=47 // pred_check_branch
          %3684 = sbr.rel (%p3682) target = $region76
        $region75: #{policy_and_value_forward.1} parent=47 // pred_region
          %s3685 = smul.u32 32, %s34
          %s3686 = smul.u32 4, %s35
          %3688 = vsyncadd %s3673, 0
          %s3689 = smul.addr %s3685, 8
          %s3690 = sadd.s32 %s3686, %s3689
          %s3691 = smul.addr %s3690, 4
          %s3692 = scalar_lea.hbm %s7, %s3691
          %s3693 = sshll.u32 %s3676, 4
          %s3694 = int_to_ptr.vmem [resolvable:$true] %s3693
          %s3695 = sshll.u32 %s3692, 4
          %s3696 = int_to_ptr.hbm [resolvable:$true] %s3695
          %3701 = dma.vmem_to_hbm [thread:$0]  %s3694, 8192, %s3696, %s3673, 256, 512, 16
        $region76: #{policy_and_value_forward.1} parent=47 // pred_fallthru
          _
        // Predicated region
        $region77: #{policy_and_value_forward.1} parent=47 // pred_check
          %p3702 = pneg %p250
        $region78: #{policy_and_value_forward.1} parent=47 // pred_check_branch
          %3704 = sbr.rel (%p3702) target = $region80
        $region79: #{policy_and_value_forward.1} parent=47 // pred_region
          %s3705 = smul.u32 32, %s34
        $region80: #{policy_and_value_forward.1} parent=47 // pred_fallthru
          _
      $region48: #{policy_and_value_forward.1} parent=5 // pred_fallthru
        _
      %p3706 = scmp.le.s32.totalorder 2, %s25
      // Predicated region
      $region81: #{policy_and_value_forward.1} parent=5 // pred_check
        %p3707 = pneg %p3706
      $region82: #{policy_and_value_forward.1} parent=5 // pred_check_branch
        %3709 = sbr.rel (%p3707) target = $region84
      $region83: #{policy_and_value_forward.1} parent=5 // pred_region
        %s3710 = ssub.s32 %s25, 2
        // Predicated region
        $region85: #{policy_and_value_forward.1} parent=83 // pred_check
          %p3711 = pneg %p230
        $region86: #{policy_and_value_forward.1} parent=83 // pred_check_branch
          %3713 = sbr.rel (%p3711) target = $region88
        $region87: #{policy_and_value_forward.1} parent=83 // pred_region
          %s3714 = sand.u32 %s215, 1
          %s3715 = scalar_lea.sflag [#allocation6], %s3714
          %s3716 = sand.u32 %s215, 1
          %s3717 = smul.addr %s3716, 512
          %s3718 = scalar_lea.vmem [#allocation13], %s3717
          %3720 = dma.done %s3715, 8192
        $region88: #{policy_and_value_forward.1} parent=83 // pred_fallthru
          _
        // Predicated region
        $region89: #{policy_and_value_forward.1} parent=83 // pred_check
          %p3721 = pneg %p256
        $region90: #{policy_and_value_forward.1} parent=83 // pred_check_branch
          %3723 = sbr.rel (%p3721) target = $region92
        $region91: #{policy_and_value_forward.1} parent=83 // pred_region
          %s3724 = smul.u32 32, %s36
          %p3725 = scmp.lt.s32.totalorder %s3724, 63
          %s3726 = scalar_select %p3725, %s3724, 63
          %s3727 = smul.addr %s3726, 8
          %s3728 = scalar_lea.vmem %s8, %s3727
        $region92: #{policy_and_value_forward.1} parent=83 // pred_fallthru
          _
      $region84: #{policy_and_value_forward.1} parent=5 // pred_fallthru
        _
    $region6: #{policy_and_value_forward.1} parent=1 // loop_footer
      %s29 = sadd.s32 1, %s25
    $region7: #{policy_and_value_forward.1} parent=1 // loop_footer_branch
      %24 = sbr.rel target = $region3
    $region8: #{policy_and_value_forward.1} parent=1 // loop_exit
      _
    %3729 = vsyncpa [#allocation5], 1
    %s3730 = scalar_lea.sflag [#allocation5], 1
    %3731 = vsyncpa %s3730, 1
    %3732 = vsyncpa [#allocation8], 1
    %3733 = vsyncpa [#allocation11], 1
    %s3734 = scalar_lea.sflag [#allocation11], 1
    %3735 = vsyncpa %s3734, 1
    %3736 = vsyncpa [#allocation6], 1
    %s3737 = scalar_lea.sflag [#allocation6], 1
    %3738 = vsyncpa %s3737, 1

</llo_original>
